<compile_context>
chip_gen: v7x
topology: tpu7x:2x2x1
jax: 0.10.0
libtpu: 0.0.40
codegen_flags: <defaults>
</compile_context>

<pallas_src>
import functools

import jax
import jax.numpy as jnp
from jax.experimental import pallas as pl
from jax.experimental.pallas import tpu as pltpu

EPS = 1e-5  # nn.LayerNorm default


# ---------------------------------------------------------------------------
# in-kernel helpers (traced inside the Pallas kernel body)
# ---------------------------------------------------------------------------
def _layernorm(x, g, b):
    mu = jnp.mean(x, axis=-1, keepdims=True)
    var = jnp.mean((x - mu) ** 2, axis=-1, keepdims=True)
    return (x - mu) * jax.lax.rsqrt(var + EPS) * g + b


def _split_heads(x, n_head):
    # (S, n_head*hd) -> (n_head, S, hd); lane slices + leading-axis stack
    # (avoids minor-dim reshapes, which are the riskier lowering path).
    s, inner = x.shape
    hd = inner // n_head
    return jnp.stack([x[:, h * hd:(h + 1) * hd] for h in range(n_head)], axis=0)


def _merge_heads(x):
    # (n_head, S, hd) -> (S, n_head*hd)
    n_head = x.shape[0]
    return jnp.concatenate([x[h] for h in range(n_head)], axis=-1)


def _rope(x, cos, sin):
    # x: (n_head, S, hd); cos/sin: (1, S, hd) -- applied once to ALL heads.
    hd = x.shape[-1]
    x1 = x[..., : hd // 2]
    x2 = x[..., hd // 2:]
    rot = jnp.concatenate([-x2, x1], axis=-1)
    return x * cos + rot * sin


def _mha(q, k, v, n_head, *, causal, cos=None, sin=None):
    """Head-batched multi-head attention. q/k/v are (S, inner) f32."""
    s_q, inner = q.shape
    s_k = k.shape[0]
    hd = inner // n_head
    # Fold the softmax scale into q once (one (S, inner) multiply instead of a
    # full (S, S) multiply per head).
    q = q * (float(hd) ** -0.5)
    qh = _split_heads(q, n_head)          # (H, S_q, hd) f32
    kh = _split_heads(k, n_head)          # (H, S_k, hd) f32
    vh = _split_heads(v, n_head)          # (H, S_k, hd) f32
    if cos is not None:
        qh = _rope(qh, cos, sin)
        kh = _rope(kh, cos, sin)
    # One batched bf16 MXU contraction for all heads, f32 accumulation.
    scores = jnp.einsum("hqd,hkd->hqk",
                        qh.astype(jnp.bfloat16), kh.astype(jnp.bfloat16),
                        preferred_element_type=jnp.float32)   # (H, S_q, S_k)
    if causal:
        row = jax.lax.broadcasted_iota(jnp.int32, (1, s_q, s_k), 1)
        col = jax.lax.broadcasted_iota(jnp.int32, (1, s_q, s_k), 2)
        scores = jnp.where(row >= col, scores, jnp.float32(-1e30))
    # softmax in f32; divide on the EUP via approximate reciprocal
    scores = scores - jnp.max(scores, axis=-1, keepdims=True)
    p = jnp.exp(scores)
    p = p * pl.reciprocal(jnp.sum(p, axis=-1, keepdims=True), approx=True)
    out = jnp.einsum("hqk,hkd->hqd",
                     p.astype(jnp.bfloat16), vh.astype(jnp.bfloat16),
                     preferred_element_type=jnp.float32)      # (H, S_q, hd)
    return _merge_heads(out)                                   # (S_q, inner) f32
    # TODO(synk): at production sequence lengths switch to flash-style kv-block
    # tiling with online softmax instead of materializing (S, S) scores.


# ---------------------------------------------------------------------------
# fused decoder stack: grid = (batch, layer); activation resident in VMEM
# ---------------------------------------------------------------------------
def fused_decoder_kernel(x_ref, enc_ref, cos_ref, sin_ref,
                         g1_ref, b1_ref,
                         wq_ref, wk_ref, wv_ref, wo_ref,
                         g2_ref, b2_ref,
                         cwq_ref, cwk_ref, cwv_ref, cwo_ref,
                         g3_ref, b3_ref,
                         w1_ref, bw1_ref, w2_ref, bw2_ref,
                         out_ref, x_vmem, *, n_head):
    layer = pl.program_id(1)

    # load the embedding activations into the resident scratch at layer 0
    @pl.when(layer == 0)
    def _():
        x_vmem[...] = x_ref[...]

    x = x_vmem[...]            # (S, D) f32 residual stream
    enc = enc_ref[...]         # (S_enc, D) bf16
    cos = cos_ref[...]         # (1, S, hd) f32
    sin = sin_ref[...]

    # --- self attention (pre-norm, RoPE, causal) ---
    skip = x
    xn = _layernorm(x, g1_ref[...], b1_ref[...]).astype(jnp.bfloat16)
    q = jnp.dot(xn, wq_ref[...], preferred_element_type=jnp.float32)
    k = jnp.dot(xn, wk_ref[...], preferred_element_type=jnp.float32)
    v = jnp.dot(xn, wv_ref[...], preferred_element_type=jnp.float32)
    attn = _mha(q, k, v, n_head, causal=True, cos=cos, sin=sin)
    x = jnp.dot(attn.astype(jnp.bfloat16), wo_ref[...],
                preferred_element_type=jnp.float32) + skip

    # --- cross attention (Q from x, K/V from encoder hidden state) ---
    skip = x
    xn = _layernorm(x, g2_ref[...], b2_ref[...]).astype(jnp.bfloat16)
    q = jnp.dot(xn, cwq_ref[...], preferred_element_type=jnp.float32)
    k = jnp.dot(enc, cwk_ref[...], preferred_element_type=jnp.float32)
    v = jnp.dot(enc, cwv_ref[...], preferred_element_type=jnp.float32)
    attn = _mha(q, k, v, n_head, causal=False)
    x = jnp.dot(attn.astype(jnp.bfloat16), cwo_ref[...],
                preferred_element_type=jnp.float32) + skip

    # --- "ffSwiglu": Linear -> SiLU -> Linear (exactly as the reference) ---
    skip = x
    xn = _layernorm(x, g3_ref[...], b3_ref[...]).astype(jnp.bfloat16)
    h = jnp.dot(xn, w1_ref[...], preferred_element_type=jnp.float32) + bw1_ref[...]
    h = h * jax.nn.sigmoid(h)  # SiLU, f32
    x = (jnp.dot(h.astype(jnp.bfloat16), w2_ref[...],
                 preferred_element_type=jnp.float32) + bw2_ref[...] + skip)
    # TODO(synk): at production D/ff on v7x (64 MiB VMEM), add a reduction grid
    # axis over the FFN hidden dim so w1/w2 stream in column/row tiles.

    # carry activation to the next layer; output block is resident across the
    # layer axis and only written back to HBM after the last layer.
    x_vmem[...] = x
    out_ref[...] = x


def fused_decoder(x, enc, cos, sin, stacked, n_head):
    B, S, D = x.shape
    S_enc = enc.shape[1]
    n_layer = stacked[0].shape[0]

    def wspec(w):
        # stacked per-layer weight: select the layer slice, squeeze it out
        return pl.BlockSpec((None,) + w.shape[1:], lambda b, l: (l, 0, 0))

    in_specs = (
        [pl.BlockSpec((None, S, D), lambda b, l: (b, 0, 0)),       # x
         pl.BlockSpec((None, S_enc, D), lambda b, l: (b, 0, 0)),   # enc
         pl.BlockSpec(cos.shape, lambda b, l: (0, 0, 0)),          # cos
         pl.BlockSpec(sin.shape, lambda b, l: (0, 0, 0))]          # sin
        + [wspec(w) for w in stacked]
    )
    return pl.pallas_call(
        functools.partial(fused_decoder_kernel, n_head=n_head),
        grid=(B, n_layer),
        in_specs=in_specs,
        out_specs=pl.BlockSpec((None, S, D), lambda b, l: (b, 0, 0)),
        out_shape=jax.ShapeDtypeStruct((B, S, D), jnp.float32),
        scratch_shapes=[pltpu.VMEM((S, D), jnp.float32)],
        compiler_params=pltpu.CompilerParams(
            dimension_semantics=("parallel", "arbitrary")),
    )(x, enc, cos, sin, *stacked)


# ---------------------------------------------------------------------------
# final LayerNorm + tied reverse-embedding logits, vocab-tiled
# ---------------------------------------------------------------------------
def final_logits_kernel(x_ref, g_ref, b_ref, embt_ref, out_ref):
    xn = _layernorm(x_ref[...], g_ref[...], b_ref[...]).astype(jnp.bfloat16)
    out_ref[...] = jnp.dot(xn, embt_ref[...], preferred_element_type=jnp.float32)


def final_logits(x, g, b, emb_t, tile_v=256):
    B, S, D = x.shape
    V = emb_t.shape[1]
    TV = tile_v if V % tile_v == 0 else V
    return pl.pallas_call(
        final_logits_kernel,
        grid=(B, V // TV),
        in_specs=[
            pl.BlockSpec((None, S, D), lambda i, j: (i, 0, 0)),
            pl.BlockSpec((1, D), lambda i, j: (0, 0)),
            pl.BlockSpec((1, D), lambda i, j: (0, 0)),
            pl.BlockSpec((D, TV), lambda i, j: (0, j)),
        ],
        out_specs=pl.BlockSpec((None, S, TV), lambda i, j: (i, 0, j)),
        out_shape=jax.ShapeDtypeStruct((B, S, V), jnp.float32),
        compiler_params=pltpu.CompilerParams(
            dimension_semantics=("parallel", "parallel")),
    )(x, g, b, emb_t)


# ---------------------------------------------------------------------------
# parameters (stacked per layer) / RoPE tables (deterministic, in-script)
# ---------------------------------------------------------------------------
def init_params(key, n_layer, dim, inner, dim_mult, vocab):
    ff = dim * dim_mult * 2
    k_emb, key = jax.random.split(key)
    emb = (0.1 * jax.random.normal(k_emb, (vocab, dim))).astype(jnp.float32)

    def dense(k, shape, scale=0.05):
        return (scale * jax.random.normal(k, shape)).astype(jnp.bfloat16)

    ones = lambda n: jnp.ones((n_layer, 1, n), jnp.float32)
    zeros = lambda n: jnp.zeros((n_layer, 1, n), jnp.float32)

    ks = jax.random.split(key, 10)
    stacked = [
        ones(dim), zeros(dim),                                      # norm1
        dense(ks[0], (n_layer, dim, inner)),                        # Wq
        dense(ks[1], (n_layer, dim, inner)),                        # Wk
        dense(ks[2], (n_layer, dim, inner)),                        # Wv
        dense(ks[3], (n_layer, inner, dim)),                        # Wo
        ones(dim), zeros(dim),                                      # norm2
        dense(ks[4], (n_layer, dim, inner)),                        # cross Wq
        dense(ks[5], (n_layer, dim, inner)),                        # cross Wk
        dense(ks[6], (n_layer, dim, inner)),                        # cross Wv
        dense(ks[7], (n_layer, inner, dim)),                        # cross Wo
        ones(dim), zeros(dim),                                      # norm3
        dense(ks[8], (n_layer, dim, ff)), zeros(ff),                # ff linear 1
        dense(ks[9], (n_layer, ff, dim)), zeros(dim),               # ff linear 2
    ]
    g_fin = jnp.ones((1, dim), jnp.float32)
    b_fin = jnp.zeros((1, dim), jnp.float32)
    return emb, stacked, g_fin, b_fin


def rope_tables(seq_len, head_dim, base=10000.0):
    half = head_dim // 2
    inv_freq = 1.0 / (base ** (jnp.arange(half, dtype=jnp.float32) / half))
    ang = jnp.arange(seq_len, dtype=jnp.float32)[:, None] * inv_freq[None, :]
    cos = jnp.concatenate([jnp.cos(ang), jnp.cos(ang)], axis=-1)
    sin = jnp.concatenate([jnp.sin(ang), jnp.sin(ang)], axis=-1)
    return cos[None].astype(jnp.float32), sin[None].astype(jnp.float32)


# ---------------------------------------------------------------------------
# full forward (AudioDecoders.forward)
# ---------------------------------------------------------------------------
def audio_decoders_forward(tokens, enc, params, n_head, inner):
    emb, stacked, g_fin, b_fin = params
    # TODO(synk): token-embedding gather stays plain-JAX glue (data-dependent
    # row gather has no clean BlockSpec form at this size).
    x = jnp.take(emb, tokens, axis=0).astype(jnp.float32)
    cos, sin = rope_tables(tokens.shape[1], inner // n_head)
    x = fused_decoder(x, enc.astype(jnp.bfloat16), cos, sin, stacked, n_head)
    # tied weights: logits = finalNorm(x) @ emb.T; pre-transpose host-side so
    # the vocab-tiled kernel gets a lane-dense (D, V) table (bf16 stream).
    emb_t = emb.T.astype(jnp.bfloat16)
    return final_logits(x, g_fin, b_fin, emb_t)


# ---------------------------------------------------------------------------
if __name__ == "__main__":
    # small shapes consistent with the module's forward
    B, S, S_ENC = 2, 8, 8
    DIM, INNER, N_HEAD, DIM_MULT, N_DEC, VOCAB = 32, 32, 4, 4, 2, 512

    key = jax.random.PRNGKey(0)
    k_tok, k_enc, k_par = jax.random.split(key, 3)

    tokens = jax.random.randint(k_tok, (B, S), 0, VOCAB, dtype=jnp.int32)
    encoder_hidden = (0.5 * jax.random.normal(k_enc, (B, S_ENC, DIM))).astype(jnp.float32)

    params = init_params(k_par, N_DEC, DIM, INNER, DIM_MULT, VOCAB)

    logits = audio_decoders_forward(tokens, encoder_hidden, params, N_HEAD, INNER)
    logits = jax.block_until_ready(logits)

    assert logits.shape == (B, S, VOCAB), logits.shape
    assert bool(jnp.all(jnp.isfinite(logits)))
    print("KERNEL_OK")
</pallas_src>

<mosaic_0001>
module attributes {stable_mosaic.version = 11 : i64} {
  func.func @fused_decoder_kernel(%arg0: i32, %arg1: i32, %arg2: memref<1x8x32xf32, #tpu.memory_space<vmem>>, %arg3: memref<1x8x32xbf16, #tpu.memory_space<vmem>>, %arg4: memref<1x8x8xf32, #tpu.memory_space<vmem>>, %arg5: memref<1x8x8xf32, #tpu.memory_space<vmem>>, %arg6: memref<1x1x32xf32, #tpu.memory_space<vmem>>, %arg7: memref<1x1x32xf32, #tpu.memory_space<vmem>>, %arg8: memref<1x32x32xbf16, #tpu.memory_space<vmem>>, %arg9: memref<1x32x32xbf16, #tpu.memory_space<vmem>>, %arg10: memref<1x32x32xbf16, #tpu.memory_space<vmem>>, %arg11: memref<1x32x32xbf16, #tpu.memory_space<vmem>>, %arg12: memref<1x1x32xf32, #tpu.memory_space<vmem>>, %arg13: memref<1x1x32xf32, #tpu.memory_space<vmem>>, %arg14: memref<1x32x32xbf16, #tpu.memory_space<vmem>>, %arg15: memref<1x32x32xbf16, #tpu.memory_space<vmem>>, %arg16: memref<1x32x32xbf16, #tpu.memory_space<vmem>>, %arg17: memref<1x32x32xbf16, #tpu.memory_space<vmem>>, %arg18: memref<1x1x32xf32, #tpu.memory_space<vmem>>, %arg19: memref<1x1x32xf32, #tpu.memory_space<vmem>>, %arg20: memref<1x32x256xbf16, #tpu.memory_space<vmem>>, %arg21: memref<1x1x256xf32, #tpu.memory_space<vmem>>, %arg22: memref<1x256x32xbf16, #tpu.memory_space<vmem>>, %arg23: memref<1x1x32xf32, #tpu.memory_space<vmem>>, %arg24: memref<1x8x32xf32, #tpu.memory_space<vmem>>, %arg25: memref<8x32xf32, #tpu.memory_space<vmem>>) attributes {dimension_semantics = [#tpu.dimension_semantics<parallel>, #tpu.dimension_semantics<arbitrary>], iteration_bounds = array<i64: 2, 2>, scalar_prefetch = 0 : i64, scratch_operands = 1 : i64, tpu.core_type = #tpu.core_type<tc>, window_params = [{transform_indices = @transform_0, window_bounds = array<i64: 1, 8, 32>}, {transform_indices = @transform_1, window_bounds = array<i64: 1, 8, 32>}, {pipeline_mode = #tpu.pipeline_mode<synchronous>, transform_indices = @transform_2, window_bounds = array<i64: 1, 8, 8>}, {pipeline_mode = #tpu.pipeline_mode<synchronous>, transform_indices = @transform_3, window_bounds = array<i64: 1, 8, 8>}, {transform_indices = @transform_4, window_bounds = array<i64: 1, 1, 32>}, {transform_indices = @transform_5, window_bounds = array<i64: 1, 1, 32>}, {transform_indices = @transform_6, window_bounds = array<i64: 1, 32, 32>}, {transform_indices = @transform_7, window_bounds = array<i64: 1, 32, 32>}, {transform_indices = @transform_8, window_bounds = array<i64: 1, 32, 32>}, {transform_indices = @transform_9, window_bounds = array<i64: 1, 32, 32>}, {transform_indices = @transform_10, window_bounds = array<i64: 1, 1, 32>}, {transform_indices = @transform_11, window_bounds = array<i64: 1, 1, 32>}, {transform_indices = @transform_12, window_bounds = array<i64: 1, 32, 32>}, {transform_indices = @transform_13, window_bounds = array<i64: 1, 32, 32>}, {transform_indices = @transform_14, window_bounds = array<i64: 1, 32, 32>}, {transform_indices = @transform_15, window_bounds = array<i64: 1, 32, 32>}, {transform_indices = @transform_16, window_bounds = array<i64: 1, 1, 32>}, {transform_indices = @transform_17, window_bounds = array<i64: 1, 1, 32>}, {transform_indices = @transform_18, window_bounds = array<i64: 1, 32, 256>}, {transform_indices = @transform_19, window_bounds = array<i64: 1, 1, 256>}, {transform_indices = @transform_20, window_bounds = array<i64: 1, 256, 32>}, {transform_indices = @transform_21, window_bounds = array<i64: 1, 1, 32>}, {transform_indices = @transform_22, window_bounds = array<i64: 1, 8, 32>}]} {
    %c0_i32 = arith.constant 0 : i32
    %0 = arith.cmpi eq, %arg1, %c0_i32 : i32
    %1 = arith.extui %0 : i1 to i32
    %c0_i32_0 = arith.constant 0 : i32
    %2 = arith.cmpi ne, %1, %c0_i32_0 : i32
    scf.if %2 {
      %c0_108 = arith.constant 0 : index
      %c0_109 = arith.constant 0 : index
      %c0_110 = arith.constant 0 : index
      %278 = vector.load %arg2[%c0_108, %c0_109, %c0_110] : memref<1x8x32xf32, #tpu.memory_space<vmem>>, vector<1x8x32xf32>
      %279 = vector.shape_cast %278 : vector<1x8x32xf32> to vector<8x32xf32>
      %c0_111 = arith.constant 0 : index
      %c0_112 = arith.constant 0 : index
      %280 = vector.load %arg25[%c0_111, %c0_112] : memref<8x32xf32, #tpu.memory_space<vmem>>, vector<8x32xf32>
      tpu.vector_store %arg25[%c0_111, %c0_112], %279 {strides = array<i32>} : memref<8x32xf32, #tpu.memory_space<vmem>>, vector<8x32xf32>,
    } else {
    }
    %c0 = arith.constant 0 : index
    %c0_1 = arith.constant 0 : index
    %3 = vector.load %arg25[%c0, %c0_1] : memref<8x32xf32, #tpu.memory_space<vmem>>, vector<8x32xf32>
    %c0_2 = arith.constant 0 : index
    %c0_3 = arith.constant 0 : index
    %c0_4 = arith.constant 0 : index
    %4 = vector.load %arg3[%c0_2, %c0_3, %c0_4] : memref<1x8x32xbf16, #tpu.memory_space<vmem>>, vector<1x8x32xbf16>
    %5 = vector.shape_cast %4 : vector<1x8x32xbf16> to vector<8x32xbf16>
    %c0_5 = arith.constant 0 : index
    %c0_6 = arith.constant 0 : index
    %c0_7 = arith.constant 0 : index
    %6 = vector.load %arg4[%c0_5, %c0_6, %c0_7] : memref<1x8x8xf32, #tpu.memory_space<vmem>>, vector<1x8x8xf32>
    %c0_8 = arith.constant 0 : index
    %c0_9 = arith.constant 0 : index
    %c0_10 = arith.constant 0 : index
    %7 = vector.load %arg5[%c0_8, %c0_9, %c0_10] : memref<1x8x8xf32, #tpu.memory_space<vmem>>, vector<1x8x8xf32>
    %c0_11 = arith.constant 0 : index
    %c0_12 = arith.constant 0 : index
    %c0_13 = arith.constant 0 : index
    %8 = vector.load %arg6[%c0_11, %c0_12, %c0_13] : memref<1x1x32xf32, #tpu.memory_space<vmem>>, vector<1x1x32xf32>
    %9 = vector.shape_cast %8 : vector<1x1x32xf32> to vector<1x32xf32>
    %c0_14 = arith.constant 0 : index
    %c0_15 = arith.constant 0 : index
    %c0_16 = arith.constant 0 : index
    %10 = vector.load %arg7[%c0_14, %c0_15, %c0_16] : memref<1x1x32xf32, #tpu.memory_space<vmem>>, vector<1x1x32xf32>
    %11 = vector.shape_cast %10 : vector<1x1x32xf32> to vector<1x32xf32>
    %cst = arith.constant dense<0.000000e+00> : vector<8xf32>
    %12 = vector.multi_reduction <add>, %3, %cst [1] : vector<8x32xf32> to vector<8xf32>
    %13 = vector.shape_cast %12 : vector<8xf32> to vector<8x1xf32>
    %cst_17 = arith.constant 3.200000e+01 : f32
    %14 = vector.broadcast %cst_17 : f32 to vector<8x1xf32>
    %15 = arith.divf %13, %14 : vector<8x1xf32>
    %16 = vector.broadcast %15 : vector<8x1xf32> to vector<8x32xf32>
    %17 = arith.subf %3, %16 : vector<8x32xf32>
    %18 = arith.mulf %17, %17 : vector<8x32xf32>
    %cst_18 = arith.constant dense<0.000000e+00> : vector<8xf32>
    %19 = vector.multi_reduction <add>, %18, %cst_18 [1] : vector<8x32xf32> to vector<8xf32>
    %20 = vector.shape_cast %19 : vector<8xf32> to vector<8x1xf32>
    %cst_19 = arith.constant 3.200000e+01 : f32
    %21 = vector.broadcast %cst_19 : f32 to vector<8x1xf32>
    %22 = arith.divf %20, %21 : vector<8x1xf32>
    %23 = vector.broadcast %15 : vector<8x1xf32> to vector<8x32xf32>
    %24 = arith.subf %3, %23 : vector<8x32xf32>
    %cst_20 = arith.constant 9.99999974E-6 : f32
    %25 = vector.broadcast %cst_20 : f32 to vector<8x1xf32>
    %26 = arith.addf %22, %25 : vector<8x1xf32>
    %27 = math.rsqrt %26 : vector<8x1xf32>
    %28 = vector.broadcast %27 : vector<8x1xf32> to vector<8x32xf32>
    %29 = arith.mulf %24, %28 : vector<8x32xf32>
    %30 = vector.broadcast %9 : vector<1x32xf32> to vector<8x32xf32>
    %31 = arith.mulf %29, %30 : vector<8x32xf32>
    %32 = vector.broadcast %11 : vector<1x32xf32> to vector<8x32xf32>
    %33 = arith.addf %31, %32 : vector<8x32xf32>
    %34 = arith.truncf %33 : vector<8x32xf32> to vector<8x32xbf16>
    %c0_21 = arith.constant 0 : index
    %c0_22 = arith.constant 0 : index
    %c0_23 = arith.constant 0 : index
    %35 = vector.load %arg8[%c0_21, %c0_22, %c0_23] : memref<1x32x32xbf16, #tpu.memory_space<vmem>>, vector<1x32x32xbf16>
    %36 = vector.shape_cast %35 : vector<1x32x32xbf16> to vector<32x32xbf16>
    %cst_24 = arith.constant dense<0.000000e+00> : vector<8x32xf32>
    %37 = tpu.matmul %34, %36, %cst_24 {dimension_numbers = #tpu.dot_dimension_numbers<[1], [0], [0], [1], [0, 0, 1, 1], [], []>} : vector<8x32xbf16>, vector<32x32xbf16>, vector<8x32xf32> -> vector<8x32xf32>
    %c0_25 = arith.constant 0 : index
    %c0_26 = arith.constant 0 : index
    %c0_27 = arith.constant 0 : index
    %38 = vector.load %arg9[%c0_25, %c0_26, %c0_27] : memref<1x32x32xbf16, #tpu.memory_space<vmem>>, vector<1x32x32xbf16>
    %39 = vector.shape_cast %38 : vector<1x32x32xbf16> to vector<32x32xbf16>
    %cst_28 = arith.constant dense<0.000000e+00> : vector<8x32xf32>
    %40 = tpu.matmul %34, %39, %cst_28 {dimension_numbers = #tpu.dot_dimension_numbers<[1], [0], [0], [1], [0, 0, 1, 1], [], []>} : vector<8x32xbf16>, vector<32x32xbf16>, vector<8x32xf32> -> vector<8x32xf32>
    %c0_29 = arith.constant 0 : index
    %c0_30 = arith.constant 0 : index
    %c0_31 = arith.constant 0 : index
    %41 = vector.load %arg10[%c0_29, %c0_30, %c0_31] : memref<1x32x32xbf16, #tpu.memory_space<vmem>>, vector<1x32x32xbf16>
    %42 = vector.shape_cast %41 : vector<1x32x32xbf16> to vector<32x32xbf16>
    %cst_32 = arith.constant dense<0.000000e+00> : vector<8x32xf32>
    %43 = tpu.matmul %34, %42, %cst_32 {dimension_numbers = #tpu.dot_dimension_numbers<[1], [0], [0], [1], [0, 0, 1, 1], [], []>} : vector<8x32xbf16>, vector<32x32xbf16>, vector<8x32xf32> -> vector<8x32xf32>
    %cst_33 = arith.constant 0.353553385 : f32
    %44 = vector.broadcast %cst_33 : f32 to vector<8x32xf32>
    %45 = arith.mulf %37, %44 : vector<8x32xf32>
    %46 = vector.extract_strided_slice %45 {offsets = [0, 0], sizes = [8, 8], strides = [1, 1]} : vector<8x32xf32> to vector<8x8xf32>
    %47 = vector.extract_strided_slice %45 {offsets = [0, 8], sizes = [8, 8], strides = [1, 1]} : vector<8x32xf32> to vector<8x8xf32>
    %48 = vector.extract_strided_slice %45 {offsets = [0, 16], sizes = [8, 8], strides = [1, 1]} : vector<8x32xf32> to vector<8x8xf32>
    %49 = vector.extract_strided_slice %45 {offsets = [0, 24], sizes = [8, 8], strides = [1, 1]} : vector<8x32xf32> to vector<8x8xf32>
    %50 = vector.shape_cast %46 : vector<8x8xf32> to vector<1x8x8xf32>
    %51 = vector.shape_cast %47 : vector<8x8xf32> to vector<1x8x8xf32>
    %52 = vector.shape_cast %48 : vector<8x8xf32> to vector<1x8x8xf32>
    %53 = vector.shape_cast %49 : vector<8x8xf32> to vector<1x8x8xf32>
    %54 = tpu.concatenate %50, %51, %52, %53 in 0 : vector<1x8x8xf32>, vector<1x8x8xf32>, vector<1x8x8xf32>, vector<1x8x8xf32> -> vector<4x8x8xf32>
    %55 = vector.extract_strided_slice %40 {offsets = [0, 0], sizes = [8, 8], strides = [1, 1]} : vector<8x32xf32> to vector<8x8xf32>
    %56 = vector.extract_strided_slice %40 {offsets = [0, 8], sizes = [8, 8], strides = [1, 1]} : vector<8x32xf32> to vector<8x8xf32>
    %57 = vector.extract_strided_slice %40 {offsets = [0, 16], sizes = [8, 8], strides = [1, 1]} : vector<8x32xf32> to vector<8x8xf32>
    %58 = vector.extract_strided_slice %40 {offsets = [0, 24], sizes = [8, 8], strides = [1, 1]} : vector<8x32xf32> to vector<8x8xf32>
    %59 = vector.shape_cast %55 : vector<8x8xf32> to vector<1x8x8xf32>
    %60 = vector.shape_cast %56 : vector<8x8xf32> to vector<1x8x8xf32>
    %61 = vector.shape_cast %57 : vector<8x8xf32> to vector<1x8x8xf32>
    %62 = vector.shape_cast %58 : vector<8x8xf32> to vector<1x8x8xf32>
    %63 = tpu.concatenate %59, %60, %61, %62 in 0 : vector<1x8x8xf32>, vector<1x8x8xf32>, vector<1x8x8xf32>, vector<1x8x8xf32> -> vector<4x8x8xf32>
    %64 = vector.extract_strided_slice %43 {offsets = [0, 0], sizes = [8, 8], strides = [1, 1]} : vector<8x32xf32> to vector<8x8xf32>
    %65 = vector.extract_strided_slice %43 {offsets = [0, 8], sizes = [8, 8], strides = [1, 1]} : vector<8x32xf32> to vector<8x8xf32>
    %66 = vector.extract_strided_slice %43 {offsets = [0, 16], sizes = [8, 8], strides = [1, 1]} : vector<8x32xf32> to vector<8x8xf32>
    %67 = vector.extract_strided_slice %43 {offsets = [0, 24], sizes = [8, 8], strides = [1, 1]} : vector<8x32xf32> to vector<8x8xf32>
    %68 = vector.shape_cast %64 : vector<8x8xf32> to vector<1x8x8xf32>
    %69 = vector.shape_cast %65 : vector<8x8xf32> to vector<1x8x8xf32>
    %70 = vector.shape_cast %66 : vector<8x8xf32> to vector<1x8x8xf32>
    %71 = vector.shape_cast %67 : vector<8x8xf32> to vector<1x8x8xf32>
    %72 = tpu.concatenate %68, %69, %70, %71 in 0 : vector<1x8x8xf32>, vector<1x8x8xf32>, vector<1x8x8xf32>, vector<1x8x8xf32> -> vector<4x8x8xf32>
    %73 = vector.extract_strided_slice %54 {offsets = [0, 0, 0], sizes = [4, 8, 4], strides = [1, 1, 1]} : vector<4x8x8xf32> to vector<4x8x4xf32>
    %74 = vector.extract_strided_slice %54 {offsets = [0, 0, 4], sizes = [4, 8, 4], strides = [1, 1, 1]} : vector<4x8x8xf32> to vector<4x8x4xf32>
    %cst_34 = arith.constant 0.000000e+00 : f32
    %75 = vector.broadcast %cst_34 : f32 to vector<4x8x4xf32>
    %76 = arith.subf %75, %74 : vector<4x8x4xf32>
    %77 = tpu.concatenate %76, %73 in 2 : vector<4x8x4xf32>, vector<4x8x4xf32> -> vector<4x8x8xf32>
    %78 = vector.broadcast %6 : vector<1x8x8xf32> to vector<4x8x8xf32>
    %79 = arith.mulf %54, %78 : vector<4x8x8xf32>
    %80 = vector.broadcast %7 : vector<1x8x8xf32> to vector<4x8x8xf32>
    %81 = arith.mulf %77, %80 : vector<4x8x8xf32>
    %82 = arith.addf %79, %81 : vector<4x8x8xf32>
    %83 = vector.extract_strided_slice %63 {offsets = [0, 0, 0], sizes = [4, 8, 4], strides = [1, 1, 1]} : vector<4x8x8xf32> to vector<4x8x4xf32>
    %84 = vector.extract_strided_slice %63 {offsets = [0, 0, 4], sizes = [4, 8, 4], strides = [1, 1, 1]} : vector<4x8x8xf32> to vector<4x8x4xf32>
    %cst_35 = arith.constant 0.000000e+00 : f32
    %85 = vector.broadcast %cst_35 : f32 to vector<4x8x4xf32>
    %86 = arith.subf %85, %84 : vector<4x8x4xf32>
    %87 = tpu.concatenate %86, %83 in 2 : vector<4x8x4xf32>, vector<4x8x4xf32> -> vector<4x8x8xf32>
    %88 = vector.broadcast %6 : vector<1x8x8xf32> to vector<4x8x8xf32>
    %89 = arith.mulf %63, %88 : vector<4x8x8xf32>
    %90 = vector.broadcast %7 : vector<1x8x8xf32> to vector<4x8x8xf32>
    %91 = arith.mulf %87, %90 : vector<4x8x8xf32>
    %92 = arith.addf %89, %91 : vector<4x8x8xf32>
    %93 = arith.truncf %82 : vector<4x8x8xf32> to vector<4x8x8xbf16>
    %94 = arith.truncf %92 : vector<4x8x8xf32> to vector<4x8x8xbf16>
    "tpu.trace_start"() <{level = 10 : i32, message = "hqd,hkd->hqk"}> : () -> ()
    %cst_36 = arith.constant dense<0.000000e+00> : vector<4x8x8xf32>
    %95 = tpu.matmul %93, %94, %cst_36 {dimension_numbers = #tpu.dot_dimension_numbers<[2], [2], [1], [1], [0, 0, 0, 1, 1, 1], [0], [0]>} : vector<4x8x8xbf16>, vector<4x8x8xbf16>, vector<4x8x8xf32> -> vector<4x8x8xf32>
    "tpu.trace_stop"() : () -> ()
    %96 = tpu.iota {dimensions = array<i32: 1>} : vector<1x8x8xi32>
    %97 = tpu.iota {dimensions = array<i32: 2>} : vector<1x8x8xi32>
    %98 = arith.cmpi sge, %96, %97 : vector<1x8x8xi32>
    %cst_37 = arith.constant -1.000000e+30 : f32
    %99 = vector.shape_cast %98 : vector<1x8x8xi1> to vector<1x8x8xi1>
    %100 = vector.broadcast %99 : vector<1x8x8xi1> to vector<4x8x8xi1>
    %101 = vector.broadcast %cst_37 : f32 to vector<4x8x8xf32>
    %102 = arith.select %100, %95, %101 : vector<4x8x8xi1>, vector<4x8x8xf32>
    %cst_38 = arith.constant dense<0xFF800000> : vector<4x8xf32>
    %103 = vector.multi_reduction <maximumf>, %102, %cst_38 [2] : vector<4x8x8xf32> to vector<4x8xf32>
    %104 = vector.shape_cast %103 : vector<4x8xf32> to vector<4x8x1xf32>
    %105 = vector.broadcast %104 : vector<4x8x1xf32> to vector<4x8x8xf32>
    %106 = arith.subf %102, %105 : vector<4x8x8xf32>
    %107 = math.exp %106 : vector<4x8x8xf32>
    %cst_39 = arith.constant dense<0.000000e+00> : vector<4x8xf32>
    %108 = vector.multi_reduction <add>, %107, %cst_39 [2] : vector<4x8x8xf32> to vector<4x8xf32>
    %109 = vector.shape_cast %108 : vector<4x8xf32> to vector<4x8x1xf32>
    %110 = tpu.reciprocal %109 {approx = true} : vector<4x8x1xf32> -> vector<4x8x1xf32>
    %111 = vector.broadcast %110 : vector<4x8x1xf32> to vector<4x8x8xf32>
    %112 = arith.mulf %107, %111 : vector<4x8x8xf32>
    %113 = arith.truncf %112 : vector<4x8x8xf32> to vector<4x8x8xbf16>
    %114 = arith.truncf %72 : vector<4x8x8xf32> to vector<4x8x8xbf16>
    "tpu.trace_start"() <{level = 10 : i32, message = "hqk,hkd->hqd"}> : () -> ()
    %cst_40 = arith.constant dense<0.000000e+00> : vector<4x8x8xf32>
    %115 = tpu.matmul %113, %114, %cst_40 {dimension_numbers = #tpu.dot_dimension_numbers<[2], [1], [1], [2], [0, 0, 0, 1, 1, 2], [0], [0]>} : vector<4x8x8xbf16>, vector<4x8x8xbf16>, vector<4x8x8xf32> -> vector<4x8x8xf32>
    "tpu.trace_stop"() : () -> ()
    %116 = vector.extract_strided_slice %115 {offsets = [0, 0, 0], sizes = [1, 8, 8], strides = [1, 1, 1]} : vector<4x8x8xf32> to vector<1x8x8xf32>
    %117 = vector.shape_cast %116 : vector<1x8x8xf32> to vector<8x8xf32>
    %118 = vector.extract_strided_slice %115 {offsets = [1, 0, 0], sizes = [1, 8, 8], strides = [1, 1, 1]} : vector<4x8x8xf32> to vector<1x8x8xf32>
    %119 = vector.shape_cast %118 : vector<1x8x8xf32> to vector<8x8xf32>
    %120 = vector.extract_strided_slice %115 {offsets = [2, 0, 0], sizes = [1, 8, 8], strides = [1, 1, 1]} : vector<4x8x8xf32> to vector<1x8x8xf32>
    %121 = vector.shape_cast %120 : vector<1x8x8xf32> to vector<8x8xf32>
    %122 = vector.extract_strided_slice %115 {offsets = [3, 0, 0], sizes = [1, 8, 8], strides = [1, 1, 1]} : vector<4x8x8xf32> to vector<1x8x8xf32>
    %123 = vector.shape_cast %122 : vector<1x8x8xf32> to vector<8x8xf32>
    %124 = tpu.concatenate %117, %119, %121, %123 in 1 : vector<8x8xf32>, vector<8x8xf32>, vector<8x8xf32>, vector<8x8xf32> -> vector<8x32xf32>
    %125 = arith.truncf %124 : vector<8x32xf32> to vector<8x32xbf16>
    %c0_41 = arith.constant 0 : index
    %c0_42 = arith.constant 0 : index
    %c0_43 = arith.constant 0 : index
    %126 = vector.load %arg11[%c0_41, %c0_42, %c0_43] : memref<1x32x32xbf16, #tpu.memory_space<vmem>>, vector<1x32x32xbf16>
    %127 = vector.shape_cast %126 : vector<1x32x32xbf16> to vector<32x32xbf16>
    %cst_44 = arith.constant dense<0.000000e+00> : vector<8x32xf32>
    %128 = tpu.matmul %125, %127, %cst_44 {dimension_numbers = #tpu.dot_dimension_numbers<[1], [0], [0], [1], [0, 0, 1, 1], [], []>} : vector<8x32xbf16>, vector<32x32xbf16>, vector<8x32xf32> -> vector<8x32xf32>
    %129 = arith.addf %128, %3 : vector<8x32xf32>
    %c0_45 = arith.constant 0 : index
    %c0_46 = arith.constant 0 : index
    %c0_47 = arith.constant 0 : index
    %130 = vector.load %arg12[%c0_45, %c0_46, %c0_47] : memref<1x1x32xf32, #tpu.memory_space<vmem>>, vector<1x1x32xf32>
    %131 = vector.shape_cast %130 : vector<1x1x32xf32> to vector<1x32xf32>
    %c0_48 = arith.constant 0 : index
    %c0_49 = arith.constant 0 : index
    %c0_50 = arith.constant 0 : index
    %132 = vector.load %arg13[%c0_48, %c0_49, %c0_50] : memref<1x1x32xf32, #tpu.memory_space<vmem>>, vector<1x1x32xf32>
    %133 = vector.shape_cast %132 : vector<1x1x32xf32> to vector<1x32xf32>
    %cst_51 = arith.constant dense<0.000000e+00> : vector<8xf32>
    %134 = vector.multi_reduction <add>, %129, %cst_51 [1] : vector<8x32xf32> to vector<8xf32>
    %135 = vector.shape_cast %134 : vector<8xf32> to vector<8x1xf32>
    %cst_52 = arith.constant 3.200000e+01 : f32
    %136 = vector.broadcast %cst_52 : f32 to vector<8x1xf32>
    %137 = arith.divf %135, %136 : vector<8x1xf32>
    %138 = vector.broadcast %137 : vector<8x1xf32> to vector<8x32xf32>
    %139 = arith.subf %129, %138 : vector<8x32xf32>
    %140 = arith.mulf %139, %139 : vector<8x32xf32>
    %cst_53 = arith.constant dense<0.000000e+00> : vector<8xf32>
    %141 = vector.multi_reduction <add>, %140, %cst_53 [1] : vector<8x32xf32> to vector<8xf32>
    %142 = vector.shape_cast %141 : vector<8xf32> to vector<8x1xf32>
    %cst_54 = arith.constant 3.200000e+01 : f32
    %143 = vector.broadcast %cst_54 : f32 to vector<8x1xf32>
    %144 = arith.divf %142, %143 : vector<8x1xf32>
    %145 = vector.broadcast %137 : vector<8x1xf32> to vector<8x32xf32>
    %146 = arith.subf %129, %145 : vector<8x32xf32>
    %cst_55 = arith.constant 9.99999974E-6 : f32
    %147 = vector.broadcast %cst_55 : f32 to vector<8x1xf32>
    %148 = arith.addf %144, %147 : vector<8x1xf32>
    %149 = math.rsqrt %148 : vector<8x1xf32>
    %150 = vector.broadcast %149 : vector<8x1xf32> to vector<8x32xf32>
    %151 = arith.mulf %146, %150 : vector<8x32xf32>
    %152 = vector.broadcast %131 : vector<1x32xf32> to vector<8x32xf32>
    %153 = arith.mulf %151, %152 : vector<8x32xf32>
    %154 = vector.broadcast %133 : vector<1x32xf32> to vector<8x32xf32>
    %155 = arith.addf %153, %154 : vector<8x32xf32>
    %156 = arith.truncf %155 : vector<8x32xf32> to vector<8x32xbf16>
    %c0_56 = arith.constant 0 : index
    %c0_57 = arith.constant 0 : index
    %c0_58 = arith.constant 0 : index
    %157 = vector.load %arg14[%c0_56, %c0_57, %c0_58] : memref<1x32x32xbf16, #tpu.memory_space<vmem>>, vector<1x32x32xbf16>
    %158 = vector.shape_cast %157 : vector<1x32x32xbf16> to vector<32x32xbf16>
    %cst_59 = arith.constant dense<0.000000e+00> : vector<8x32xf32>
    %159 = tpu.matmul %156, %158, %cst_59 {dimension_numbers = #tpu.dot_dimension_numbers<[1], [0], [0], [1], [0, 0, 1, 1], [], []>} : vector<8x32xbf16>, vector<32x32xbf16>, vector<8x32xf32> -> vector<8x32xf32>
    %c0_60 = arith.constant 0 : index
    %c0_61 = arith.constant 0 : index
    %c0_62 = arith.constant 0 : index
    %160 = vector.load %arg15[%c0_60, %c0_61, %c0_62] : memref<1x32x32xbf16, #tpu.memory_space<vmem>>, vector<1x32x32xbf16>
    %161 = vector.shape_cast %160 : vector<1x32x32xbf16> to vector<32x32xbf16>
    %cst_63 = arith.constant dense<0.000000e+00> : vector<8x32xf32>
    %162 = tpu.matmul %5, %161, %cst_63 {dimension_numbers = #tpu.dot_dimension_numbers<[1], [0], [0], [1], [0, 0, 1, 1], [], []>} : vector<8x32xbf16>, vector<32x32xbf16>, vector<8x32xf32> -> vector<8x32xf32>
    %c0_64 = arith.constant 0 : index
    %c0_65 = arith.constant 0 : index
    %c0_66 = arith.constant 0 : index
    %163 = vector.load %arg16[%c0_64, %c0_65, %c0_66] : memref<1x32x32xbf16, #tpu.memory_space<vmem>>, vector<1x32x32xbf16>
    %164 = vector.shape_cast %163 : vector<1x32x32xbf16> to vector<32x32xbf16>
    %cst_67 = arith.constant dense<0.000000e+00> : vector<8x32xf32>
    %165 = tpu.matmul %5, %164, %cst_67 {dimension_numbers = #tpu.dot_dimension_numbers<[1], [0], [0], [1], [0, 0, 1, 1], [], []>} : vector<8x32xbf16>, vector<32x32xbf16>, vector<8x32xf32> -> vector<8x32xf32>
    %cst_68 = arith.constant 0.353553385 : f32
    %166 = vector.broadcast %cst_68 : f32 to vector<8x32xf32>
    %167 = arith.mulf %159, %166 : vector<8x32xf32>
    %168 = vector.extract_strided_slice %167 {offsets = [0, 0], sizes = [8, 8], strides = [1, 1]} : vector<8x32xf32> to vector<8x8xf32>
    %169 = vector.extract_strided_slice %167 {offsets = [0, 8], sizes = [8, 8], strides = [1, 1]} : vector<8x32xf32> to vector<8x8xf32>
    %170 = vector.extract_strided_slice %167 {offsets = [0, 16], sizes = [8, 8], strides = [1, 1]} : vector<8x32xf32> to vector<8x8xf32>
    %171 = vector.extract_strided_slice %167 {offsets = [0, 24], sizes = [8, 8], strides = [1, 1]} : vector<8x32xf32> to vector<8x8xf32>
    %172 = vector.shape_cast %168 : vector<8x8xf32> to vector<1x8x8xf32>
    %173 = vector.shape_cast %169 : vector<8x8xf32> to vector<1x8x8xf32>
    %174 = vector.shape_cast %170 : vector<8x8xf32> to vector<1x8x8xf32>
    %175 = vector.shape_cast %171 : vector<8x8xf32> to vector<1x8x8xf32>
    %176 = tpu.concatenate %172, %173, %174, %175 in 0 : vector<1x8x8xf32>, vector<1x8x8xf32>, vector<1x8x8xf32>, vector<1x8x8xf32> -> vector<4x8x8xf32>
    %177 = vector.extract_strided_slice %162 {offsets = [0, 0], sizes = [8, 8], strides = [1, 1]} : vector<8x32xf32> to vector<8x8xf32>
    %178 = vector.extract_strided_slice %162 {offsets = [0, 8], sizes = [8, 8], strides = [1, 1]} : vector<8x32xf32> to vector<8x8xf32>
    %179 = vector.extract_strided_slice %162 {offsets = [0, 16], sizes = [8, 8], strides = [1, 1]} : vector<8x32xf32> to vector<8x8xf32>
    %180 = vector.extract_strided_slice %162 {offsets = [0, 24], sizes = [8, 8], strides = [1, 1]} : vector<8x32xf32> to vector<8x8xf32>
    %181 = vector.shape_cast %177 : vector<8x8xf32> to vector<1x8x8xf32>
    %182 = vector.shape_cast %178 : vector<8x8xf32> to vector<1x8x8xf32>
    %183 = vector.shape_cast %179 : vector<8x8xf32> to vector<1x8x8xf32>
    %184 = vector.shape_cast %180 : vector<8x8xf32> to vector<1x8x8xf32>
    %185 = tpu.concatenate %181, %182, %183, %184 in 0 : vector<1x8x8xf32>, vector<1x8x8xf32>, vector<1x8x8xf32>, vector<1x8x8xf32> -> vector<4x8x8xf32>
    %186 = vector.extract_strided_slice %165 {offsets = [0, 0], sizes = [8, 8], strides = [1, 1]} : vector<8x32xf32> to vector<8x8xf32>
    %187 = vector.extract_strided_slice %165 {offsets = [0, 8], sizes = [8, 8], strides = [1, 1]} : vector<8x32xf32> to vector<8x8xf32>
    %188 = vector.extract_strided_slice %165 {offsets = [0, 16], sizes = [8, 8], strides = [1, 1]} : vector<8x32xf32> to vector<8x8xf32>
    %189 = vector.extract_strided_slice %165 {offsets = [0, 24], sizes = [8, 8], strides = [1, 1]} : vector<8x32xf32> to vector<8x8xf32>
    %190 = vector.shape_cast %186 : vector<8x8xf32> to vector<1x8x8xf32>
    %191 = vector.shape_cast %187 : vector<8x8xf32> to vector<1x8x8xf32>
    %192 = vector.shape_cast %188 : vector<8x8xf32> to vector<1x8x8xf32>
    %193 = vector.shape_cast %189 : vector<8x8xf32> to vector<1x8x8xf32>
    %194 = tpu.concatenate %190, %191, %192, %193 in 0 : vector<1x8x8xf32>, vector<1x8x8xf32>, vector<1x8x8xf32>, vector<1x8x8xf32> -> vector<4x8x8xf32>
    %195 = arith.truncf %176 : vector<4x8x8xf32> to vector<4x8x8xbf16>
    %196 = arith.truncf %185 : vector<4x8x8xf32> to vector<4x8x8xbf16>
    "tpu.trace_start"() <{level = 10 : i32, message = "hqd,hkd->hqk"}> : () -> ()
    %cst_69 = arith.constant dense<0.000000e+00> : vector<4x8x8xf32>
    %197 = tpu.matmul %195, %196, %cst_69 {dimension_numbers = #tpu.dot_dimension_numbers<[2], [2], [1], [1], [0, 0, 0, 1, 1, 1], [0], [0]>} : vector<4x8x8xbf16>, vector<4x8x8xbf16>, vector<4x8x8xf32> -> vector<4x8x8xf32>
    "tpu.trace_stop"() : () -> ()
    %cst_70 = arith.constant dense<0xFF800000> : vector<4x8xf32>
    %198 = vector.multi_reduction <maximumf>, %197, %cst_70 [2] : vector<4x8x8xf32> to vector<4x8xf32>
    %199 = vector.shape_cast %198 : vector<4x8xf32> to vector<4x8x1xf32>
    %200 = vector.broadcast %199 : vector<4x8x1xf32> to vector<4x8x8xf32>
    %201 = arith.subf %197, %200 : vector<4x8x8xf32>
    %202 = math.exp %201 : vector<4x8x8xf32>
    %cst_71 = arith.constant dense<0.000000e+00> : vector<4x8xf32>
    %203 = vector.multi_reduction <add>, %202, %cst_71 [2] : vector<4x8x8xf32> to vector<4x8xf32>
    %204 = vector.shape_cast %203 : vector<4x8xf32> to vector<4x8x1xf32>
    %205 = tpu.reciprocal %204 {approx = true} : vector<4x8x1xf32> -> vector<4x8x1xf32>
    %206 = vector.broadcast %205 : vector<4x8x1xf32> to vector<4x8x8xf32>
    %207 = arith.mulf %202, %206 : vector<4x8x8xf32>
    %208 = arith.truncf %207 : vector<4x8x8xf32> to vector<4x8x8xbf16>
    %209 = arith.truncf %194 : vector<4x8x8xf32> to vector<4x8x8xbf16>
    "tpu.trace_start"() <{level = 10 : i32, message = "hqk,hkd->hqd"}> : () -> ()
    %cst_72 = arith.constant dense<0.000000e+00> : vector<4x8x8xf32>
    %210 = tpu.matmul %208, %209, %cst_72 {dimension_numbers = #tpu.dot_dimension_numbers<[2], [1], [1], [2], [0, 0, 0, 1, 1, 2], [0], [0]>} : vector<4x8x8xbf16>, vector<4x8x8xbf16>, vector<4x8x8xf32> -> vector<4x8x8xf32>
    "tpu.trace_stop"() : () -> ()
    %211 = vector.extract_strided_slice %210 {offsets = [0, 0, 0], sizes = [1, 8, 8], strides = [1, 1, 1]} : vector<4x8x8xf32> to vector<1x8x8xf32>
    %212 = vector.shape_cast %211 : vector<1x8x8xf32> to vector<8x8xf32>
    %213 = vector.extract_strided_slice %210 {offsets = [1, 0, 0], sizes = [1, 8, 8], strides = [1, 1, 1]} : vector<4x8x8xf32> to vector<1x8x8xf32>
    %214 = vector.shape_cast %213 : vector<1x8x8xf32> to vector<8x8xf32>
    %215 = vector.extract_strided_slice %210 {offsets = [2, 0, 0], sizes = [1, 8, 8], strides = [1, 1, 1]} : vector<4x8x8xf32> to vector<1x8x8xf32>
    %216 = vector.shape_cast %215 : vector<1x8x8xf32> to vector<8x8xf32>
    %217 = vector.extract_strided_slice %210 {offsets = [3, 0, 0], sizes = [1, 8, 8], strides = [1, 1, 1]} : vector<4x8x8xf32> to vector<1x8x8xf32>
    %218 = vector.shape_cast %217 : vector<1x8x8xf32> to vector<8x8xf32>
    %219 = tpu.concatenate %212, %214, %216, %218 in 1 : vector<8x8xf32>, vector<8x8xf32>, vector<8x8xf32>, vector<8x8xf32> -> vector<8x32xf32>
    %220 = arith.truncf %219 : vector<8x32xf32> to vector<8x32xbf16>
    %c0_73 = arith.constant 0 : index
    %c0_74 = arith.constant 0 : index
    %c0_75 = arith.constant 0 : index
    %221 = vector.load %arg17[%c0_73, %c0_74, %c0_75] : memref<1x32x32xbf16, #tpu.memory_space<vmem>>, vector<1x32x32xbf16>
    %222 = vector.shape_cast %221 : vector<1x32x32xbf16> to vector<32x32xbf16>
    %cst_76 = arith.constant dense<0.000000e+00> : vector<8x32xf32>
    %223 = tpu.matmul %220, %222, %cst_76 {dimension_numbers = #tpu.dot_dimension_numbers<[1], [0], [0], [1], [0, 0, 1, 1], [], []>} : vector<8x32xbf16>, vector<32x32xbf16>, vector<8x32xf32> -> vector<8x32xf32>
    %224 = arith.addf %223, %129 : vector<8x32xf32>
    %c0_77 = arith.constant 0 : index
    %c0_78 = arith.constant 0 : index
    %c0_79 = arith.constant 0 : index
    %225 = vector.load %arg18[%c0_77, %c0_78, %c0_79] : memref<1x1x32xf32, #tpu.memory_space<vmem>>, vector<1x1x32xf32>
    %226 = vector.shape_cast %225 : vector<1x1x32xf32> to vector<1x32xf32>
    %c0_80 = arith.constant 0 : index
    %c0_81 = arith.constant 0 : index
    %c0_82 = arith.constant 0 : index
    %227 = vector.load %arg19[%c0_80, %c0_81, %c0_82] : memref<1x1x32xf32, #tpu.memory_space<vmem>>, vector<1x1x32xf32>
    %228 = vector.shape_cast %227 : vector<1x1x32xf32> to vector<1x32xf32>
    %cst_83 = arith.constant dense<0.000000e+00> : vector<8xf32>
    %229 = vector.multi_reduction <add>, %224, %cst_83 [1] : vector<8x32xf32> to vector<8xf32>
    %230 = vector.shape_cast %229 : vector<8xf32> to vector<8x1xf32>
    %cst_84 = arith.constant 3.200000e+01 : f32
    %231 = vector.broadcast %cst_84 : f32 to vector<8x1xf32>
    %232 = arith.divf %230, %231 : vector<8x1xf32>
    %233 = vector.broadcast %232 : vector<8x1xf32> to vector<8x32xf32>
    %234 = arith.subf %224, %233 : vector<8x32xf32>
    %235 = arith.mulf %234, %234 : vector<8x32xf32>
    %cst_85 = arith.constant dense<0.000000e+00> : vector<8xf32>
    %236 = vector.multi_reduction <add>, %235, %cst_85 [1] : vector<8x32xf32> to vector<8xf32>
    %237 = vector.shape_cast %236 : vector<8xf32> to vector<8x1xf32>
    %cst_86 = arith.constant 3.200000e+01 : f32
    %238 = vector.broadcast %cst_86 : f32 to vector<8x1xf32>
    %239 = arith.divf %237, %238 : vector<8x1xf32>
    %240 = vector.broadcast %232 : vector<8x1xf32> to vector<8x32xf32>
    %241 = arith.subf %224, %240 : vector<8x32xf32>
    %cst_87 = arith.constant 9.99999974E-6 : f32
    %242 = vector.broadcast %cst_87 : f32 to vector<8x1xf32>
    %243 = arith.addf %239, %242 : vector<8x1xf32>
    %244 = math.rsqrt %243 : vector<8x1xf32>
    %245 = vector.broadcast %244 : vector<8x1xf32> to vector<8x32xf32>
    %246 = arith.mulf %241, %245 : vector<8x32xf32>
    %247 = vector.broadcast %226 : vector<1x32xf32> to vector<8x32xf32>
    %248 = arith.mulf %246, %247 : vector<8x32xf32>
    %249 = vector.broadcast %228 : vector<1x32xf32> to vector<8x32xf32>
    %250 = arith.addf %248, %249 : vector<8x32xf32>
    %251 = arith.truncf %250 : vector<8x32xf32> to vector<8x32xbf16>
    %c0_88 = arith.constant 0 : index
    %c0_89 = arith.constant 0 : index
    %c0_90 = arith.constant 0 : index
    %252 = vector.load %arg20[%c0_88, %c0_89, %c0_90] : memref<1x32x256xbf16, #tpu.memory_space<vmem>>, vector<1x32x256xbf16>
    %253 = vector.shape_cast %252 : vector<1x32x256xbf16> to vector<32x256xbf16>
    %cst_91 = arith.constant dense<0.000000e+00> : vector<8x256xf32>
    %254 = tpu.matmul %251, %253, %cst_91 {dimension_numbers = #tpu.dot_dimension_numbers<[1], [0], [0], [1], [0, 0, 1, 1], [], []>} : vector<8x32xbf16>, vector<32x256xbf16>, vector<8x256xf32> -> vector<8x256xf32>
    %c0_92 = arith.constant 0 : index
    %c0_93 = arith.constant 0 : index
    %c0_94 = arith.constant 0 : index
    %255 = vector.load %arg21[%c0_92, %c0_93, %c0_94] : memref<1x1x256xf32, #tpu.memory_space<vmem>>, vector<1x1x256xf32>
    %256 = vector.shape_cast %255 : vector<1x1x256xf32> to vector<1x256xf32>
    %257 = vector.broadcast %256 : vector<1x256xf32> to vector<8x256xf32>
    %258 = arith.addf %254, %257 : vector<8x256xf32>
    %259 = arith.negf %258 : vector<8x256xf32>
    %260 = math.exp %259 : vector<8x256xf32>
    %cst_95 = arith.constant 1.000000e+00 : f32
    %261 = vector.broadcast %cst_95 : f32 to vector<8x256xf32>
    %262 = arith.addf %261, %260 : vector<8x256xf32>
    %263 = arith.divf %261, %262 : vector<8x256xf32>
    %264 = arith.mulf %258, %263 : vector<8x256xf32>
    %265 = arith.truncf %264 : vector<8x256xf32> to vector<8x256xbf16>
    %c0_96 = arith.constant 0 : index
    %c0_97 = arith.constant 0 : index
    %c0_98 = arith.constant 0 : index
    %266 = vector.load %arg22[%c0_96, %c0_97, %c0_98] : memref<1x256x32xbf16, #tpu.memory_space<vmem>>, vector<1x256x32xbf16>
    %267 = vector.shape_cast %266 : vector<1x256x32xbf16> to vector<256x32xbf16>
    %cst_99 = arith.constant dense<0.000000e+00> : vector<8x32xf32>
    %268 = tpu.matmul %265, %267, %cst_99 {dimension_numbers = #tpu.dot_dimension_numbers<[1], [0], [0], [1], [0, 0, 1, 1], [], []>} : vector<8x256xbf16>, vector<256x32xbf16>, vector<8x32xf32> -> vector<8x32xf32>
    %c0_100 = arith.constant 0 : index
    %c0_101 = arith.constant 0 : index
    %c0_102 = arith.constant 0 : index
    %269 = vector.load %arg23[%c0_100, %c0_101, %c0_102] : memref<1x1x32xf32, #tpu.memory_space<vmem>>, vector<1x1x32xf32>
    %270 = vector.shape_cast %269 : vector<1x1x32xf32> to vector<1x32xf32>
    %271 = vector.broadcast %270 : vector<1x32xf32> to vector<8x32xf32>
    %272 = arith.addf %268, %271 : vector<8x32xf32>
    %273 = arith.addf %272, %224 : vector<8x32xf32>
    %c0_103 = arith.constant 0 : index
    %c0_104 = arith.constant 0 : index
    %274 = vector.load %arg25[%c0_103, %c0_104] : memref<8x32xf32, #tpu.memory_space<vmem>>, vector<8x32xf32>
    tpu.vector_store %arg25[%c0_103, %c0_104], %273 {strides = array<i32>} : memref<8x32xf32, #tpu.memory_space<vmem>>, vector<8x32xf32>,
    %c0_105 = arith.constant 0 : index
    %c0_106 = arith.constant 0 : index
    %c0_107 = arith.constant 0 : index
    %275 = vector.load %arg24[%c0_105, %c0_106, %c0_107] : memref<1x8x32xf32, #tpu.memory_space<vmem>>, vector<1x8x32xf32>
    %276 = vector.shape_cast %275 : vector<1x8x32xf32> to vector<8x32xf32>
    %277 = vector.shape_cast %273 : vector<8x32xf32> to vector<1x8x32xf32>
    tpu.vector_store %arg24[%c0_105, %c0_106, %c0_107], %277 {strides = array<i32>} : memref<1x8x32xf32, #tpu.memory_space<vmem>>, vector<1x8x32xf32>,
    return
  }
  func.func @transform_0(%arg0: i32, %arg1: i32) -> (i32, i32, i32) {
    %c0_i32 = arith.constant 0 : i32
    %c0_i32_0 = arith.constant 0 : i32
    %c0_i32_1 = arith.constant 0 : i32
    return %arg0, %c0_i32, %c0_i32_0 : i32, i32, i32
  }
  func.func @transform_1(%arg0: i32, %arg1: i32) -> (i32, i32, i32) {
    %c0_i32 = arith.constant 0 : i32
    %c0_i32_0 = arith.constant 0 : i32
    %c0_i32_1 = arith.constant 0 : i32
    return %arg0, %c0_i32, %c0_i32_0 : i32, i32, i32
  }
  func.func @transform_2(%arg0: i32, %arg1: i32) -> (i32, i32, i32) {
    %c0_i32 = arith.constant 0 : i32
    %c0_i32_0 = arith.constant 0 : i32
    %c0_i32_1 = arith.constant 0 : i32
    %c0_i32_2 = arith.constant 0 : i32
    return %c0_i32, %c0_i32_0, %c0_i32_1 : i32, i32, i32
  }
  func.func @transform_3(%arg0: i32, %arg1: i32) -> (i32, i32, i32) {
    %c0_i32 = arith.constant 0 : i32
    %c0_i32_0 = arith.constant 0 : i32
    %c0_i32_1 = arith.constant 0 : i32
    %c0_i32_2 = arith.constant 0 : i32
    return %c0_i32, %c0_i32_0, %c0_i32_1 : i32, i32, i32
  }
  func.func @transform_4(%arg0: i32, %arg1: i32) -> (i32, i32, i32) {
    %c0_i32 = arith.constant 0 : i32
    %c0_i32_0 = arith.constant 0 : i32
    %c0_i32_1 = arith.constant 0 : i32
    return %arg1, %c0_i32, %c0_i32_0 : i32, i32, i32
  }
  func.func @transform_5(%arg0: i32, %arg1: i32) -> (i32, i32, i32) {
    %c0_i32 = arith.constant 0 : i32
    %c0_i32_0 = arith.constant 0 : i32
    %c0_i32_1 = arith.constant 0 : i32
    return %arg1, %c0_i32, %c0_i32_0 : i32, i32, i32
  }
  func.func @transform_6(%arg0: i32, %arg1: i32) -> (i32, i32, i32) {
    %c0_i32 = arith.constant 0 : i32
    %c0_i32_0 = arith.constant 0 : i32
    %c0_i32_1 = arith.constant 0 : i32
    return %arg1, %c0_i32, %c0_i32_0 : i32, i32, i32
  }
  func.func @transform_7(%arg0: i32, %arg1: i32) -> (i32, i32, i32) {
    %c0_i32 = arith.constant 0 : i32
    %c0_i32_0 = arith.constant 0 : i32
    %c0_i32_1 = arith.constant 0 : i32
    return %arg1, %c0_i32, %c0_i32_0 : i32, i32, i32
  }
  func.func @transform_8(%arg0: i32, %arg1: i32) -> (i32, i32, i32) {
    %c0_i32 = arith.constant 0 : i32
    %c0_i32_0 = arith.constant 0 : i32
    %c0_i32_1 = arith.constant 0 : i32
    return %arg1, %c0_i32, %c0_i32_0 : i32, i32, i32
  }
  func.func @transform_9(%arg0: i32, %arg1: i32) -> (i32, i32, i32) {
    %c0_i32 = arith.constant 0 : i32
    %c0_i32_0 = arith.constant 0 : i32
    %c0_i32_1 = arith.constant 0 : i32
    return %arg1, %c0_i32, %c0_i32_0 : i32, i32, i32
  }
  func.func @transform_10(%arg0: i32, %arg1: i32) -> (i32, i32, i32) {
    %c0_i32 = arith.constant 0 : i32
    %c0_i32_0 = arith.constant 0 : i32
    %c0_i32_1 = arith.constant 0 : i32
    return %arg1, %c0_i32, %c0_i32_0 : i32, i32, i32
  }
  func.func @transform_11(%arg0: i32, %arg1: i32) -> (i32, i32, i32) {
    %c0_i32 = arith.constant 0 : i32
    %c0_i32_0 = arith.constant 0 : i32
    %c0_i32_1 = arith.constant 0 : i32
    return %arg1, %c0_i32, %c0_i32_0 : i32, i32, i32
  }
  func.func @transform_12(%arg0: i32, %arg1: i32) -> (i32, i32, i32) {
    %c0_i32 = arith.constant 0 : i32
    %c0_i32_0 = arith.constant 0 : i32
    %c0_i32_1 = arith.constant 0 : i32
    return %arg1, %c0_i32, %c0_i32_0 : i32, i32, i32
  }
  func.func @transform_13(%arg0: i32, %arg1: i32) -> (i32, i32, i32) {
    %c0_i32 = arith.constant 0 : i32
    %c0_i32_0 = arith.constant 0 : i32
    %c0_i32_1 = arith.constant 0 : i32
    return %arg1, %c0_i32, %c0_i32_0 : i32, i32, i32
  }
  func.func @transform_14(%arg0: i32, %arg1: i32) -> (i32, i32, i32) {
    %c0_i32 = arith.constant 0 : i32
    %c0_i32_0 = arith.constant 0 : i32
    %c0_i32_1 = arith.constant 0 : i32
    return %arg1, %c0_i32, %c0_i32_0 : i32, i32, i32
  }
  func.func @transform_15(%arg0: i32, %arg1: i32) -> (i32, i32, i32) {
    %c0_i32 = arith.constant 0 : i32
    %c0_i32_0 = arith.constant 0 : i32
    %c0_i32_1 = arith.constant 0 : i32
    return %arg1, %c0_i32, %c0_i32_0 : i32, i32, i32
  }
  func.func @transform_16(%arg0: i32, %arg1: i32) -> (i32, i32, i32) {
    %c0_i32 = arith.constant 0 : i32
    %c0_i32_0 = arith.constant 0 : i32
    %c0_i32_1 = arith.constant 0 : i32
    return %arg1, %c0_i32, %c0_i32_0 : i32, i32, i32
  }
  func.func @transform_17(%arg0: i32, %arg1: i32) -> (i32, i32, i32) {
    %c0_i32 = arith.constant 0 : i32
    %c0_i32_0 = arith.constant 0 : i32
    %c0_i32_1 = arith.constant 0 : i32
    return %arg1, %c0_i32, %c0_i32_0 : i32, i32, i32
  }
  func.func @transform_18(%arg0: i32, %arg1: i32) -> (i32, i32, i32) {
    %c0_i32 = arith.constant 0 : i32
    %c0_i32_0 = arith.constant 0 : i32
    %c0_i32_1 = arith.constant 0 : i32
    return %arg1, %c0_i32, %c0_i32_0 : i32, i32, i32
  }
  func.func @transform_19(%arg0: i32, %arg1: i32) -> (i32, i32, i32) {
    %c0_i32 = arith.constant 0 : i32
    %c0_i32_0 = arith.constant 0 : i32
    %c0_i32_1 = arith.constant 0 : i32
    return %arg1, %c0_i32, %c0_i32_0 : i32, i32, i32
  }
  func.func @transform_20(%arg0: i32, %arg1: i32) -> (i32, i32, i32) {
    %c0_i32 = arith.constant 0 : i32
    %c0_i32_0 = arith.constant 0 : i32
    %c0_i32_1 = arith.constant 0 : i32
    return %arg1, %c0_i32, %c0_i32_0 : i32, i32, i32
  }
  func.func @transform_21(%arg0: i32, %arg1: i32) -> (i32, i32, i32) {
    %c0_i32 = arith.constant 0 : i32
    %c0_i32_0 = arith.constant 0 : i32
    %c0_i32_1 = arith.constant 0 : i32
    return %arg1, %c0_i32, %c0_i32_0 : i32, i32, i32
  }
  func.func @transform_22(%arg0: i32, %arg1: i32) -> (i32, i32, i32) {
    %c0_i32 = arith.constant 0 : i32
    %c0_i32_0 = arith.constant 0 : i32
    %c0_i32_1 = arith.constant 0 : i32
    return %arg0, %c0_i32, %c0_i32_0 : i32, i32, i32
  }
}

</mosaic_0001>

<llo_original>
// kernel: tpu_custom_call.1
$region0: #{tpu_custom_call.1}
  #allocation0 [shape = 'u32[]', space=smem, size = 0x4, offset = 0x4, fixed_abs, tag = 'smem constant byte address 0x4 - core index']
  #allocation1 [shape = 'u32[144,128]{1,0:T(1,128)}', space=vmem, size = 0x12000, scoped, tag = 'internal scratch']
  #allocation2 [shape = 'f32[8,32]{1,0:T(8,128)}', space=vmem, size = 0x1000, scoped, tag = 'scratch operand']
  %s0 = inlined_call_operand.hbm [shape: f32[2,8,32], index: 0, kind: input, shape index: {}]
  %s1 = inlined_call_operand.hbm [shape: bf16[2,8,32], index: 1, kind: input, shape index: {}]
  %s2 = inlined_call_operand.hbm [shape: f32[1,8,8], index: 2, kind: input, shape index: {}]
  %s3 = inlined_call_operand.vmem [shape: f32[1,8,8], index: 3, kind: input, shape index: {}]
  %s4 = inlined_call_operand.vmem [shape: f32[2,1,32], index: 4, kind: input, shape index: {}]
  %s5 = inlined_call_operand.hbm [shape: f32[2,1,32], index: 5, kind: input, shape index: {}]
  %s6 = inlined_call_operand.vmem [shape: bf16[2,32,32], index: 6, kind: input, shape index: {}]
  %s7 = inlined_call_operand.vmem [shape: bf16[2,32,32], index: 7, kind: input, shape index: {}]
  %s8 = inlined_call_operand.vmem [shape: bf16[2,32,32], index: 8, kind: input, shape index: {}]
  %s9 = inlined_call_operand.vmem [shape: bf16[2,32,32], index: 9, kind: input, shape index: {}]
  %s10 = inlined_call_operand.hbm [shape: f32[2,1,32], index: 10, kind: input, shape index: {}]
  %s11 = inlined_call_operand.hbm [shape: f32[2,1,32], index: 11, kind: input, shape index: {}]
  %s12 = inlined_call_operand.vmem [shape: bf16[2,32,32], index: 12, kind: input, shape index: {}]
  %s13 = inlined_call_operand.vmem [shape: bf16[2,32,32], index: 13, kind: input, shape index: {}]
  %s14 = inlined_call_operand.vmem [shape: bf16[2,32,32], index: 14, kind: input, shape index: {}]
  %s15 = inlined_call_operand.vmem [shape: bf16[2,32,32], index: 15, kind: input, shape index: {}]
  %s16 = inlined_call_operand.hbm [shape: f32[2,1,32], index: 16, kind: input, shape index: {}]
  %s17 = inlined_call_operand.hbm [shape: f32[2,1,32], index: 17, kind: input, shape index: {}]
  %s18 = inlined_call_operand.vmem [shape: bf16[2,32,256], index: 18, kind: input, shape index: {}]
  %s19 = inlined_call_operand.hbm [shape: f32[2,1,256], index: 19, kind: input, shape index: {}]
  %s20 = inlined_call_operand.vmem [shape: bf16[2,256,32], index: 20, kind: input, shape index: {}]
  %s21 = inlined_call_operand.hbm [shape: f32[2,1,32], index: 21, kind: input, shape index: {}]
  %s22 = inlined_call_operand.hbm [shape: f32[2,8,32], index: 22, kind: output, shape index: {}]
  %s23 = sld [smem:[#allocation0]]
  $region165: #{tpu_custom_call.1} parent=0
    _
  %s25 = ssub.s32 1, %s23
  %s26 = scalar_select 0, %s25, %s23
  $region1: #{tpu_custom_call.1} parent=0
    #allocation3 [shape = 'u8[8192]{0}', space=vmem, size = 0x2000, scoped, tag = 'input window, operand 0']
    #allocation4 [shape = 's32[2]{0}', space=sflag, size = 0x8, scoped, tag = 'scoped memory for tpu_custom_call.1']
    #allocation5 [shape = 's32[2]{0}', space=sflag, size = 0x8, scoped, tag = 'scoped memory for tpu_custom_call.1']
    #allocation6 [shape = 'u8[4096]{0}', space=vmem, size = 0x1000, scoped, tag = 'input window, operand 1']
    #allocation7 [shape = 's32[2]{0}', space=sflag, size = 0x8, scoped, tag = 'scoped memory for tpu_custom_call.1']
    #allocation8 [shape = 'u8[4096]{0}', space=vmem, size = 0x1000, scoped, tag = 'input window, operand 2, single buffered']
    #allocation9 [shape = 'u8[1024]{0}', space=vmem, size = 0x400, scoped, tag = 'input window, operand 5']
    #allocation10 [shape = 's32[2]{0}', space=sflag, size = 0x8, scoped, tag = 'scoped memory for tpu_custom_call.1']
    #allocation11 [shape = 'u8[1024]{0}', space=vmem, size = 0x400, scoped, tag = 'input window, operand 10']
    #allocation12 [shape = 'u8[1024]{0}', space=vmem, size = 0x400, scoped, tag = 'input window, operand 11']
    #allocation13 [shape = 's32[2]{0}', space=sflag, size = 0x8, scoped, tag = 'scoped memory for tpu_custom_call.1']
    #allocation14 [shape = 'u8[1024]{0}', space=vmem, size = 0x400, scoped, tag = 'input window, operand 16']
    #allocation15 [shape = 'u8[1024]{0}', space=vmem, size = 0x400, scoped, tag = 'input window, operand 17']
    #allocation16 [shape = 's32[2]{0}', space=sflag, size = 0x8, scoped, tag = 'scoped memory for tpu_custom_call.1']
    #allocation17 [shape = 'u8[2048]{0}', space=vmem, size = 0x800, scoped, tag = 'input window, operand 19']
    #allocation18 [shape = 'u8[1024]{0}', space=vmem, size = 0x400, scoped, tag = 'input window, operand 21']
    #allocation19 [shape = 's32[2]{0}', space=sflag, size = 0x8, scoped, tag = 'scoped memory for tpu_custom_call.1']
    #allocation20 [shape = 'u8[8192]{0}', space=vmem, size = 0x2000, scoped, tag = 'output window, operand 0']
    %27 = vsyncpa [#allocation4], 0
    %s28 = scalar_lea.sflag [#allocation4], 1
    %29 = vsyncpa %s28, 0
    %30 = vsyncpa [#allocation7], 0
    %s31 = scalar_lea.sflag [#allocation7], 1
    %32 = vsyncpa %s31, 0
    %33 = vsyncpa [#allocation10], 0
    %s34 = scalar_lea.sflag [#allocation10], 1
    %35 = vsyncpa %s34, 0
    %36 = vsyncpa [#allocation13], 0
    %s37 = scalar_lea.sflag [#allocation13], 1
    %38 = vsyncpa %s37, 0
    %39 = vsyncpa [#allocation16], 0
    %s40 = scalar_lea.sflag [#allocation16], 1
    %41 = vsyncpa %s40, 0
    %42 = vsyncpa [#allocation19], 0
    %s43 = scalar_lea.sflag [#allocation19], 1
    %44 = vsyncpa %s43, 0
    %45 = vsyncpa [#allocation5], 0
    %s46 = scalar_lea.sflag [#allocation5], 1
    %47 = vsyncpa %s46, 0
    loop: start=0, step=1, limit=6
    $region2: #{tpu_custom_call.1} parent=1 // loop_pre_header
      _
    $region3: #{tpu_custom_call.1} parent=1 // loop_header
      %s49 = sphi 0, %s53
      %p50 = scmp.ge.s32.totalorder %s49, 6
      %s56 = sphi 0, %s68
      %s57 = sphi 0, %s64
      %s58 = sphi 0, %s56
      %s59 = sphi 0, %s57
      %s60 = sphi 0, %s58
      %s61 = sphi 0, %s59
      %s71 = sphi 0, %s73
      %s74 = sphi 0, %s71
      %s75 = sphi 0, %s74
      %s91 = sphi 0, %s75
      %s97 = sphi 0, %s99
      %s100 = sphi 0, %s97
      %s101 = sphi 0, %s100
      %s117 = sphi 0, %s101
      %s121 = sphi 0, %s121
      %s123 = sphi 0, %s121
      %s124 = sphi 0, %s123
      %s138 = sphi 0, %s124
      %s142 = sphi 0, %s142
      %s144 = sphi 0, %s142
      %s145 = sphi 0, %s144
      %s159 = sphi 0, %s145
      %s165 = sphi 0, %s167
      %s168 = sphi 0, %s165
      %s169 = sphi 0, %s168
      %s185 = sphi 0, %s169
      %s191 = sphi 0, %s193
      %s194 = sphi 0, %s191
      %s195 = sphi 0, %s194
      %s211 = sphi 0, %s195
      %s217 = sphi 0, %s219
      %s220 = sphi 0, %s217
      %s221 = sphi 0, %s220
      %s237 = sphi 0, %s221
      %s243 = sphi 0, %s245
      %s246 = sphi 0, %s243
      %s247 = sphi 0, %s246
      %s263 = sphi 0, %s247
      %s269 = sphi 0, %s271
      %s272 = sphi 0, %s269
      %s273 = sphi 0, %s272
      %s289 = sphi 0, %s273
      %s295 = sphi 0, %s297
      %s298 = sphi 0, %s295
      %s299 = sphi 0, %s298
      %s315 = sphi 0, %s299
      %s321 = sphi 0, %s323
      %s324 = sphi 0, %s321
      %s325 = sphi 0, %s324
      %s341 = sphi 0, %s325
      %s347 = sphi 0, %s349
      %s350 = sphi 0, %s347
      %s351 = sphi 0, %s350
      %s367 = sphi 0, %s351
      %s373 = sphi 0, %s375
      %s376 = sphi 0, %s373
      %s377 = sphi 0, %s376
      %s393 = sphi 0, %s377
      %s399 = sphi 0, %s401
      %s402 = sphi 0, %s399
      %s403 = sphi 0, %s402
      %s419 = sphi 0, %s403
      %s425 = sphi 0, %s427
      %s428 = sphi 0, %s425
      %s429 = sphi 0, %s428
      %s445 = sphi 0, %s429
      %s451 = sphi 0, %s453
      %s454 = sphi 0, %s451
      %s455 = sphi 0, %s454
      %s471 = sphi 0, %s455
      %s477 = sphi 0, %s479
      %s480 = sphi 0, %s477
      %s481 = sphi 0, %s480
      %s497 = sphi 0, %s481
      %s503 = sphi 0, %s505
      %s506 = sphi 0, %s503
      %s507 = sphi 0, %s506
      %s523 = sphi 0, %s507
      %s529 = sphi 0, %s531
      %s532 = sphi 0, %s529
      %s533 = sphi 0, %s532
      %s549 = sphi 0, %s533
      %s555 = sphi 0, %s557
      %s558 = sphi 0, %s555
      %s559 = sphi 0, %s558
      %s575 = sphi 0, %s559
      %s581 = sphi 0, %s583
      %s584 = sphi 0, %s581
      %s585 = sphi 0, %s584
      %s601 = sphi 0, %s585
      %s607 = sphi 0, %s609
      %s610 = sphi 0, %s607
      %s611 = sphi 0, %s610
      %s627 = sphi 0, %s611
      %s633 = sphi 0, %s635
      %s636 = sphi 0, %s633
      %s637 = sphi 0, %s636
      %s653 = sphi 0, %s637
    $region4: #{tpu_custom_call.1} parent=1 // loop_header_branch
      %52 = sbr.rel (%p50) target = $region8
    $region5: #{tpu_custom_call.1} parent=1 // loop_body
      %s54 = ssub.s32 %s49, 1
      %s55 = ssub.s32 %s49, 2
      %s62 = sadd.s32 1, %s57
      %p63 = scmp.ge.s32.totalorder %s62, 2
      %s64 = scalar_select %p63, 0, %s62
      %s65 = sadd.s32 1, %s56
      %s66 = scalar_select %p63, %s65, %s56
      %p67 = scmp.ge.s32.totalorder %s66, 2
      %s68 = scalar_select %p67, 0, %s66
      %s69 = ssub.s32 %s56, %s68
      %p70 = scmp.eq.s32.totalorder %s69, 0
      %s72 = sadd.s32 %s71, 1
      %s73 = scalar_select %p70, %s71, %s72
      %p76 = pneg %p70
      %p77 = scmp.eq.s32.totalorder %s49, 3
      %p78 = por %p76, %p77
      %p79 = scmp.ne.s32.totalorder %s71, %s74
      %p80 = scmp.eq.s32.totalorder %s49, 0
      %p81 = por %p79, %p80
      %p82 = scmp.ne.s32.totalorder %s71, %s74
      %p83 = scmp.eq.s32.totalorder %s54, 3
      %p84 = por %p82, %p83
      %p85 = scmp.ne.s32.totalorder %s74, %s75
      %p86 = scmp.eq.s32.totalorder %s54, 0
      %p87 = por %p85, %p86
      %p88 = scmp.ne.s32.totalorder %s74, %s75
      %p89 = scmp.eq.s32.totalorder %s55, 3
      %p90 = por %p88, %p89
      %p92 = scmp.ne.s32.totalorder %s75, %s91
      %p93 = scmp.eq.s32.totalorder %s55, 0
      %p94 = por %p92, %p93
      %s95 = ssub.s32 %s56, %s68
      %p96 = scmp.eq.s32.totalorder %s95, 0
      %s98 = sadd.s32 %s97, 1
      %s99 = scalar_select %p96, %s97, %s98
      %p102 = pneg %p96
      %p103 = scmp.eq.s32.totalorder %s49, 3
      %p104 = por %p102, %p103
      %p105 = scmp.ne.s32.totalorder %s97, %s100
      %p106 = scmp.eq.s32.totalorder %s49, 0
      %p107 = por %p105, %p106
      %p108 = scmp.ne.s32.totalorder %s97, %s100
      %p109 = scmp.eq.s32.totalorder %s54, 3
      %p110 = por %p108, %p109
      %p111 = scmp.ne.s32.totalorder %s100, %s101
      %p112 = scmp.eq.s32.totalorder %s54, 0
      %p113 = por %p111, %p112
      %p114 = scmp.ne.s32.totalorder %s100, %s101
      %p115 = scmp.eq.s32.totalorder %s55, 3
      %p116 = por %p114, %p115
      %p118 = scmp.ne.s32.totalorder %s101, %s117
      %p119 = scmp.eq.s32.totalorder %s55, 0
      %p120 = por %p118, %p119
      %s122 = sadd.s32 %s121, 1
      %p125 = scmp.eq.s32.totalorder %s49, 3
      %p126 = scmp.ne.s32.totalorder %s121, %s123
      %p127 = scmp.eq.s32.totalorder %s49, 0
      %p128 = por %p126, %p127
      %p129 = scmp.ne.s32.totalorder %s121, %s123
      %p130 = scmp.eq.s32.totalorder %s54, 3
      %p131 = por %p129, %p130
      %p132 = scmp.ne.s32.totalorder %s123, %s124
      %p133 = scmp.eq.s32.totalorder %s54, 0
      %p134 = por %p132, %p133
      %p135 = scmp.ne.s32.totalorder %s123, %s124
      %p136 = scmp.eq.s32.totalorder %s55, 3
      %p137 = por %p135, %p136
      %p139 = scmp.ne.s32.totalorder %s124, %s138
      %p140 = scmp.eq.s32.totalorder %s55, 0
      %p141 = por %p139, %p140
      %s143 = sadd.s32 %s142, 1
      %p146 = scmp.eq.s32.totalorder %s49, 3
      %p147 = scmp.ne.s32.totalorder %s142, %s144
      %p148 = scmp.eq.s32.totalorder %s49, 0
      %p149 = por %p147, %p148
      %p150 = scmp.ne.s32.totalorder %s142, %s144
      %p151 = scmp.eq.s32.totalorder %s54, 3
      %p152 = por %p150, %p151
      %p153 = scmp.ne.s32.totalorder %s144, %s145
      %p154 = scmp.eq.s32.totalorder %s54, 0
      %p155 = por %p153, %p154
      %p156 = scmp.ne.s32.totalorder %s144, %s145
      %p157 = scmp.eq.s32.totalorder %s55, 3
      %p158 = por %p156, %p157
      %p160 = scmp.ne.s32.totalorder %s145, %s159
      %p161 = scmp.eq.s32.totalorder %s55, 0
      %p162 = por %p160, %p161
      %s163 = ssub.s32 %s57, %s64
      %p164 = scmp.eq.s32.totalorder %s163, 0
      %s166 = sadd.s32 %s165, 1
      %s167 = scalar_select %p164, %s165, %s166
      %p170 = pneg %p164
      %p171 = scmp.eq.s32.totalorder %s49, 3
      %p172 = por %p170, %p171
      %p173 = scmp.ne.s32.totalorder %s165, %s168
      %p174 = scmp.eq.s32.totalorder %s49, 0
      %p175 = por %p173, %p174
      %p176 = scmp.ne.s32.totalorder %s165, %s168
      %p177 = scmp.eq.s32.totalorder %s54, 3
      %p178 = por %p176, %p177
      %p179 = scmp.ne.s32.totalorder %s168, %s169
      %p180 = scmp.eq.s32.totalorder %s54, 0
      %p181 = por %p179, %p180
      %p182 = scmp.ne.s32.totalorder %s168, %s169
      %p183 = scmp.eq.s32.totalorder %s55, 3
      %p184 = por %p182, %p183
      %p186 = scmp.ne.s32.totalorder %s169, %s185
      %p187 = scmp.eq.s32.totalorder %s55, 0
      %p188 = por %p186, %p187
      %s189 = ssub.s32 %s57, %s64
      %p190 = scmp.eq.s32.totalorder %s189, 0
      %s192 = sadd.s32 %s191, 1
      %s193 = scalar_select %p190, %s191, %s192
      %p196 = pneg %p190
      %p197 = scmp.eq.s32.totalorder %s49, 3
      %p198 = por %p196, %p197
      %p199 = scmp.ne.s32.totalorder %s191, %s194
      %p200 = scmp.eq.s32.totalorder %s49, 0
      %p201 = por %p199, %p200
      %p202 = scmp.ne.s32.totalorder %s191, %s194
      %p203 = scmp.eq.s32.totalorder %s54, 3
      %p204 = por %p202, %p203
      %p205 = scmp.ne.s32.totalorder %s194, %s195
      %p206 = scmp.eq.s32.totalorder %s54, 0
      %p207 = por %p205, %p206
      %p208 = scmp.ne.s32.totalorder %s194, %s195
      %p209 = scmp.eq.s32.totalorder %s55, 3
      %p210 = por %p208, %p209
      %p212 = scmp.ne.s32.totalorder %s195, %s211
      %p213 = scmp.eq.s32.totalorder %s55, 0
      %p214 = por %p212, %p213
      %s215 = ssub.s32 %s57, %s64
      %p216 = scmp.eq.s32.totalorder %s215, 0
      %s218 = sadd.s32 %s217, 1
      %s219 = scalar_select %p216, %s217, %s218
      %p222 = pneg %p216
      %p223 = scmp.eq.s32.totalorder %s49, 3
      %p224 = por %p222, %p223
      %p225 = scmp.ne.s32.totalorder %s217, %s220
      %p226 = scmp.eq.s32.totalorder %s49, 0
      %p227 = por %p225, %p226
      %p228 = scmp.ne.s32.totalorder %s217, %s220
      %p229 = scmp.eq.s32.totalorder %s54, 3
      %p230 = por %p228, %p229
      %p231 = scmp.ne.s32.totalorder %s220, %s221
      %p232 = scmp.eq.s32.totalorder %s54, 0
      %p233 = por %p231, %p232
      %p234 = scmp.ne.s32.totalorder %s220, %s221
      %p235 = scmp.eq.s32.totalorder %s55, 3
      %p236 = por %p234, %p235
      %p238 = scmp.ne.s32.totalorder %s221, %s237
      %p239 = scmp.eq.s32.totalorder %s55, 0
      %p240 = por %p238, %p239
      %s241 = ssub.s32 %s57, %s64
      %p242 = scmp.eq.s32.totalorder %s241, 0
      %s244 = sadd.s32 %s243, 1
      %s245 = scalar_select %p242, %s243, %s244
      %p248 = pneg %p242
      %p249 = scmp.eq.s32.totalorder %s49, 3
      %p250 = por %p248, %p249
      %p251 = scmp.ne.s32.totalorder %s243, %s246
      %p252 = scmp.eq.s32.totalorder %s49, 0
      %p253 = por %p251, %p252
      %p254 = scmp.ne.s32.totalorder %s243, %s246
      %p255 = scmp.eq.s32.totalorder %s54, 3
      %p256 = por %p254, %p255
      %p257 = scmp.ne.s32.totalorder %s246, %s247
      %p258 = scmp.eq.s32.totalorder %s54, 0
      %p259 = por %p257, %p258
      %p260 = scmp.ne.s32.totalorder %s246, %s247
      %p261 = scmp.eq.s32.totalorder %s55, 3
      %p262 = por %p260, %p261
      %p264 = scmp.ne.s32.totalorder %s247, %s263
      %p265 = scmp.eq.s32.totalorder %s55, 0
      %p266 = por %p264, %p265
      %s267 = ssub.s32 %s57, %s64
      %p268 = scmp.eq.s32.totalorder %s267, 0
      %s270 = sadd.s32 %s269, 1
      %s271 = scalar_select %p268, %s269, %s270
      %p274 = pneg %p268
      %p275 = scmp.eq.s32.totalorder %s49, 3
      %p276 = por %p274, %p275
      %p277 = scmp.ne.s32.totalorder %s269, %s272
      %p278 = scmp.eq.s32.totalorder %s49, 0
      %p279 = por %p277, %p278
      %p280 = scmp.ne.s32.totalorder %s269, %s272
      %p281 = scmp.eq.s32.totalorder %s54, 3
      %p282 = por %p280, %p281
      %p283 = scmp.ne.s32.totalorder %s272, %s273
      %p284 = scmp.eq.s32.totalorder %s54, 0
      %p285 = por %p283, %p284
      %p286 = scmp.ne.s32.totalorder %s272, %s273
      %p287 = scmp.eq.s32.totalorder %s55, 3
      %p288 = por %p286, %p287
      %p290 = scmp.ne.s32.totalorder %s273, %s289
      %p291 = scmp.eq.s32.totalorder %s55, 0
      %p292 = por %p290, %p291
      %s293 = ssub.s32 %s57, %s64
      %p294 = scmp.eq.s32.totalorder %s293, 0
      %s296 = sadd.s32 %s295, 1
      %s297 = scalar_select %p294, %s295, %s296
      %p300 = pneg %p294
      %p301 = scmp.eq.s32.totalorder %s49, 3
      %p302 = por %p300, %p301
      %p303 = scmp.ne.s32.totalorder %s295, %s298
      %p304 = scmp.eq.s32.totalorder %s49, 0
      %p305 = por %p303, %p304
      %p306 = scmp.ne.s32.totalorder %s295, %s298
      %p307 = scmp.eq.s32.totalorder %s54, 3
      %p308 = por %p306, %p307
      %p309 = scmp.ne.s32.totalorder %s298, %s299
      %p310 = scmp.eq.s32.totalorder %s54, 0
      %p311 = por %p309, %p310
      %p312 = scmp.ne.s32.totalorder %s298, %s299
      %p313 = scmp.eq.s32.totalorder %s55, 3
      %p314 = por %p312, %p313
      %p316 = scmp.ne.s32.totalorder %s299, %s315
      %p317 = scmp.eq.s32.totalorder %s55, 0
      %p318 = por %p316, %p317
      %s319 = ssub.s32 %s57, %s64
      %p320 = scmp.eq.s32.totalorder %s319, 0
      %s322 = sadd.s32 %s321, 1
      %s323 = scalar_select %p320, %s321, %s322
      %p326 = pneg %p320
      %p327 = scmp.eq.s32.totalorder %s49, 3
      %p328 = por %p326, %p327
      %p329 = scmp.ne.s32.totalorder %s321, %s324
      %p330 = scmp.eq.s32.totalorder %s49, 0
      %p331 = por %p329, %p330
      %p332 = scmp.ne.s32.totalorder %s321, %s324
      %p333 = scmp.eq.s32.totalorder %s54, 3
      %p334 = por %p332, %p333
      %p335 = scmp.ne.s32.totalorder %s324, %s325
      %p336 = scmp.eq.s32.totalorder %s54, 0
      %p337 = por %p335, %p336
      %p338 = scmp.ne.s32.totalorder %s324, %s325
      %p339 = scmp.eq.s32.totalorder %s55, 3
      %p340 = por %p338, %p339
      %p342 = scmp.ne.s32.totalorder %s325, %s341
      %p343 = scmp.eq.s32.totalorder %s55, 0
      %p344 = por %p342, %p343
      %s345 = ssub.s32 %s57, %s64
      %p346 = scmp.eq.s32.totalorder %s345, 0
      %s348 = sadd.s32 %s347, 1
      %s349 = scalar_select %p346, %s347, %s348
      %p352 = pneg %p346
      %p353 = scmp.eq.s32.totalorder %s49, 3
      %p354 = por %p352, %p353
      %p355 = scmp.ne.s32.totalorder %s347, %s350
      %p356 = scmp.eq.s32.totalorder %s49, 0
      %p357 = por %p355, %p356
      %p358 = scmp.ne.s32.totalorder %s347, %s350
      %p359 = scmp.eq.s32.totalorder %s54, 3
      %p360 = por %p358, %p359
      %p361 = scmp.ne.s32.totalorder %s350, %s351
      %p362 = scmp.eq.s32.totalorder %s54, 0
      %p363 = por %p361, %p362
      %p364 = scmp.ne.s32.totalorder %s350, %s351
      %p365 = scmp.eq.s32.totalorder %s55, 3
      %p366 = por %p364, %p365
      %p368 = scmp.ne.s32.totalorder %s351, %s367
      %p369 = scmp.eq.s32.totalorder %s55, 0
      %p370 = por %p368, %p369
      %s371 = ssub.s32 %s57, %s64
      %p372 = scmp.eq.s32.totalorder %s371, 0
      %s374 = sadd.s32 %s373, 1
      %s375 = scalar_select %p372, %s373, %s374
      %p378 = pneg %p372
      %p379 = scmp.eq.s32.totalorder %s49, 3
      %p380 = por %p378, %p379
      %p381 = scmp.ne.s32.totalorder %s373, %s376
      %p382 = scmp.eq.s32.totalorder %s49, 0
      %p383 = por %p381, %p382
      %p384 = scmp.ne.s32.totalorder %s373, %s376
      %p385 = scmp.eq.s32.totalorder %s54, 3
      %p386 = por %p384, %p385
      %p387 = scmp.ne.s32.totalorder %s376, %s377
      %p388 = scmp.eq.s32.totalorder %s54, 0
      %p389 = por %p387, %p388
      %p390 = scmp.ne.s32.totalorder %s376, %s377
      %p391 = scmp.eq.s32.totalorder %s55, 3
      %p392 = por %p390, %p391
      %p394 = scmp.ne.s32.totalorder %s377, %s393
      %p395 = scmp.eq.s32.totalorder %s55, 0
      %p396 = por %p394, %p395
      %s397 = ssub.s32 %s57, %s64
      %p398 = scmp.eq.s32.totalorder %s397, 0
      %s400 = sadd.s32 %s399, 1
      %s401 = scalar_select %p398, %s399, %s400
      %p404 = pneg %p398
      %p405 = scmp.eq.s32.totalorder %s49, 3
      %p406 = por %p404, %p405
      %p407 = scmp.ne.s32.totalorder %s399, %s402
      %p408 = scmp.eq.s32.totalorder %s49, 0
      %p409 = por %p407, %p408
      %p410 = scmp.ne.s32.totalorder %s399, %s402
      %p411 = scmp.eq.s32.totalorder %s54, 3
      %p412 = por %p410, %p411
      %p413 = scmp.ne.s32.totalorder %s402, %s403
      %p414 = scmp.eq.s32.totalorder %s54, 0
      %p415 = por %p413, %p414
      %p416 = scmp.ne.s32.totalorder %s402, %s403
      %p417 = scmp.eq.s32.totalorder %s55, 3
      %p418 = por %p416, %p417
      %p420 = scmp.ne.s32.totalorder %s403, %s419
      %p421 = scmp.eq.s32.totalorder %s55, 0
      %p422 = por %p420, %p421
      %s423 = ssub.s32 %s57, %s64
      %p424 = scmp.eq.s32.totalorder %s423, 0
      %s426 = sadd.s32 %s425, 1
      %s427 = scalar_select %p424, %s425, %s426
      %p430 = pneg %p424
      %p431 = scmp.eq.s32.totalorder %s49, 3
      %p432 = por %p430, %p431
      %p433 = scmp.ne.s32.totalorder %s425, %s428
      %p434 = scmp.eq.s32.totalorder %s49, 0
      %p435 = por %p433, %p434
      %p436 = scmp.ne.s32.totalorder %s425, %s428
      %p437 = scmp.eq.s32.totalorder %s54, 3
      %p438 = por %p436, %p437
      %p439 = scmp.ne.s32.totalorder %s428, %s429
      %p440 = scmp.eq.s32.totalorder %s54, 0
      %p441 = por %p439, %p440
      %p442 = scmp.ne.s32.totalorder %s428, %s429
      %p443 = scmp.eq.s32.totalorder %s55, 3
      %p444 = por %p442, %p443
      %p446 = scmp.ne.s32.totalorder %s429, %s445
      %p447 = scmp.eq.s32.totalorder %s55, 0
      %p448 = por %p446, %p447
      %s449 = ssub.s32 %s57, %s64
      %p450 = scmp.eq.s32.totalorder %s449, 0
      %s452 = sadd.s32 %s451, 1
      %s453 = scalar_select %p450, %s451, %s452
      %p456 = pneg %p450
      %p457 = scmp.eq.s32.totalorder %s49, 3
      %p458 = por %p456, %p457
      %p459 = scmp.ne.s32.totalorder %s451, %s454
      %p460 = scmp.eq.s32.totalorder %s49, 0
      %p461 = por %p459, %p460
      %p462 = scmp.ne.s32.totalorder %s451, %s454
      %p463 = scmp.eq.s32.totalorder %s54, 3
      %p464 = por %p462, %p463
      %p465 = scmp.ne.s32.totalorder %s454, %s455
      %p466 = scmp.eq.s32.totalorder %s54, 0
      %p467 = por %p465, %p466
      %p468 = scmp.ne.s32.totalorder %s454, %s455
      %p469 = scmp.eq.s32.totalorder %s55, 3
      %p470 = por %p468, %p469
      %p472 = scmp.ne.s32.totalorder %s455, %s471
      %p473 = scmp.eq.s32.totalorder %s55, 0
      %p474 = por %p472, %p473
      %s475 = ssub.s32 %s57, %s64
      %p476 = scmp.eq.s32.totalorder %s475, 0
      %s478 = sadd.s32 %s477, 1
      %s479 = scalar_select %p476, %s477, %s478
      %p482 = pneg %p476
      %p483 = scmp.eq.s32.totalorder %s49, 3
      %p484 = por %p482, %p483
      %p485 = scmp.ne.s32.totalorder %s477, %s480
      %p486 = scmp.eq.s32.totalorder %s49, 0
      %p487 = por %p485, %p486
      %p488 = scmp.ne.s32.totalorder %s477, %s480
      %p489 = scmp.eq.s32.totalorder %s54, 3
      %p490 = por %p488, %p489
      %p491 = scmp.ne.s32.totalorder %s480, %s481
      %p492 = scmp.eq.s32.totalorder %s54, 0
      %p493 = por %p491, %p492
      %p494 = scmp.ne.s32.totalorder %s480, %s481
      %p495 = scmp.eq.s32.totalorder %s55, 3
      %p496 = por %p494, %p495
      %p498 = scmp.ne.s32.totalorder %s481, %s497
      %p499 = scmp.eq.s32.totalorder %s55, 0
      %p500 = por %p498, %p499
      %s501 = ssub.s32 %s57, %s64
      %p502 = scmp.eq.s32.totalorder %s501, 0
      %s504 = sadd.s32 %s503, 1
      %s505 = scalar_select %p502, %s503, %s504
      %p508 = pneg %p502
      %p509 = scmp.eq.s32.totalorder %s49, 3
      %p510 = por %p508, %p509
      %p511 = scmp.ne.s32.totalorder %s503, %s506
      %p512 = scmp.eq.s32.totalorder %s49, 0
      %p513 = por %p511, %p512
      %p514 = scmp.ne.s32.totalorder %s503, %s506
      %p515 = scmp.eq.s32.totalorder %s54, 3
      %p516 = por %p514, %p515
      %p517 = scmp.ne.s32.totalorder %s506, %s507
      %p518 = scmp.eq.s32.totalorder %s54, 0
      %p519 = por %p517, %p518
      %p520 = scmp.ne.s32.totalorder %s506, %s507
      %p521 = scmp.eq.s32.totalorder %s55, 3
      %p522 = por %p520, %p521
      %p524 = scmp.ne.s32.totalorder %s507, %s523
      %p525 = scmp.eq.s32.totalorder %s55, 0
      %p526 = por %p524, %p525
      %s527 = ssub.s32 %s57, %s64
      %p528 = scmp.eq.s32.totalorder %s527, 0
      %s530 = sadd.s32 %s529, 1
      %s531 = scalar_select %p528, %s529, %s530
      %p534 = pneg %p528
      %p535 = scmp.eq.s32.totalorder %s49, 3
      %p536 = por %p534, %p535
      %p537 = scmp.ne.s32.totalorder %s529, %s532
      %p538 = scmp.eq.s32.totalorder %s49, 0
      %p539 = por %p537, %p538
      %p540 = scmp.ne.s32.totalorder %s529, %s532
      %p541 = scmp.eq.s32.totalorder %s54, 3
      %p542 = por %p540, %p541
      %p543 = scmp.ne.s32.totalorder %s532, %s533
      %p544 = scmp.eq.s32.totalorder %s54, 0
      %p545 = por %p543, %p544
      %p546 = scmp.ne.s32.totalorder %s532, %s533
      %p547 = scmp.eq.s32.totalorder %s55, 3
      %p548 = por %p546, %p547
      %p550 = scmp.ne.s32.totalorder %s533, %s549
      %p551 = scmp.eq.s32.totalorder %s55, 0
      %p552 = por %p550, %p551
      %s553 = ssub.s32 %s57, %s64
      %p554 = scmp.eq.s32.totalorder %s553, 0
      %s556 = sadd.s32 %s555, 1
      %s557 = scalar_select %p554, %s555, %s556
      %p560 = pneg %p554
      %p561 = scmp.eq.s32.totalorder %s49, 3
      %p562 = por %p560, %p561
      %p563 = scmp.ne.s32.totalorder %s555, %s558
      %p564 = scmp.eq.s32.totalorder %s49, 0
      %p565 = por %p563, %p564
      %p566 = scmp.ne.s32.totalorder %s555, %s558
      %p567 = scmp.eq.s32.totalorder %s54, 3
      %p568 = por %p566, %p567
      %p569 = scmp.ne.s32.totalorder %s558, %s559
      %p570 = scmp.eq.s32.totalorder %s54, 0
      %p571 = por %p569, %p570
      %p572 = scmp.ne.s32.totalorder %s558, %s559
      %p573 = scmp.eq.s32.totalorder %s55, 3
      %p574 = por %p572, %p573
      %p576 = scmp.ne.s32.totalorder %s559, %s575
      %p577 = scmp.eq.s32.totalorder %s55, 0
      %p578 = por %p576, %p577
      %s579 = ssub.s32 %s57, %s64
      %p580 = scmp.eq.s32.totalorder %s579, 0
      %s582 = sadd.s32 %s581, 1
      %s583 = scalar_select %p580, %s581, %s582
      %p586 = pneg %p580
      %p587 = scmp.eq.s32.totalorder %s49, 3
      %p588 = por %p586, %p587
      %p589 = scmp.ne.s32.totalorder %s581, %s584
      %p590 = scmp.eq.s32.totalorder %s49, 0
      %p591 = por %p589, %p590
      %p592 = scmp.ne.s32.totalorder %s581, %s584
      %p593 = scmp.eq.s32.totalorder %s54, 3
      %p594 = por %p592, %p593
      %p595 = scmp.ne.s32.totalorder %s584, %s585
      %p596 = scmp.eq.s32.totalorder %s54, 0
      %p597 = por %p595, %p596
      %p598 = scmp.ne.s32.totalorder %s584, %s585
      %p599 = scmp.eq.s32.totalorder %s55, 3
      %p600 = por %p598, %p599
      %p602 = scmp.ne.s32.totalorder %s585, %s601
      %p603 = scmp.eq.s32.totalorder %s55, 0
      %p604 = por %p602, %p603
      %s605 = ssub.s32 %s57, %s64
      %p606 = scmp.eq.s32.totalorder %s605, 0
      %s608 = sadd.s32 %s607, 1
      %s609 = scalar_select %p606, %s607, %s608
      %p612 = pneg %p606
      %p613 = scmp.eq.s32.totalorder %s49, 3
      %p614 = por %p612, %p613
      %p615 = scmp.ne.s32.totalorder %s607, %s610
      %p616 = scmp.eq.s32.totalorder %s49, 0
      %p617 = por %p615, %p616
      %p618 = scmp.ne.s32.totalorder %s607, %s610
      %p619 = scmp.eq.s32.totalorder %s54, 3
      %p620 = por %p618, %p619
      %p621 = scmp.ne.s32.totalorder %s610, %s611
      %p622 = scmp.eq.s32.totalorder %s54, 0
      %p623 = por %p621, %p622
      %p624 = scmp.ne.s32.totalorder %s610, %s611
      %p625 = scmp.eq.s32.totalorder %s55, 3
      %p626 = por %p624, %p625
      %p628 = scmp.ne.s32.totalorder %s611, %s627
      %p629 = scmp.eq.s32.totalorder %s55, 0
      %p630 = por %p628, %p629
      %s631 = ssub.s32 %s56, %s68
      %p632 = scmp.eq.s32.totalorder %s631, 0
      %s634 = sadd.s32 %s633, 1
      %s635 = scalar_select %p632, %s633, %s634
      %p638 = pneg %p632
      %p639 = scmp.eq.s32.totalorder %s49, 3
      %p640 = por %p638, %p639
      %p641 = scmp.ne.s32.totalorder %s633, %s636
      %p642 = scmp.eq.s32.totalorder %s49, 0
      %p643 = por %p641, %p642
      %p644 = scmp.ne.s32.totalorder %s633, %s636
      %p645 = scmp.eq.s32.totalorder %s54, 3
      %p646 = por %p644, %p645
      %p647 = scmp.ne.s32.totalorder %s636, %s637
      %p648 = scmp.eq.s32.totalorder %s54, 0
      %p649 = por %p647, %p648
      %p650 = scmp.ne.s32.totalorder %s636, %s637
      %p651 = scmp.eq.s32.totalorder %s55, 3
      %p652 = por %p650, %p651
      %p654 = scmp.ne.s32.totalorder %s637, %s653
      %p655 = scmp.eq.s32.totalorder %s55, 0
      %p656 = por %p654, %p655
      %p657 = scmp.le.s32.totalorder 1, %s49
      %p658 = scmp.lt.s32.totalorder %s49, 5
      %p659 = pnand %p657, %p658
      %p660 = pneg %p659
      // Predicated region
      $region9: #{tpu_custom_call.1} parent=5 // pred_check
        _
      $region10: #{tpu_custom_call.1} parent=5 // pred_check_branch
        %662 = sbr.rel (%p659) target = $region12
      $region11: #{tpu_custom_call.1} parent=5 // pred_region
        %s663 = ssub.s32 %s49, 1
        // Predicated region
        $region13: #{tpu_custom_call.1} parent=11 // pred_check
          %p664 = pneg %p134
        $region14: #{tpu_custom_call.1} parent=11 // pred_check_branch
          %666 = sbr.rel (%p664) target = $region16
        $region15: #{tpu_custom_call.1} parent=11 // pred_region
          %s668 = ssub.s32 128, 128
          %669 = vsyncadd [#allocation7], %s668
          %s671 = sshll.u32 [#allocation8], 4
          %s672 = int_to_ptr.vmem [resolvable:$true] %s671
          %674 = dma.hbm_to_vmem [thread:$0]  %s2, 128, %s672, [#allocation7]
        $region16: #{tpu_custom_call.1} parent=11 // pred_fallthru
          _
        // Predicated region
        $region17: #{tpu_custom_call.1} parent=11 // pred_check
          %p675 = pneg %p155
        $region18: #{tpu_custom_call.1} parent=11 // pred_check_branch
          %677 = sbr.rel (%p675) target = $region20
        $region19: #{tpu_custom_call.1} parent=11 // pred_region
          _
        $region20: #{tpu_custom_call.1} parent=11 // pred_fallthru
          _
      $region12: #{tpu_custom_call.1} parent=5 // pred_fallthru
        _
      %p678 = scmp.lt.s32.totalorder %s49, 4
      // Predicated region
      $region21: #{tpu_custom_call.1} parent=5 // pred_check
        %p679 = pneg %p678
      $region22: #{tpu_custom_call.1} parent=5 // pred_check_branch
        %681 = sbr.rel (%p679) target = $region24
      $region23: #{tpu_custom_call.1} parent=5 // pred_region
        // Predicated region
        $region25: #{tpu_custom_call.1} parent=23 // pred_check
          %p682 = pneg %p81
        $region26: #{tpu_custom_call.1} parent=23 // pred_check_branch
          %684 = sbr.rel (%p682) target = $region28
        $region27: #{tpu_custom_call.1} parent=23 // pred_region
          %s685 = sand.u32 %s71, 1
          %s686 = scalar_lea.sflag [#allocation4], %s685
          %s687 = sand.u32 %s71, 1
          %s688 = smul.addr %s687, 8
          %s689 = scalar_lea.vmem [#allocation3], %s688
          %s691 = ssub.s32 128, 128
          %692 = vsyncadd %s686, %s691
          %s693 = smul.addr %s56, 128
          %s694 = scalar_lea.hbm %s0, %s693
          %s696 = sshll.u32 %s689, 4
          %s697 = int_to_ptr.vmem [resolvable:$true] %s696
          %699 = dma.hbm_to_vmem [thread:$0]  %s694, 128, %s697, %s686
        $region28: #{tpu_custom_call.1} parent=23 // pred_fallthru
          _
        // Predicated region
        $region29: #{tpu_custom_call.1} parent=23 // pred_check
          %p700 = pneg %p107
        $region30: #{tpu_custom_call.1} parent=23 // pred_check_branch
          %702 = sbr.rel (%p700) target = $region32
        $region31: #{tpu_custom_call.1} parent=23 // pred_region
          %s703 = sand.u32 %s49, 1
          %s704 = scalar_lea.sflag [#allocation7], %s703
          %s705 = sand.u32 %s97, 1
          %s706 = smul.addr %s705, 4
          %s707 = scalar_lea.vmem [#allocation6], %s706
          %s709 = ssub.s32 64, 64
          %710 = vsyncadd %s704, %s709
          %s711 = smul.addr %s56, 64
          %s712 = scalar_lea.hbm %s1, %s711
          %s714 = sshll.u32 %s707, 4
          %s715 = int_to_ptr.vmem [resolvable:$true] %s714
          %717 = dma.hbm_to_vmem [thread:$0]  %s712, 64, %s715, %s704
        $region32: #{tpu_custom_call.1} parent=23 // pred_fallthru
          _
        // Predicated region
        $region33: #{tpu_custom_call.1} parent=23 // pred_check
          %p718 = pneg %p175
        $region34: #{tpu_custom_call.1} parent=23 // pred_check_branch
          %720 = sbr.rel (%p718) target = $region36
        $region35: #{tpu_custom_call.1} parent=23 // pred_region
          %p721 = scmp.lt.s32.totalorder %s57, 1
          %s722 = scalar_select %p721, %s57, 1
          %s723 = scalar_lea.vmem %s4, %s722
        $region36: #{tpu_custom_call.1} parent=23 // pred_fallthru
          _
        // Predicated region
        $region37: #{tpu_custom_call.1} parent=23 // pred_check
          %p724 = pneg %p201
        $region38: #{tpu_custom_call.1} parent=23 // pred_check_branch
          %726 = sbr.rel (%p724) target = $region40
        $region39: #{tpu_custom_call.1} parent=23 // pred_region
          %s727 = sand.u32 %s49, 1
          %s728 = scalar_lea.sflag [#allocation10], %s727
          %s729 = sand.u32 %s191, 1
          %s730 = scalar_lea.vmem [#allocation9], %s729
          %s732 = ssub.s32 16, 16
          %733 = vsyncadd %s728, %s732
          %s734 = smul.addr %s57, 16
          %s735 = scalar_lea.hbm %s5, %s734
          %s737 = sshll.u32 %s730, 4
          %s738 = int_to_ptr.vmem [resolvable:$true] %s737
          %740 = dma.hbm_to_vmem [thread:$0]  %s735, 16, %s738, %s728
        $region40: #{tpu_custom_call.1} parent=23 // pred_fallthru
          _
        // Predicated region
        $region41: #{tpu_custom_call.1} parent=23 // pred_check
          %p741 = pneg %p227
        $region42: #{tpu_custom_call.1} parent=23 // pred_check_branch
          %743 = sbr.rel (%p741) target = $region44
        $region43: #{tpu_custom_call.1} parent=23 // pred_region
          %p744 = scmp.lt.s32.totalorder %s57, 1
          %s745 = scalar_select %p744, %s57, 1
          %s746 = smul.addr %s745, 4
          %s747 = smul.addr %s746, 4
          %s748 = scalar_lea.vmem %s6, %s747
        $region44: #{tpu_custom_call.1} parent=23 // pred_fallthru
          _
        // Predicated region
        $region45: #{tpu_custom_call.1} parent=23 // pred_check
          %p749 = pneg %p253
        $region46: #{tpu_custom_call.1} parent=23 // pred_check_branch
          %751 = sbr.rel (%p749) target = $region48
        $region47: #{tpu_custom_call.1} parent=23 // pred_region
          %p752 = scmp.lt.s32.totalorder %s57, 1
          %s753 = scalar_select %p752, %s57, 1
          %s754 = smul.addr %s753, 4
          %s755 = smul.addr %s754, 4
          %s756 = scalar_lea.vmem %s7, %s755
        $region48: #{tpu_custom_call.1} parent=23 // pred_fallthru
          _
        // Predicated region
        $region49: #{tpu_custom_call.1} parent=23 // pred_check
          %p757 = pneg %p279
        $region50: #{tpu_custom_call.1} parent=23 // pred_check_branch
          %759 = sbr.rel (%p757) target = $region52
        $region51: #{tpu_custom_call.1} parent=23 // pred_region
          %p760 = scmp.lt.s32.totalorder %s57, 1
          %s761 = scalar_select %p760, %s57, 1
          %s762 = smul.addr %s761, 4
          %s763 = smul.addr %s762, 4
          %s764 = scalar_lea.vmem %s8, %s763
        $region52: #{tpu_custom_call.1} parent=23 // pred_fallthru
          _
        // Predicated region
        $region53: #{tpu_custom_call.1} parent=23 // pred_check
          %p765 = pneg %p305
        $region54: #{tpu_custom_call.1} parent=23 // pred_check_branch
          %767 = sbr.rel (%p765) target = $region56
        $region55: #{tpu_custom_call.1} parent=23 // pred_region
          %p768 = scmp.lt.s32.totalorder %s57, 1
          %s769 = scalar_select %p768, %s57, 1
          %s770 = smul.addr %s769, 4
          %s771 = smul.addr %s770, 4
          %s772 = scalar_lea.vmem %s9, %s771
        $region56: #{tpu_custom_call.1} parent=23 // pred_fallthru
          _
        // Predicated region
        $region57: #{tpu_custom_call.1} parent=23 // pred_check
          %p773 = pneg %p331
        $region58: #{tpu_custom_call.1} parent=23 // pred_check_branch
          %775 = sbr.rel (%p773) target = $region60
        $region59: #{tpu_custom_call.1} parent=23 // pred_region
          %s776 = sand.u32 %s49, 1
          %s777 = scalar_lea.sflag [#allocation10], %s776
          %s778 = sand.u32 %s321, 1
          %s779 = scalar_lea.vmem [#allocation11], %s778
          %s781 = ssub.s32 16, 16
          %782 = vsyncadd %s777, %s781
          %s783 = smul.addr %s57, 16
          %s784 = scalar_lea.hbm %s10, %s783
          %s786 = sshll.u32 %s779, 4
          %s787 = int_to_ptr.vmem [resolvable:$true] %s786
          %789 = dma.hbm_to_vmem [thread:$0]  %s784, 16, %s787, %s777
        $region60: #{tpu_custom_call.1} parent=23 // pred_fallthru
          _
        // Predicated region
        $region61: #{tpu_custom_call.1} parent=23 // pred_check
          %p790 = pneg %p357
        $region62: #{tpu_custom_call.1} parent=23 // pred_check_branch
          %792 = sbr.rel (%p790) target = $region64
        $region63: #{tpu_custom_call.1} parent=23 // pred_region
          %s793 = sand.u32 %s49, 1
          %s794 = scalar_lea.sflag [#allocation13], %s793
          %s795 = sand.u32 %s347, 1
          %s796 = scalar_lea.vmem [#allocation12], %s795
          %s798 = ssub.s32 16, 16
          %799 = vsyncadd %s794, %s798
          %s800 = smul.addr %s57, 16
          %s801 = scalar_lea.hbm %s11, %s800
          %s803 = sshll.u32 %s796, 4
          %s804 = int_to_ptr.vmem [resolvable:$true] %s803
          %806 = dma.hbm_to_vmem [thread:$0]  %s801, 16, %s804, %s794
        $region64: #{tpu_custom_call.1} parent=23 // pred_fallthru
          _
        // Predicated region
        $region65: #{tpu_custom_call.1} parent=23 // pred_check
          %p807 = pneg %p383
        $region66: #{tpu_custom_call.1} parent=23 // pred_check_branch
          %809 = sbr.rel (%p807) target = $region68
        $region67: #{tpu_custom_call.1} parent=23 // pred_region
          %p810 = scmp.lt.s32.totalorder %s57, 1
          %s811 = scalar_select %p810, %s57, 1
          %s812 = smul.addr %s811, 4
          %s813 = smul.addr %s812, 4
          %s814 = scalar_lea.vmem %s12, %s813
        $region68: #{tpu_custom_call.1} parent=23 // pred_fallthru
          _
        // Predicated region
        $region69: #{tpu_custom_call.1} parent=23 // pred_check
          %p815 = pneg %p409
        $region70: #{tpu_custom_call.1} parent=23 // pred_check_branch
          %817 = sbr.rel (%p815) target = $region72
        $region71: #{tpu_custom_call.1} parent=23 // pred_region
          %p818 = scmp.lt.s32.totalorder %s57, 1
          %s819 = scalar_select %p818, %s57, 1
          %s820 = smul.addr %s819, 4
          %s821 = smul.addr %s820, 4
          %s822 = scalar_lea.vmem %s13, %s821
        $region72: #{tpu_custom_call.1} parent=23 // pred_fallthru
          _
        // Predicated region
        $region73: #{tpu_custom_call.1} parent=23 // pred_check
          %p823 = pneg %p435
        $region74: #{tpu_custom_call.1} parent=23 // pred_check_branch
          %825 = sbr.rel (%p823) target = $region76
        $region75: #{tpu_custom_call.1} parent=23 // pred_region
          %p826 = scmp.lt.s32.totalorder %s57, 1
          %s827 = scalar_select %p826, %s57, 1
          %s828 = smul.addr %s827, 4
          %s829 = smul.addr %s828, 4
          %s830 = scalar_lea.vmem %s14, %s829
        $region76: #{tpu_custom_call.1} parent=23 // pred_fallthru
          _
        // Predicated region
        $region77: #{tpu_custom_call.1} parent=23 // pred_check
          %p831 = pneg %p461
        $region78: #{tpu_custom_call.1} parent=23 // pred_check_branch
          %833 = sbr.rel (%p831) target = $region80
        $region79: #{tpu_custom_call.1} parent=23 // pred_region
          %p834 = scmp.lt.s32.totalorder %s57, 1
          %s835 = scalar_select %p834, %s57, 1
          %s836 = smul.addr %s835, 4
          %s837 = smul.addr %s836, 4
          %s838 = scalar_lea.vmem %s15, %s837
        $region80: #{tpu_custom_call.1} parent=23 // pred_fallthru
          _
        // Predicated region
        $region81: #{tpu_custom_call.1} parent=23 // pred_check
          %p839 = pneg %p487
        $region82: #{tpu_custom_call.1} parent=23 // pred_check_branch
          %841 = sbr.rel (%p839) target = $region84
        $region83: #{tpu_custom_call.1} parent=23 // pred_region
          %s842 = sand.u32 %s49, 1
          %s843 = scalar_lea.sflag [#allocation13], %s842
          %s844 = sand.u32 %s477, 1
          %s845 = scalar_lea.vmem [#allocation14], %s844
          %s847 = ssub.s32 16, 16
          %848 = vsyncadd %s843, %s847
          %s849 = smul.addr %s57, 16
          %s850 = scalar_lea.hbm %s16, %s849
          %s852 = sshll.u32 %s845, 4
          %s853 = int_to_ptr.vmem [resolvable:$true] %s852
          %855 = dma.hbm_to_vmem [thread:$0]  %s850, 16, %s853, %s843
        $region84: #{tpu_custom_call.1} parent=23 // pred_fallthru
          _
        // Predicated region
        $region85: #{tpu_custom_call.1} parent=23 // pred_check
          %p856 = pneg %p513
        $region86: #{tpu_custom_call.1} parent=23 // pred_check_branch
          %858 = sbr.rel (%p856) target = $region88
        $region87: #{tpu_custom_call.1} parent=23 // pred_region
          %s859 = sand.u32 %s49, 1
          %s860 = scalar_lea.sflag [#allocation16], %s859
          %s861 = sand.u32 %s503, 1
          %s862 = scalar_lea.vmem [#allocation15], %s861
          %s864 = ssub.s32 16, 16
          %865 = vsyncadd %s860, %s864
          %s866 = smul.addr %s57, 16
          %s867 = scalar_lea.hbm %s17, %s866
          %s869 = sshll.u32 %s862, 4
          %s870 = int_to_ptr.vmem [resolvable:$true] %s869
          %872 = dma.hbm_to_vmem [thread:$0]  %s867, 16, %s870, %s860
        $region88: #{tpu_custom_call.1} parent=23 // pred_fallthru
          _
        // Predicated region
        $region89: #{tpu_custom_call.1} parent=23 // pred_check
          %p873 = pneg %p539
        $region90: #{tpu_custom_call.1} parent=23 // pred_check_branch
          %875 = sbr.rel (%p873) target = $region92
        $region91: #{tpu_custom_call.1} parent=23 // pred_region
          %p876 = scmp.lt.s32.totalorder %s57, 1
          %s877 = scalar_select %p876, %s57, 1
          %s878 = smul.addr %s877, 8
          %s879 = smul.addr %s878, 4
          %s880 = scalar_lea.vmem %s18, %s879
        $region92: #{tpu_custom_call.1} parent=23 // pred_fallthru
          _
        // Predicated region
        $region93: #{tpu_custom_call.1} parent=23 // pred_check
          %p881 = pneg %p565
        $region94: #{tpu_custom_call.1} parent=23 // pred_check_branch
          %883 = sbr.rel (%p881) target = $region96
        $region95: #{tpu_custom_call.1} parent=23 // pred_region
          %s884 = sand.u32 %s49, 1
          %s885 = scalar_lea.sflag [#allocation16], %s884
          %s886 = sand.u32 %s555, 1
          %s887 = smul.addr %s886, 2
          %s888 = scalar_lea.vmem [#allocation17], %s887
          %s890 = ssub.s32 32, 32
          %891 = vsyncadd %s885, %s890
          %s892 = smul.addr %s57, 2
          %s893 = smul.addr %s892, 16
          %s894 = scalar_lea.hbm %s19, %s893
          %s896 = sshll.u32 %s888, 4
          %s897 = int_to_ptr.vmem [resolvable:$true] %s896
          %899 = dma.hbm_to_vmem [thread:$0]  %s894, 32, %s897, %s885
        $region96: #{tpu_custom_call.1} parent=23 // pred_fallthru
          _
        // Predicated region
        $region97: #{tpu_custom_call.1} parent=23 // pred_check
          %p900 = pneg %p591
        $region98: #{tpu_custom_call.1} parent=23 // pred_check_branch
          %902 = sbr.rel (%p900) target = $region100
        $region99: #{tpu_custom_call.1} parent=23 // pred_region
          %p903 = scmp.lt.s32.totalorder %s57, 1
          %s904 = scalar_select %p903, %s57, 1
          %s905 = smul.addr %s904, 32
          %s906 = smul.addr %s905, 4
          %s907 = scalar_lea.vmem %s20, %s906
        $region100: #{tpu_custom_call.1} parent=23 // pred_fallthru
          _
        // Predicated region
        $region101: #{tpu_custom_call.1} parent=23 // pred_check
          %p908 = pneg %p617
        $region102: #{tpu_custom_call.1} parent=23 // pred_check_branch
          %910 = sbr.rel (%p908) target = $region104
        $region103: #{tpu_custom_call.1} parent=23 // pred_region
          %s911 = sand.u32 %s607, 1
          %s912 = scalar_lea.sflag [#allocation19], %s911
          %s913 = sand.u32 %s607, 1
          %s914 = scalar_lea.vmem [#allocation18], %s913
          %s916 = ssub.s32 16, 16
          %917 = vsyncadd %s912, %s916
          %s918 = smul.addr %s57, 16
          %s919 = scalar_lea.hbm %s21, %s918
          %s921 = sshll.u32 %s914, 4
          %s922 = int_to_ptr.vmem [resolvable:$true] %s921
          %924 = dma.hbm_to_vmem [thread:$0]  %s919, 16, %s922, %s912
        $region104: #{tpu_custom_call.1} parent=23 // pred_fallthru
          _
      $region24: #{tpu_custom_call.1} parent=5 // pred_fallthru
        _
      %p925 = scmp.le.s32.totalorder 1, %s49
      %p926 = scmp.lt.s32.totalorder %s49, 5
      %p927 = pnand %p925, %p926
      %p928 = pneg %p927
      // Predicated region
      $region105: #{tpu_custom_call.1} parent=5 // pred_check
        _
      $region106: #{tpu_custom_call.1} parent=5 // pred_check_branch
        %930 = sbr.rel (%p927) target = $region108
      $region107: #{tpu_custom_call.1} parent=5 // pred_region
        %s931 = ssub.s32 %s49, 1
        %s932 = sand.u32 %s74, 1
        %s933 = scalar_lea.sflag [#allocation4], %s932
        %s934 = sand.u32 %s74, 1
        %s935 = smul.addr %s934, 8
        %s936 = scalar_lea.vmem [#allocation3], %s935
        // Predicated region
        $region109: #{tpu_custom_call.1} parent=107 // pred_check
          %p937 = pneg %p87
        $region110: #{tpu_custom_call.1} parent=107 // pred_check_branch
          %939 = sbr.rel (%p937) target = $region112
        $region111: #{tpu_custom_call.1} parent=107 // pred_region
          %940 = dma.done %s933, 128
        $region112: #{tpu_custom_call.1} parent=107 // pred_fallthru
          _
        %s941 = sand.u32 %s54, 1
        %s942 = scalar_lea.sflag [#allocation7], %s941
        %s943 = sand.u32 %s100, 1
        %s944 = smul.addr %s943, 4
        %s945 = scalar_lea.vmem [#allocation6], %s944
        // Predicated region
        $region113: #{tpu_custom_call.1} parent=107 // pred_check
          %p946 = pneg %p113
        $region114: #{tpu_custom_call.1} parent=107 // pred_check_branch
          %948 = sbr.rel (%p946) target = $region116
        $region115: #{tpu_custom_call.1} parent=107 // pred_region
          %949 = dma.done %s942, 64
        $region116: #{tpu_custom_call.1} parent=107 // pred_fallthru
          _
        // Predicated region
        $region117: #{tpu_custom_call.1} parent=107 // pred_check
          %p950 = pneg %p134
        $region118: #{tpu_custom_call.1} parent=107 // pred_check_branch
          %952 = sbr.rel (%p950) target = $region120
        $region119: #{tpu_custom_call.1} parent=107 // pred_region
          %953 = dma.done [#allocation7], 128
        $region120: #{tpu_custom_call.1} parent=107 // pred_fallthru
          _
        %s954 = sand.u32 %s54, 1
        %s955 = scalar_lea.sflag [#allocation10], %s954
        %s956 = sand.u32 %s194, 1
        %s957 = scalar_lea.vmem [#allocation9], %s956
        // Predicated region
        $region121: #{tpu_custom_call.1} parent=107 // pred_check
          %p958 = pneg %p207
        $region122: #{tpu_custom_call.1} parent=107 // pred_check_branch
          %960 = sbr.rel (%p958) target = $region124
        $region123: #{tpu_custom_call.1} parent=107 // pred_region
          %961 = dma.done %s955, 16
        $region124: #{tpu_custom_call.1} parent=107 // pred_fallthru
          _
        %s962 = sand.u32 %s54, 1
        %s963 = scalar_lea.sflag [#allocation10], %s962
        %s964 = sand.u32 %s324, 1
        %s965 = scalar_lea.vmem [#allocation11], %s964
        // Predicated region
        $region125: #{tpu_custom_call.1} parent=107 // pred_check
          %p966 = pneg %p337
        $region126: #{tpu_custom_call.1} parent=107 // pred_check_branch
          %968 = sbr.rel (%p966) target = $region128
        $region127: #{tpu_custom_call.1} parent=107 // pred_region
          %969 = dma.done %s963, 16
        $region128: #{tpu_custom_call.1} parent=107 // pred_fallthru
          _
        %s970 = sand.u32 %s54, 1
        %s971 = scalar_lea.sflag [#allocation13], %s970
        %s972 = sand.u32 %s350, 1
        %s973 = scalar_lea.vmem [#allocation12], %s972
        // Predicated region
        $region129: #{tpu_custom_call.1} parent=107 // pred_check
          %p974 = pneg %p363
        $region130: #{tpu_custom_call.1} parent=107 // pred_check_branch
          %976 = sbr.rel (%p974) target = $region132
        $region131: #{tpu_custom_call.1} parent=107 // pred_region
          %977 = dma.done %s971, 16
        $region132: #{tpu_custom_call.1} parent=107 // pred_fallthru
          _
        %s978 = sand.u32 %s54, 1
        %s979 = scalar_lea.sflag [#allocation13], %s978
        %s980 = sand.u32 %s480, 1
        %s981 = scalar_lea.vmem [#allocation14], %s980
        // Predicated region
        $region133: #{tpu_custom_call.1} parent=107 // pred_check
          %p982 = pneg %p493
        $region134: #{tpu_custom_call.1} parent=107 // pred_check_branch
          %984 = sbr.rel (%p982) target = $region136
        $region135: #{tpu_custom_call.1} parent=107 // pred_region
          %985 = dma.done %s979, 16
        $region136: #{tpu_custom_call.1} parent=107 // pred_fallthru
          _
        %s986 = sand.u32 %s54, 1
        %s987 = scalar_lea.sflag [#allocation16], %s986
        %s988 = sand.u32 %s506, 1
        %s989 = scalar_lea.vmem [#allocation15], %s988
        // Predicated region
        $region137: #{tpu_custom_call.1} parent=107 // pred_check
          %p990 = pneg %p519
        $region138: #{tpu_custom_call.1} parent=107 // pred_check_branch
          %992 = sbr.rel (%p990) target = $region140
        $region139: #{tpu_custom_call.1} parent=107 // pred_region
          %993 = dma.done %s987, 16
        $region140: #{tpu_custom_call.1} parent=107 // pred_fallthru
          _
        %s994 = sand.u32 %s54, 1
        %s995 = scalar_lea.sflag [#allocation16], %s994
        %s996 = sand.u32 %s558, 1
        %s997 = smul.addr %s996, 2
        %s998 = scalar_lea.vmem [#allocation17], %s997
        // Predicated region
        $region141: #{tpu_custom_call.1} parent=107 // pred_check
          %p999 = pneg %p571
        $region142: #{tpu_custom_call.1} parent=107 // pred_check_branch
          %1001 = sbr.rel (%p999) target = $region144
        $region143: #{tpu_custom_call.1} parent=107 // pred_region
          %1002 = dma.done %s995, 32
        $region144: #{tpu_custom_call.1} parent=107 // pred_fallthru
          _
        %s1003 = sand.u32 %s610, 1
        %s1004 = scalar_lea.sflag [#allocation19], %s1003
        %s1005 = sand.u32 %s610, 1
        %s1006 = scalar_lea.vmem [#allocation18], %s1005
        // Predicated region
        $region145: #{tpu_custom_call.1} parent=107 // pred_check
          %p1007 = pneg %p623
        $region146: #{tpu_custom_call.1} parent=107 // pred_check_branch
          %1009 = sbr.rel (%p1007) target = $region148
        $region147: #{tpu_custom_call.1} parent=107 // pred_region
          %1010 = dma.done %s1004, 16
        $region148: #{tpu_custom_call.1} parent=107 // pred_fallthru
          _
        %s1011 = sand.u32 %s74, 1
        %s1012 = scalar_lea.sflag [#allocation4], %s1011
        %s1013 = sand.u32 %s74, 1
        %s1014 = smul.addr %s1013, 8
        %s1015 = scalar_lea.vmem [#allocation3], %s1014
        %p1016 = pneg %p87
        %p1017 = pneg %p84
        %s1018 = sand.u32 %s54, 1
        %s1019 = scalar_lea.sflag [#allocation7], %s1018
        %s1020 = sand.u32 %s100, 1
        %s1021 = smul.addr %s1020, 4
        %s1022 = scalar_lea.vmem [#allocation6], %s1021
        %p1023 = pneg %p113
        %p1024 = pneg %p110
        %p1025 = pneg %p134
        %p1026 = pneg %p131
        %p1027 = pneg %p155
        %p1028 = pneg %p152
        %p1029 = scmp.lt.s32.totalorder %s59, 1
        %s1030 = scalar_select %p1029, %s59, 1
        %s1031 = scalar_lea.vmem %s4, %s1030
        %p1032 = pneg %p181
        %p1033 = pneg %p178
        %s1034 = sand.u32 %s54, 1
        %s1035 = scalar_lea.sflag [#allocation10], %s1034
        %s1036 = sand.u32 %s194, 1
        %s1037 = scalar_lea.vmem [#allocation9], %s1036
        %p1038 = pneg %p207
        %p1039 = pneg %p204
        %p1040 = scmp.lt.s32.totalorder %s59, 1
        %s1041 = scalar_select %p1040, %s59, 1
        %s1042 = smul.addr %s1041, 4
        %s1043 = smul.addr %s1042, 4
        %s1044 = scalar_lea.vmem %s6, %s1043
        %p1045 = pneg %p233
        %p1046 = pneg %p230
        %p1047 = scmp.lt.s32.totalorder %s59, 1
        %s1048 = scalar_select %p1047, %s59, 1
        %s1049 = smul.addr %s1048, 4
        %s1050 = smul.addr %s1049, 4
        %s1051 = scalar_lea.vmem %s7, %s1050
        %p1052 = pneg %p259
        %p1053 = pneg %p256
        %p1054 = scmp.lt.s32.totalorder %s59, 1
        %s1055 = scalar_select %p1054, %s59, 1
        %s1056 = smul.addr %s1055, 4
        %s1057 = smul.addr %s1056, 4
        %s1058 = scalar_lea.vmem %s8, %s1057
        %p1059 = pneg %p285
        %p1060 = pneg %p282
        %p1061 = scmp.lt.s32.totalorder %s59, 1
        %s1062 = scalar_select %p1061, %s59, 1
        %s1063 = smul.addr %s1062, 4
        %s1064 = smul.addr %s1063, 4
        %s1065 = scalar_lea.vmem %s9, %s1064
        %p1066 = pneg %p311
        %p1067 = pneg %p308
        %s1068 = sand.u32 %s54, 1
        %s1069 = scalar_lea.sflag [#allocation10], %s1068
        %s1070 = sand.u32 %s324, 1
        %s1071 = scalar_lea.vmem [#allocation11], %s1070
        %p1072 = pneg %p337
        %p1073 = pneg %p334
        %s1074 = sand.u32 %s54, 1
        %s1075 = scalar_lea.sflag [#allocation13], %s1074
        %s1076 = sand.u32 %s350, 1
        %s1077 = scalar_lea.vmem [#allocation12], %s1076
        %p1078 = pneg %p363
        %p1079 = pneg %p360
        %p1080 = scmp.lt.s32.totalorder %s59, 1
        %s1081 = scalar_select %p1080, %s59, 1
        %s1082 = smul.addr %s1081, 4
        %s1083 = smul.addr %s1082, 4
        %s1084 = scalar_lea.vmem %s12, %s1083
        %p1085 = pneg %p389
        %p1086 = pneg %p386
        %p1087 = scmp.lt.s32.totalorder %s59, 1
        %s1088 = scalar_select %p1087, %s59, 1
        %s1089 = smul.addr %s1088, 4
        %s1090 = smul.addr %s1089, 4
        %s1091 = scalar_lea.vmem %s13, %s1090
        %p1092 = pneg %p415
        %p1093 = pneg %p412
        %p1094 = scmp.lt.s32.totalorder %s59, 1
        %s1095 = scalar_select %p1094, %s59, 1
        %s1096 = smul.addr %s1095, 4
        %s1097 = smul.addr %s1096, 4
        %s1098 = scalar_lea.vmem %s14, %s1097
        %p1099 = pneg %p441
        %p1100 = pneg %p438
        %p1101 = scmp.lt.s32.totalorder %s59, 1
        %s1102 = scalar_select %p1101, %s59, 1
        %s1103 = smul.addr %s1102, 4
        %s1104 = smul.addr %s1103, 4
        %s1105 = scalar_lea.vmem %s15, %s1104
        %p1106 = pneg %p467
        %p1107 = pneg %p464
        %s1108 = sand.u32 %s54, 1
        %s1109 = scalar_lea.sflag [#allocation13], %s1108
        %s1110 = sand.u32 %s480, 1
        %s1111 = scalar_lea.vmem [#allocation14], %s1110
        %p1112 = pneg %p493
        %p1113 = pneg %p490
        %s1114 = sand.u32 %s54, 1
        %s1115 = scalar_lea.sflag [#allocation16], %s1114
        %s1116 = sand.u32 %s506, 1
        %s1117 = scalar_lea.vmem [#allocation15], %s1116
        %p1118 = pneg %p519
        %p1119 = pneg %p516
        %p1120 = scmp.lt.s32.totalorder %s59, 1
        %s1121 = scalar_select %p1120, %s59, 1
        %s1122 = smul.addr %s1121, 8
        %s1123 = smul.addr %s1122, 4
        %s1124 = scalar_lea.vmem %s18, %s1123
        %p1125 = pneg %p545
        %p1126 = pneg %p542
        %s1127 = sand.u32 %s54, 1
        %s1128 = scalar_lea.sflag [#allocation16], %s1127
        %s1129 = sand.u32 %s558, 1
        %s1130 = smul.addr %s1129, 2
        %s1131 = scalar_lea.vmem [#allocation17], %s1130
        %p1132 = pneg %p571
        %p1133 = pneg %p568
        %p1134 = scmp.lt.s32.totalorder %s59, 1
        %s1135 = scalar_select %p1134, %s59, 1
        %s1136 = smul.addr %s1135, 32
        %s1137 = smul.addr %s1136, 4
        %s1138 = scalar_lea.vmem %s20, %s1137
        %p1139 = pneg %p597
        %p1140 = pneg %p594
        %s1141 = sand.u32 %s610, 1
        %s1142 = scalar_lea.sflag [#allocation19], %s1141
        %s1143 = sand.u32 %s610, 1
        %s1144 = scalar_lea.vmem [#allocation18], %s1143
        %p1145 = pneg %p623
        %p1146 = pneg %p620
        %p1147 = pneg %p649
        %p1148 = pneg %p646
        %s1149 = sand.u32 %s636, 1
        %s1150 = scalar_lea.sflag [#allocation5], %s1149
        %s1151 = sand.u32 %s636, 1
        %s1152 = smul.addr %s1151, 8
        %s1153 = scalar_lea.vmem [#allocation20], %s1152
        %p1154 = scmp.lt.s32.totalorder %s59, 1
        %s1155 = scalar_select %p1154, %s59, 1
        %s1156 = scalar_lea.vmem %s4, %s1155
        %p1157 = scmp.lt.s32.totalorder %s59, 1
        %s1158 = scalar_select %p1157, %s59, 1
        %s1159 = smul.addr %s1158, 4
        %s1160 = smul.addr %s1159, 4
        %s1161 = scalar_lea.vmem %s6, %s1160
        %p1162 = scmp.lt.s32.totalorder %s59, 1
        %s1163 = scalar_select %p1162, %s59, 1
        %s1164 = smul.addr %s1163, 4
        %s1165 = smul.addr %s1164, 4
        %s1166 = scalar_lea.vmem %s7, %s1165
        %p1167 = scmp.lt.s32.totalorder %s59, 1
        %s1168 = scalar_select %p1167, %s59, 1
        %s1169 = smul.addr %s1168, 4
        %s1170 = smul.addr %s1169, 4
        %s1171 = scalar_lea.vmem %s8, %s1170
        %p1172 = scmp.lt.s32.totalorder %s59, 1
        %s1173 = scalar_select %p1172, %s59, 1
        %s1174 = smul.addr %s1173, 4
        %s1175 = smul.addr %s1174, 4
        %s1176 = scalar_lea.vmem %s9, %s1175
        %p1177 = scmp.lt.s32.totalorder %s59, 1
        %s1178 = scalar_select %p1177, %s59, 1
        %s1179 = smul.addr %s1178, 4
        %s1180 = smul.addr %s1179, 4
        %s1181 = scalar_lea.vmem %s12, %s1180
        %p1182 = scmp.lt.s32.totalorder %s59, 1
        %s1183 = scalar_select %p1182, %s59, 1
        %s1184 = smul.addr %s1183, 4
        %s1185 = smul.addr %s1184, 4
        %s1186 = scalar_lea.vmem %s13, %s1185
        %p1187 = scmp.lt.s32.totalorder %s59, 1
        %s1188 = scalar_select %p1187, %s59, 1
        %s1189 = smul.addr %s1188, 4
        %s1190 = smul.addr %s1189, 4
        %s1191 = scalar_lea.vmem %s14, %s1190
        %p1192 = scmp.lt.s32.totalorder %s59, 1
        %s1193 = scalar_select %p1192, %s59, 1
        %s1194 = smul.addr %s1193, 4
        %s1195 = smul.addr %s1194, 4
        %s1196 = scalar_lea.vmem %s15, %s1195
        %p1197 = scmp.lt.s32.totalorder %s59, 1
        %s1198 = scalar_select %p1197, %s59, 1
        %s1199 = smul.addr %s1198, 8
        %s1200 = smul.addr %s1199, 4
        %s1201 = scalar_lea.vmem %s18, %s1200
        %p1202 = scmp.lt.s32.totalorder %s59, 1
        %s1203 = scalar_select %p1202, %s59, 1
        %s1204 = smul.addr %s1203, 32
        %s1205 = smul.addr %s1204, 4
        %s1206 = scalar_lea.vmem %s20, %s1205
        %p1208 = scmp.eq.s32.totalorder %s59, 0
        // Predicated region
        $region149: #{tpu_custom_call.1} parent=107 // pred_check
          %p1209 = pneg %p1208
        $region150: #{tpu_custom_call.1} parent=107 // pred_check_branch
          %1211 = sbr.rel (%p1209) target = $region152
        $region151: #{tpu_custom_call.1} parent=107 // pred_region
          %v1212 = vld [vmem:[%s936] sm:$0xff]
          %vm1213 = vcmask 261120
          %1214 = vst.msk [vmem:[#allocation2] sm:$0xff] %vm1213, %v1212
        $region152: #{tpu_custom_call.1} parent=107 // pred_fallthru
          _
        %v1215 = vld [vmem:[#allocation2] sm:$0xff]
        %v1216 = vld [vmem:[%s945] sm:$0xf]
        %v1217 = vld [vmem:[#allocation8] sm:$0xff]
        %v1218 = vld [vmem:[%s3] sm:$0xff]
        %v1219 = vld [vmem:[%s1156] sm:$0x1]
        %v1220 = vld [vmem:[%s957] sm:$0x1]
        %vm1221 = vcmask 261120
        %v1222 = vsel %vm1221, %v1215, 0.0
        %1223 = vadd.xlane.f32.xlu0 %v1222
        %v1224 = vpop.xlane.xlu0 %1223
        %v1225 = vrcp.pop 32.0
        %v1226 = vmul.f32 %v1224, %v1225
        %v1227 = vsub.f32 %v1215, %v1226
        %v1228 = vmul.f32 %v1227, %v1227
        %v1229 = vsel %vm1221, %v1228, 0.0
        %1230 = vadd.xlane.f32.xlu0 %v1229
        %v1231 = vpop.xlane.xlu0 %1230
        %v1232 = vmul.f32 %v1231, %v1225
        %v1233 = vadd.f32 %v1232, 1e-05
        %v1234 = vrsqrt.pop %v1233
        %v1235 = vmul.f32 %v1227, %v1234
        %v1237 = vlaneseq
        %v1238 = vshrl.u32 %v1237, 7
        %v1239 = vsub.s32 0, %v1238
        %v1240 = vrot.slane %v1219, %v1239
        %v1242 = vmul.f32 %v1235, %v1240
        %v1244 = vlaneseq
        %v1245 = vshrl.u32 %v1244, 7
        %v1246 = vsub.s32 0, %v1245
        %v1247 = vrot.slane %v1220, %v1246
        %v1249 = vadd.f32 %v1242, %v1247
        %v1250 = vpack.c.bf16 %v1249, %v1249
        %v1251 = vld [vmem:[%s1161] sm:$0xf]
        %v1252 = vld [vmem:[%s1161 + $0x4] sm:$0xf]
        %v1253 = vld [vmem:[%s1161 + $0x8] sm:$0xf]
        %v1254 = vld [vmem:[%s1161 + $0xc] sm:$0xf]
        %v1259 = vunpack.c.l.b16 %v1251
        %v1260 = vunpack.c.l.b16 %v1252
        %v1261 = vunpack.c.l.b16 %v1253
        %v1262 = vunpack.c.l.b16 %v1254
        %v1263 = vpack.c.b16 %v1260, %v1259
        %v1264 = vpack.c.b16 %v1262, %v1261
        %v1268 = vsel %vm1221, %v1250, 0
        %1270 = vmatprep.subr.bf16.mxu0 0
        %1271 = vmatpush1.bf16.msra.mxu0 %v1263
        %1272 = vmatprep.subr.bf16.mxu0 0
        %1273 = vmatpush1.bf16.msra.mxu0 %v1264
        %1274 = vmatprep.subr.bf16.mxu0 0
        %1275 = vmatpush1.bf16.msra.mxu0 0
        %1276 = vmatprep.subr.bf16.mxu0 0
        %1277 = vmatpush1.bf16.msra.mxu0 0
        %1278 = vmatprep.subr.bf16.mxu0 0
        %1279 = vmatpush1.bf16.msra.mxu0 0
        %1280 = vmatprep.subr.bf16.mxu0 0
        %1281 = vmatpush1.bf16.msra.mxu0 0
        %1282 = vmatprep.subr.bf16.mxu0 0
        %1283 = vmatpush1.bf16.msra.mxu0 0
        %1284 = vmatprep.subr.bf16.mxu0 0
        %1285 = vmatpush1.bf16.msra.mxu0 0
        %1286 = vmatprep.subr.bf16.mxu0 0
        %1287 = vmatpush1.bf16.msra.mxu0 0
        %1288 = vmatprep.subr.bf16.mxu0 0
        %1289 = vmatpush1.bf16.msra.mxu0 0
        %1290 = vmatprep.subr.bf16.mxu0 0
        %1291 = vmatpush1.bf16.msra.mxu0 0
        %1292 = vmatprep.subr.bf16.mxu0 0
        %1293 = vmatpush1.bf16.msra.mxu0 0
        %1294 = vmatprep.subr.bf16.mxu0 0
        %1295 = vmatpush1.bf16.msra.mxu0 0
        %1296 = vmatprep.subr.bf16.mxu0 0
        %1297 = vmatpush1.bf16.msra.mxu0 0
        %1298 = vmatprep.subr.bf16.mxu0 0
        %1299 = vmatpush1.bf16.msra.mxu0 0
        %1300 = vmatprep.subr.bf16.mxu0 0
        %1301 = vmatpush1.bf16.msra.mxu0 0
        %1302 = vmatprep.mubr.bf16.mxu0 0
        %1303 = vmatmul.mubr.bf16.gmra.mrb[0].mxu0 %v1268
        %v1304 = vpop.f32.mrb[0].mxu0
        %v1305 = vadd.f32 0.0, %v1304
        %v1306 = vpop.f32.mrb[0].mxu0
        %v1307 = vpop.f32.mrb[0].mxu0
        %v1308 = vpop.f32.mrb[0].mxu0
        %1309 = vdwg.mxu0
        %v1310 = vld [vmem:[%s1166] sm:$0xf]
        %v1311 = vld [vmem:[%s1166 + $0x4] sm:$0xf]
        %v1312 = vld [vmem:[%s1166 + $0x8] sm:$0xf]
        %v1313 = vld [vmem:[%s1166 + $0xc] sm:$0xf]
        %v1318 = vunpack.c.l.b16 %v1310
        %v1319 = vunpack.c.l.b16 %v1311
        %v1320 = vunpack.c.l.b16 %v1312
        %v1321 = vunpack.c.l.b16 %v1313
        %v1322 = vpack.c.b16 %v1319, %v1318
        %v1323 = vpack.c.b16 %v1321, %v1320
        %1326 = vmatprep.subr.bf16.mxu0 0
        %1327 = vmatpush1.bf16.msra.mxu0 %v1322
        %1328 = vmatprep.subr.bf16.mxu0 0
        %1329 = vmatpush1.bf16.msra.mxu0 %v1323
        %1330 = vmatprep.subr.bf16.mxu0 0
        %1331 = vmatpush1.bf16.msra.mxu0 0
        %1332 = vmatprep.subr.bf16.mxu0 0
        %1333 = vmatpush1.bf16.msra.mxu0 0
        %1334 = vmatprep.subr.bf16.mxu0 0
        %1335 = vmatpush1.bf16.msra.mxu0 0
        %1336 = vmatprep.subr.bf16.mxu0 0
        %1337 = vmatpush1.bf16.msra.mxu0 0
        %1338 = vmatprep.subr.bf16.mxu0 0
        %1339 = vmatpush1.bf16.msra.mxu0 0
        %1340 = vmatprep.subr.bf16.mxu0 0
        %1341 = vmatpush1.bf16.msra.mxu0 0
        %1342 = vmatprep.subr.bf16.mxu0 0
        %1343 = vmatpush1.bf16.msra.mxu0 0
        %1344 = vmatprep.subr.bf16.mxu0 0
        %1345 = vmatpush1.bf16.msra.mxu0 0
        %1346 = vmatprep.subr.bf16.mxu0 0
        %1347 = vmatpush1.bf16.msra.mxu0 0
        %1348 = vmatprep.subr.bf16.mxu0 0
        %1349 = vmatpush1.bf16.msra.mxu0 0
        %1350 = vmatprep.subr.bf16.mxu0 0
        %1351 = vmatpush1.bf16.msra.mxu0 0
        %1352 = vmatprep.subr.bf16.mxu0 0
        %1353 = vmatpush1.bf16.msra.mxu0 0
        %1354 = vmatprep.subr.bf16.mxu0 0
        %1355 = vmatpush1.bf16.msra.mxu0 0
        %1356 = vmatprep.subr.bf16.mxu0 0
        %1357 = vmatpush1.bf16.msra.mxu0 0
        %1358 = vmatprep.mubr.bf16.mxu0 0
        %1359 = vmatmul.mubr.bf16.gmra.mrb[0].mxu0 %v1268
        %v1360 = vpop.f32.mrb[0].mxu0
        %v1361 = vadd.f32 0.0, %v1360
        %v1362 = vpop.f32.mrb[0].mxu0
        %v1363 = vpop.f32.mrb[0].mxu0
        %v1364 = vpop.f32.mrb[0].mxu0
        %1365 = vdwg.mxu0
        %v1366 = vld [vmem:[%s1171] sm:$0xf]
        %v1367 = vld [vmem:[%s1171 + $0x4] sm:$0xf]
        %v1368 = vld [vmem:[%s1171 + $0x8] sm:$0xf]
        %v1369 = vld [vmem:[%s1171 + $0xc] sm:$0xf]
        %v1374 = vunpack.c.l.b16 %v1366
        %v1375 = vunpack.c.l.b16 %v1367
        %v1376 = vunpack.c.l.b16 %v1368
        %v1377 = vunpack.c.l.b16 %v1369
        %v1378 = vpack.c.b16 %v1375, %v1374
        %v1379 = vpack.c.b16 %v1377, %v1376
        %1382 = vmatprep.subr.bf16.mxu0 0
        %1383 = vmatpush1.bf16.msra.mxu0 %v1378
        %1384 = vmatprep.subr.bf16.mxu0 0
        %1385 = vmatpush1.bf16.msra.mxu0 %v1379
        %1386 = vmatprep.subr.bf16.mxu0 0
        %1387 = vmatpush1.bf16.msra.mxu0 0
        %1388 = vmatprep.subr.bf16.mxu0 0
        %1389 = vmatpush1.bf16.msra.mxu0 0
        %1390 = vmatprep.subr.bf16.mxu0 0
        %1391 = vmatpush1.bf16.msra.mxu0 0
        %1392 = vmatprep.subr.bf16.mxu0 0
        %1393 = vmatpush1.bf16.msra.mxu0 0
        %1394 = vmatprep.subr.bf16.mxu0 0
        %1395 = vmatpush1.bf16.msra.mxu0 0
        %1396 = vmatprep.subr.bf16.mxu0 0
        %1397 = vmatpush1.bf16.msra.mxu0 0
        %1398 = vmatprep.subr.bf16.mxu0 0
        %1399 = vmatpush1.bf16.msra.mxu0 0
        %1400 = vmatprep.subr.bf16.mxu0 0
        %1401 = vmatpush1.bf16.msra.mxu0 0
        %1402 = vmatprep.subr.bf16.mxu0 0
        %1403 = vmatpush1.bf16.msra.mxu0 0
        %1404 = vmatprep.subr.bf16.mxu0 0
        %1405 = vmatpush1.bf16.msra.mxu0 0
        %1406 = vmatprep.subr.bf16.mxu0 0
        %1407 = vmatpush1.bf16.msra.mxu0 0
        %1408 = vmatprep.subr.bf16.mxu0 0
        %1409 = vmatpush1.bf16.msra.mxu0 0
        %1410 = vmatprep.subr.bf16.mxu0 0
        %1411 = vmatpush1.bf16.msra.mxu0 0
        %1412 = vmatprep.subr.bf16.mxu0 0
        %1413 = vmatpush1.bf16.msra.mxu0 0
        %1414 = vmatprep.mubr.bf16.mxu0 0
        %1415 = vmatmul.mubr.bf16.gmra.mrb[0].mxu0 %v1268
        %v1416 = vpop.f32.mrb[0].mxu0
        %v1417 = vadd.f32 0.0, %v1416
        %v1418 = vpop.f32.mrb[0].mxu0
        %v1419 = vpop.f32.mrb[0].mxu0
        %v1420 = vpop.f32.mrb[0].mxu0
        %1421 = vdwg.mxu0
        %v1422 = vmul.f32 %v1305, 0.35355338
        %1424 = vrot.lane.b32.xlu0 %v1422, 120
        %v1425 = vpop.permute.xlu0 %1424
        %1427 = vrot.lane.b32.xlu0 %v1422, 112
        %v1428 = vpop.permute.xlu0 %1427
        %1430 = vrot.lane.b32.xlu0 %v1422, 104
        %v1431 = vpop.permute.xlu0 %1430
        %1434 = vrot.lane.b32.xlu0 %v1361, 120
        %v1435 = vpop.permute.xlu0 %1434
        %1437 = vrot.lane.b32.xlu0 %v1361, 112
        %v1438 = vpop.permute.xlu0 %1437
        %1440 = vrot.lane.b32.xlu0 %v1361, 104
        %v1441 = vpop.permute.xlu0 %1440
        %1444 = vrot.lane.b32.xlu0 %v1417, 120
        %v1445 = vpop.permute.xlu0 %1444
        %1447 = vrot.lane.b32.xlu0 %v1417, 112
        %v1448 = vpop.permute.xlu0 %1447
        %1450 = vrot.lane.b32.xlu0 %v1417, 104
        %v1451 = vpop.permute.xlu0 %1450
        %v1453 = vsub.f32 0.0, %v1422
        %v1454 = vsub.f32 0.0, %v1425
        %v1455 = vsub.f32 0.0, %v1428
        %v1456 = vsub.f32 0.0, %v1431
        %1461 = vrot.lane.b32.xlu0 %v1453, 124
        %v1462 = vpop.permute.xlu0 %1461
        %1463 = vrot.lane.b32.xlu0 %v1454, 124
        %v1464 = vpop.permute.xlu0 %1463
        %1465 = vrot.lane.b32.xlu0 %v1455, 124
        %v1466 = vpop.permute.xlu0 %1465
        %1467 = vrot.lane.b32.xlu0 %v1456, 124
        %v1468 = vpop.permute.xlu0 %1467
        %1473 = vrot.lane.b32.xlu0 %v1422, 4
        %v1474 = vpop.permute.xlu0 %1473
        %1475 = vrot.lane.b32.xlu0 %v1425, 4
        %v1476 = vpop.permute.xlu0 %1475
        %1477 = vrot.lane.b32.xlu0 %v1428, 4
        %v1478 = vpop.permute.xlu0 %1477
        %1479 = vrot.lane.b32.xlu0 %v1431, 4
        %v1480 = vpop.permute.xlu0 %1479
        %vm1485 = vcmask 31744
        %v1486 = vsel %vm1485, %v1462, %v1474
        %v1487 = vsel %vm1485, %v1464, %v1476
        %v1488 = vsel %vm1485, %v1466, %v1478
        %v1489 = vsel %vm1485, %v1468, %v1480
        %v1490 = vmul.f32 %v1422, %v1217
        %v1491 = vmul.f32 %v1425, %v1217
        %v1492 = vmul.f32 %v1428, %v1217
        %v1493 = vmul.f32 %v1431, %v1217
        %v1494 = vmul.f32 %v1486, %v1218
        %v1495 = vmul.f32 %v1487, %v1218
        %v1496 = vmul.f32 %v1488, %v1218
        %v1497 = vmul.f32 %v1489, %v1218
        %v1498 = vadd.f32 %v1490, %v1494
        %v1499 = vadd.f32 %v1491, %v1495
        %v1500 = vadd.f32 %v1492, %v1496
        %v1501 = vadd.f32 %v1493, %v1497
        %v1502 = vsub.f32 0.0, %v1361
        %v1503 = vsub.f32 0.0, %v1435
        %v1504 = vsub.f32 0.0, %v1438
        %v1505 = vsub.f32 0.0, %v1441
        %1510 = vrot.lane.b32.xlu0 %v1502, 124
        %v1511 = vpop.permute.xlu0 %1510
        %1512 = vrot.lane.b32.xlu0 %v1503, 124
        %v1513 = vpop.permute.xlu0 %1512
        %1514 = vrot.lane.b32.xlu0 %v1504, 124
        %v1515 = vpop.permute.xlu0 %1514
        %1516 = vrot.lane.b32.xlu0 %v1505, 124
        %v1517 = vpop.permute.xlu0 %1516
        %1522 = vrot.lane.b32.xlu0 %v1361, 4
        %v1523 = vpop.permute.xlu0 %1522
        %1524 = vrot.lane.b32.xlu0 %v1435, 4
        %v1525 = vpop.permute.xlu0 %1524
        %1526 = vrot.lane.b32.xlu0 %v1438, 4
        %v1527 = vpop.permute.xlu0 %1526
        %1528 = vrot.lane.b32.xlu0 %v1441, 4
        %v1529 = vpop.permute.xlu0 %1528
        %v1534 = vsel %vm1485, %v1511, %v1523
        %v1535 = vsel %vm1485, %v1513, %v1525
        %v1536 = vsel %vm1485, %v1515, %v1527
        %v1537 = vsel %vm1485, %v1517, %v1529
        %v1538 = vmul.f32 %v1361, %v1217
        %v1539 = vmul.f32 %v1435, %v1217
        %v1540 = vmul.f32 %v1438, %v1217
        %v1541 = vmul.f32 %v1441, %v1217
        %v1542 = vmul.f32 %v1534, %v1218
        %v1543 = vmul.f32 %v1535, %v1218
        %v1544 = vmul.f32 %v1536, %v1218
        %v1545 = vmul.f32 %v1537, %v1218
        %v1546 = vadd.f32 %v1538, %v1542
        %v1547 = vadd.f32 %v1539, %v1543
        %v1548 = vadd.f32 %v1540, %v1544
        %v1549 = vadd.f32 %v1541, %v1545
        %v1550 = vpack.c.bf16 %v1498, %v1498
        %v1551 = vpack.c.bf16 %v1499, %v1499
        %v1552 = vpack.c.bf16 %v1500, %v1500
        %v1553 = vpack.c.bf16 %v1501, %v1501
        %v1554 = vpack.c.bf16 %v1546, %v1546
        %v1555 = vpack.c.bf16 %v1547, %v1547
        %v1556 = vpack.c.bf16 %v1548, %v1548
        %v1557 = vpack.c.bf16 %v1549, %v1549
        %vm1558 = vcmask 64512
        %v1560 = vsel %vm1558, %v1550, 0
        %v1563 = vsel %vm1558, %v1554, 0
        %1565 = vmatprep.subr.bf16.mxu0 0
        %1566 = vmatpush1.bf16.xpose.msra.mxu0 %v1563
        %1567 = vmatprep.subr.bf16.mxu0 0
        %1568 = vmatpush1.bf16.xpose.msra.mxu0 0
        %1569 = vmatprep.subr.bf16.mxu0 0
        %1570 = vmatpush1.bf16.xpose.msra.mxu0 0
        %1571 = vmatprep.subr.bf16.mxu0 0
        %1572 = vmatpush1.bf16.xpose.msra.mxu0 0
        %1573 = vmatprep.subr.bf16.mxu0 0
        %1574 = vmatpush1.bf16.xpose.msra.mxu0 0
        %1575 = vmatprep.subr.bf16.mxu0 0
        %1576 = vmatpush1.bf16.xpose.msra.mxu0 0
        %1577 = vmatprep.subr.bf16.mxu0 0
        %1578 = vmatpush1.bf16.xpose.msra.mxu0 0
        %1579 = vmatprep.subr.bf16.mxu0 0
        %1580 = vmatpush1.bf16.xpose.msra.mxu0 0
        %1581 = vmatprep.subr.bf16.mxu0 0
        %1582 = vmatpush1.bf16.xpose.msra.mxu0 0
        %1583 = vmatprep.subr.bf16.mxu0 0
        %1584 = vmatpush1.bf16.xpose.msra.mxu0 0
        %1585 = vmatprep.subr.bf16.mxu0 0
        %1586 = vmatpush1.bf16.xpose.msra.mxu0 0
        %1587 = vmatprep.subr.bf16.mxu0 0
        %1588 = vmatpush1.bf16.xpose.msra.mxu0 0
        %1589 = vmatprep.subr.bf16.mxu0 0
        %1590 = vmatpush1.bf16.xpose.msra.mxu0 0
        %1591 = vmatprep.subr.bf16.mxu0 0
        %1592 = vmatpush1.bf16.xpose.msra.mxu0 0
        %1593 = vmatprep.subr.bf16.mxu0 0
        %1594 = vmatpush1.bf16.xpose.msra.mxu0 0
        %1595 = vmatprep.subr.bf16.mxu0 0
        %1596 = vmatpush1.bf16.xpose.msra.mxu0 0
        %1597 = vmatprep.mubr.bf16.mxu0 0
        %1598 = vmatmul.mubr.bf16.gmra.mrb[0].mxu0 %v1560
        %v1599 = vpop.f32.mrb[0].mxu0
        %v1600 = vadd.f32 0.0, %v1599
        %v1601 = vpop.f32.mrb[0].mxu0
        %v1602 = vpop.f32.mrb[0].mxu0
        %v1603 = vpop.f32.mrb[0].mxu0
        %1604 = vdwg.mxu0
        %v1606 = vsel %vm1558, %v1551, 0
        %v1609 = vsel %vm1558, %v1555, 0
        %1611 = vmatprep.subr.bf16.mxu0 0
        %1612 = vmatpush1.bf16.xpose.msra.mxu0 %v1609
        %1613 = vmatprep.subr.bf16.mxu0 0
        %1614 = vmatpush1.bf16.xpose.msra.mxu0 0
        %1615 = vmatprep.subr.bf16.mxu0 0
        %1616 = vmatpush1.bf16.xpose.msra.mxu0 0
        %1617 = vmatprep.subr.bf16.mxu0 0
        %1618 = vmatpush1.bf16.xpose.msra.mxu0 0
        %1619 = vmatprep.subr.bf16.mxu0 0
        %1620 = vmatpush1.bf16.xpose.msra.mxu0 0
        %1621 = vmatprep.subr.bf16.mxu0 0
        %1622 = vmatpush1.bf16.xpose.msra.mxu0 0
        %1623 = vmatprep.subr.bf16.mxu0 0
        %1624 = vmatpush1.bf16.xpose.msra.mxu0 0
        %1625 = vmatprep.subr.bf16.mxu0 0
        %1626 = vmatpush1.bf16.xpose.msra.mxu0 0
        %1627 = vmatprep.subr.bf16.mxu0 0
        %1628 = vmatpush1.bf16.xpose.msra.mxu0 0
        %1629 = vmatprep.subr.bf16.mxu0 0
        %1630 = vmatpush1.bf16.xpose.msra.mxu0 0
        %1631 = vmatprep.subr.bf16.mxu0 0
        %1632 = vmatpush1.bf16.xpose.msra.mxu0 0
        %1633 = vmatprep.subr.bf16.mxu0 0
        %1634 = vmatpush1.bf16.xpose.msra.mxu0 0
        %1635 = vmatprep.subr.bf16.mxu0 0
        %1636 = vmatpush1.bf16.xpose.msra.mxu0 0
        %1637 = vmatprep.subr.bf16.mxu0 0
        %1638 = vmatpush1.bf16.xpose.msra.mxu0 0
        %1639 = vmatprep.subr.bf16.mxu0 0
        %1640 = vmatpush1.bf16.xpose.msra.mxu0 0
        %1641 = vmatprep.subr.bf16.mxu0 0
        %1642 = vmatpush1.bf16.xpose.msra.mxu0 0
        %1643 = vmatprep.mubr.bf16.mxu0 0
        %1644 = vmatmul.mubr.bf16.gmra.mrb[0].mxu0 %v1606
        %v1645 = vpop.f32.mrb[0].mxu0
        %v1646 = vadd.f32 0.0, %v1645
        %v1647 = vpop.f32.mrb[0].mxu0
        %v1648 = vpop.f32.mrb[0].mxu0
        %v1649 = vpop.f32.mrb[0].mxu0
        %1650 = vdwg.mxu0
        %v1652 = vsel %vm1558, %v1552, 0
        %v1655 = vsel %vm1558, %v1556, 0
        %1657 = vmatprep.subr.bf16.mxu0 0
        %1658 = vmatpush1.bf16.xpose.msra.mxu0 %v1655
        %1659 = vmatprep.subr.bf16.mxu0 0
        %1660 = vmatpush1.bf16.xpose.msra.mxu0 0
        %1661 = vmatprep.subr.bf16.mxu0 0
        %1662 = vmatpush1.bf16.xpose.msra.mxu0 0
        %1663 = vmatprep.subr.bf16.mxu0 0
        %1664 = vmatpush1.bf16.xpose.msra.mxu0 0
        %1665 = vmatprep.subr.bf16.mxu0 0
        %1666 = vmatpush1.bf16.xpose.msra.mxu0 0
        %1667 = vmatprep.subr.bf16.mxu0 0
        %1668 = vmatpush1.bf16.xpose.msra.mxu0 0
        %1669 = vmatprep.subr.bf16.mxu0 0
        %1670 = vmatpush1.bf16.xpose.msra.mxu0 0
        %1671 = vmatprep.subr.bf16.mxu0 0
        %1672 = vmatpush1.bf16.xpose.msra.mxu0 0
        %1673 = vmatprep.subr.bf16.mxu0 0
        %1674 = vmatpush1.bf16.xpose.msra.mxu0 0
        %1675 = vmatprep.subr.bf16.mxu0 0
        %1676 = vmatpush1.bf16.xpose.msra.mxu0 0
        %1677 = vmatprep.subr.bf16.mxu0 0
        %1678 = vmatpush1.bf16.xpose.msra.mxu0 0
        %1679 = vmatprep.subr.bf16.mxu0 0
        %1680 = vmatpush1.bf16.xpose.msra.mxu0 0
        %1681 = vmatprep.subr.bf16.mxu0 0
        %1682 = vmatpush1.bf16.xpose.msra.mxu0 0
        %1683 = vmatprep.subr.bf16.mxu0 0
        %1684 = vmatpush1.bf16.xpose.msra.mxu0 0
        %1685 = vmatprep.subr.bf16.mxu0 0
        %1686 = vmatpush1.bf16.xpose.msra.mxu0 0
        %1687 = vmatprep.subr.bf16.mxu0 0
        %1688 = vmatpush1.bf16.xpose.msra.mxu0 0
        %1689 = vmatprep.mubr.bf16.mxu0 0
        %1690 = vmatmul.mubr.bf16.gmra.mrb[0].mxu0 %v1652
        %v1691 = vpop.f32.mrb[0].mxu0
        %v1692 = vadd.f32 0.0, %v1691
        %v1693 = vpop.f32.mrb[0].mxu0
        %v1694 = vpop.f32.mrb[0].mxu0
        %v1695 = vpop.f32.mrb[0].mxu0
        %1696 = vdwg.mxu0
        %v1698 = vsel %vm1558, %v1553, 0
        %v1701 = vsel %vm1558, %v1557, 0
        %1703 = vmatprep.subr.bf16.mxu0 0
        %1704 = vmatpush1.bf16.xpose.msra.mxu0 %v1701
        %1705 = vmatprep.subr.bf16.mxu0 0
        %1706 = vmatpush1.bf16.xpose.msra.mxu0 0
        %1707 = vmatprep.subr.bf16.mxu0 0
        %1708 = vmatpush1.bf16.xpose.msra.mxu0 0
        %1709 = vmatprep.subr.bf16.mxu0 0
        %1710 = vmatpush1.bf16.xpose.msra.mxu0 0
        %1711 = vmatprep.subr.bf16.mxu0 0
        %1712 = vmatpush1.bf16.xpose.msra.mxu0 0
        %1713 = vmatprep.subr.bf16.mxu0 0
        %1714 = vmatpush1.bf16.xpose.msra.mxu0 0
        %1715 = vmatprep.subr.bf16.mxu0 0
        %1716 = vmatpush1.bf16.xpose.msra.mxu0 0
        %1717 = vmatprep.subr.bf16.mxu0 0
        %1718 = vmatpush1.bf16.xpose.msra.mxu0 0
        %1719 = vmatprep.subr.bf16.mxu0 0
        %1720 = vmatpush1.bf16.xpose.msra.mxu0 0
        %1721 = vmatprep.subr.bf16.mxu0 0
        %1722 = vmatpush1.bf16.xpose.msra.mxu0 0
        %1723 = vmatprep.subr.bf16.mxu0 0
        %1724 = vmatpush1.bf16.xpose.msra.mxu0 0
        %1725 = vmatprep.subr.bf16.mxu0 0
        %1726 = vmatpush1.bf16.xpose.msra.mxu0 0
        %1727 = vmatprep.subr.bf16.mxu0 0
        %1728 = vmatpush1.bf16.xpose.msra.mxu0 0
        %1729 = vmatprep.subr.bf16.mxu0 0
        %1730 = vmatpush1.bf16.xpose.msra.mxu0 0
        %1731 = vmatprep.subr.bf16.mxu0 0
        %1732 = vmatpush1.bf16.xpose.msra.mxu0 0
        %1733 = vmatprep.subr.bf16.mxu0 0
        %1734 = vmatpush1.bf16.xpose.msra.mxu0 0
        %1735 = vmatprep.mubr.bf16.mxu0 0
        %1736 = vmatmul.mubr.bf16.gmra.mrb[0].mxu0 %v1698
        %v1737 = vpop.f32.mrb[0].mxu0
        %v1738 = vadd.f32 0.0, %v1737
        %v1739 = vpop.f32.mrb[0].mxu0
        %v1740 = vpop.f32.mrb[0].mxu0
        %v1741 = vpop.f32.mrb[0].mxu0
        %1742 = vdwg.mxu0
        %v1743 = vlaneseq
        %v1744 = vshrl.u32 %v1743, 7
        %v1745 = vlaneseq
        %v1746 = vand.u32 %v1745, 127
        %vm1747 = vcmp.ge.s32.totalorder %v1744, %v1746
        %v1748 = vsel %vm1747, 1, 0
        %vm1749 = vcmp.eq.s32.totalorder %v1748, 1
        %v1750 = vsel %vm1749, %v1600, -1e+30
        %v1751 = vsel %vm1749, %v1646, -1e+30
        %v1752 = vsel %vm1749, %v1692, -1e+30
        %v1753 = vsel %vm1749, %v1738, -1e+30
        %v1754 = vsel %vm1558, %v1750, -inf
        %1755 = vmax.xlane.f32.xlu0 %v1754
        %v1756 = vpop.xlane.xlu0 %1755
        %v1757 = vsel %vm1558, %v1751, -inf
        %1758 = vmax.xlane.f32.xlu0 %v1757
        %v1759 = vpop.xlane.xlu0 %1758
        %v1760 = vsel %vm1558, %v1752, -inf
        %1761 = vmax.xlane.f32.xlu0 %v1760
        %v1762 = vpop.xlane.xlu0 %1761
        %v1763 = vsel %vm1558, %v1753, -inf
        %1764 = vmax.xlane.f32.xlu0 %v1763
        %v1765 = vpop.xlane.xlu0 %1764
        %v1766 = vsub.f32 %v1750, %v1756
        %v1767 = vsub.f32 %v1751, %v1759
        %v1768 = vsub.f32 %v1752, %v1762
        %v1769 = vsub.f32 %v1753, %v1765
        %v1770 = vmul.f32 %v1766, 1.442695
        %v1771 = vpow.pop %v1770
        %v1772 = vmul.f32 %v1767, 1.442695
        %v1773 = vpow.pop %v1772
        %v1774 = vmul.f32 %v1768, 1.442695
        %v1775 = vpow.pop %v1774
        %v1776 = vmul.f32 %v1769, 1.442695
        %v1777 = vpow.pop %v1776
        %v1778 = vsel %vm1558, %v1771, 0.0
        %1779 = vadd.xlane.f32.xlu0 %v1778
        %v1780 = vpop.xlane.xlu0 %1779
        %v1781 = vsel %vm1558, %v1773, 0.0
        %1782 = vadd.xlane.f32.xlu0 %v1781
        %v1783 = vpop.xlane.xlu0 %1782
        %v1784 = vsel %vm1558, %v1775, 0.0
        %1785 = vadd.xlane.f32.xlu0 %v1784
        %v1786 = vpop.xlane.xlu0 %1785
        %v1787 = vsel %vm1558, %v1777, 0.0
        %1788 = vadd.xlane.f32.xlu0 %v1787
        %v1789 = vpop.xlane.xlu0 %1788
        %v1790 = vrcp.pop %v1780
        %v1791 = vrcp.pop %v1783
        %v1792 = vrcp.pop %v1786
        %v1793 = vrcp.pop %v1789
        %v1794 = vmul.f32 %v1771, %v1790
        %v1795 = vmul.f32 %v1773, %v1791
        %v1796 = vmul.f32 %v1775, %v1792
        %v1797 = vmul.f32 %v1777, %v1793
        %v1798 = vpack.c.bf16 %v1794, %v1794
        %v1799 = vpack.c.bf16 %v1795, %v1795
        %v1800 = vpack.c.bf16 %v1796, %v1796
        %v1801 = vpack.c.bf16 %v1797, %v1797
        %v1802 = vpack.c.bf16 %v1417, %v1417
        %v1803 = vpack.c.bf16 %v1445, %v1445
        %v1804 = vpack.c.bf16 %v1448, %v1448
        %v1805 = vpack.c.bf16 %v1451, %v1451
        %v1807 = vsel %vm1558, %v1798, 0
        %vm1809 = vcmask 1043456
        %v1811 = vsel %vm1809, %v1802, 0
        %1813 = vmatprep.subr.bf16.mxu0 0
        %1814 = vmatpush1.bf16.msra.mxu0 %v1811
        %1815 = vmatprep.subr.bf16.mxu0 0
        %1816 = vmatpush1.bf16.msra.mxu0 0
        %1817 = vmatprep.subr.bf16.mxu0 0
        %1818 = vmatpush1.bf16.msra.mxu0 0
        %1819 = vmatprep.subr.bf16.mxu0 0
        %1820 = vmatpush1.bf16.msra.mxu0 0
        %1821 = vmatprep.subr.bf16.mxu0 0
        %1822 = vmatpush1.bf16.msra.mxu0 0
        %1823 = vmatprep.subr.bf16.mxu0 0
        %1824 = vmatpush1.bf16.msra.mxu0 0
        %1825 = vmatprep.subr.bf16.mxu0 0
        %1826 = vmatpush1.bf16.msra.mxu0 0
        %1827 = vmatprep.subr.bf16.mxu0 0
        %1828 = vmatpush1.bf16.msra.mxu0 0
        %1829 = vmatprep.subr.bf16.mxu0 0
        %1830 = vmatpush1.bf16.msra.mxu0 0
        %1831 = vmatprep.subr.bf16.mxu0 0
        %1832 = vmatpush1.bf16.msra.mxu0 0
        %1833 = vmatprep.subr.bf16.mxu0 0
        %1834 = vmatpush1.bf16.msra.mxu0 0
        %1835 = vmatprep.subr.bf16.mxu0 0
        %1836 = vmatpush1.bf16.msra.mxu0 0
        %1837 = vmatprep.subr.bf16.mxu0 0
        %1838 = vmatpush1.bf16.msra.mxu0 0
        %1839 = vmatprep.subr.bf16.mxu0 0
        %1840 = vmatpush1.bf16.msra.mxu0 0
        %1841 = vmatprep.subr.bf16.mxu0 0
        %1842 = vmatpush1.bf16.msra.mxu0 0
        %1843 = vmatprep.subr.bf16.mxu0 0
        %1844 = vmatpush1.bf16.msra.mxu0 0
        %1845 = vmatprep.mubr.bf16.mxu0 0
        %1846 = vmatmul.mubr.bf16.gmra.mrb[0].mxu0 %v1807
        %v1847 = vpop.f32.mrb[0].mxu0
        %v1848 = vadd.f32 0.0, %v1847
        %v1849 = vpop.f32.mrb[0].mxu0
        %v1850 = vpop.f32.mrb[0].mxu0
        %v1851 = vpop.f32.mrb[0].mxu0
        %1852 = vdwg.mxu0
        %v1854 = vsel %vm1558, %v1799, 0
        %v1857 = vsel %vm1809, %v1803, 0
        %1859 = vmatprep.subr.bf16.mxu0 0
        %1860 = vmatpush1.bf16.msra.mxu0 %v1857
        %1861 = vmatprep.subr.bf16.mxu0 0
        %1862 = vmatpush1.bf16.msra.mxu0 0
        %1863 = vmatprep.subr.bf16.mxu0 0
        %1864 = vmatpush1.bf16.msra.mxu0 0
        %1865 = vmatprep.subr.bf16.mxu0 0
        %1866 = vmatpush1.bf16.msra.mxu0 0
        %1867 = vmatprep.subr.bf16.mxu0 0
        %1868 = vmatpush1.bf16.msra.mxu0 0
        %1869 = vmatprep.subr.bf16.mxu0 0
        %1870 = vmatpush1.bf16.msra.mxu0 0
        %1871 = vmatprep.subr.bf16.mxu0 0
        %1872 = vmatpush1.bf16.msra.mxu0 0
        %1873 = vmatprep.subr.bf16.mxu0 0
        %1874 = vmatpush1.bf16.msra.mxu0 0
        %1875 = vmatprep.subr.bf16.mxu0 0
        %1876 = vmatpush1.bf16.msra.mxu0 0
        %1877 = vmatprep.subr.bf16.mxu0 0
        %1878 = vmatpush1.bf16.msra.mxu0 0
        %1879 = vmatprep.subr.bf16.mxu0 0
        %1880 = vmatpush1.bf16.msra.mxu0 0
        %1881 = vmatprep.subr.bf16.mxu0 0
        %1882 = vmatpush1.bf16.msra.mxu0 0
        %1883 = vmatprep.subr.bf16.mxu0 0
        %1884 = vmatpush1.bf16.msra.mxu0 0
        %1885 = vmatprep.subr.bf16.mxu0 0
        %1886 = vmatpush1.bf16.msra.mxu0 0
        %1887 = vmatprep.subr.bf16.mxu0 0
        %1888 = vmatpush1.bf16.msra.mxu0 0
        %1889 = vmatprep.subr.bf16.mxu0 0
        %1890 = vmatpush1.bf16.msra.mxu0 0
        %1891 = vmatprep.mubr.bf16.mxu0 0
        %1892 = vmatmul.mubr.bf16.gmra.mrb[0].mxu0 %v1854
        %v1893 = vpop.f32.mrb[0].mxu0
        %v1894 = vadd.f32 0.0, %v1893
        %v1895 = vpop.f32.mrb[0].mxu0
        %v1896 = vpop.f32.mrb[0].mxu0
        %v1897 = vpop.f32.mrb[0].mxu0
        %1898 = vdwg.mxu0
        %v1900 = vsel %vm1558, %v1800, 0
        %v1903 = vsel %vm1809, %v1804, 0
        %1905 = vmatprep.subr.bf16.mxu0 0
        %1906 = vmatpush1.bf16.msra.mxu0 %v1903
        %1907 = vmatprep.subr.bf16.mxu0 0
        %1908 = vmatpush1.bf16.msra.mxu0 0
        %1909 = vmatprep.subr.bf16.mxu0 0
        %1910 = vmatpush1.bf16.msra.mxu0 0
        %1911 = vmatprep.subr.bf16.mxu0 0
        %1912 = vmatpush1.bf16.msra.mxu0 0
        %1913 = vmatprep.subr.bf16.mxu0 0
        %1914 = vmatpush1.bf16.msra.mxu0 0
        %1915 = vmatprep.subr.bf16.mxu0 0
        %1916 = vmatpush1.bf16.msra.mxu0 0
        %1917 = vmatprep.subr.bf16.mxu0 0
        %1918 = vmatpush1.bf16.msra.mxu0 0
        %1919 = vmatprep.subr.bf16.mxu0 0
        %1920 = vmatpush1.bf16.msra.mxu0 0
        %1921 = vmatprep.subr.bf16.mxu0 0
        %1922 = vmatpush1.bf16.msra.mxu0 0
        %1923 = vmatprep.subr.bf16.mxu0 0
        %1924 = vmatpush1.bf16.msra.mxu0 0
        %1925 = vmatprep.subr.bf16.mxu0 0
        %1926 = vmatpush1.bf16.msra.mxu0 0
        %1927 = vmatprep.subr.bf16.mxu0 0
        %1928 = vmatpush1.bf16.msra.mxu0 0
        %1929 = vmatprep.subr.bf16.mxu0 0
        %1930 = vmatpush1.bf16.msra.mxu0 0
        %1931 = vmatprep.subr.bf16.mxu0 0
        %1932 = vmatpush1.bf16.msra.mxu0 0
        %1933 = vmatprep.subr.bf16.mxu0 0
        %1934 = vmatpush1.bf16.msra.mxu0 0
        %1935 = vmatprep.subr.bf16.mxu0 0
        %1936 = vmatpush1.bf16.msra.mxu0 0
        %1937 = vmatprep.mubr.bf16.mxu0 0
        %1938 = vmatmul.mubr.bf16.gmra.mrb[0].mxu0 %v1900
        %v1939 = vpop.f32.mrb[0].mxu0
        %v1940 = vadd.f32 0.0, %v1939
        %v1941 = vpop.f32.mrb[0].mxu0
        %v1942 = vpop.f32.mrb[0].mxu0
        %v1943 = vpop.f32.mrb[0].mxu0
        %1944 = vdwg.mxu0
        %v1946 = vsel %vm1558, %v1801, 0
        %v1949 = vsel %vm1809, %v1805, 0
        %1951 = vmatprep.subr.bf16.mxu0 0
        %1952 = vmatpush1.bf16.msra.mxu0 %v1949
        %1953 = vmatprep.subr.bf16.mxu0 0
        %1954 = vmatpush1.bf16.msra.mxu0 0
        %1955 = vmatprep.subr.bf16.mxu0 0
        %1956 = vmatpush1.bf16.msra.mxu0 0
        %1957 = vmatprep.subr.bf16.mxu0 0
        %1958 = vmatpush1.bf16.msra.mxu0 0
        %1959 = vmatprep.subr.bf16.mxu0 0
        %1960 = vmatpush1.bf16.msra.mxu0 0
        %1961 = vmatprep.subr.bf16.mxu0 0
        %1962 = vmatpush1.bf16.msra.mxu0 0
        %1963 = vmatprep.subr.bf16.mxu0 0
        %1964 = vmatpush1.bf16.msra.mxu0 0
        %1965 = vmatprep.subr.bf16.mxu0 0
        %1966 = vmatpush1.bf16.msra.mxu0 0
        %1967 = vmatprep.subr.bf16.mxu0 0
        %1968 = vmatpush1.bf16.msra.mxu0 0
        %1969 = vmatprep.subr.bf16.mxu0 0
        %1970 = vmatpush1.bf16.msra.mxu0 0
        %1971 = vmatprep.subr.bf16.mxu0 0
        %1972 = vmatpush1.bf16.msra.mxu0 0
        %1973 = vmatprep.subr.bf16.mxu0 0
        %1974 = vmatpush1.bf16.msra.mxu0 0
        %1975 = vmatprep.subr.bf16.mxu0 0
        %1976 = vmatpush1.bf16.msra.mxu0 0
        %1977 = vmatprep.subr.bf16.mxu0 0
        %1978 = vmatpush1.bf16.msra.mxu0 0
        %1979 = vmatprep.subr.bf16.mxu0 0
        %1980 = vmatpush1.bf16.msra.mxu0 0
        %1981 = vmatprep.subr.bf16.mxu0 0
        %1982 = vmatpush1.bf16.msra.mxu0 0
        %1983 = vmatprep.mubr.bf16.mxu0 0
        %1984 = vmatmul.mubr.bf16.gmra.mrb[0].mxu0 %v1946
        %v1985 = vpop.f32.mrb[0].mxu0
        %v1986 = vadd.f32 0.0, %v1985
        %v1987 = vpop.f32.mrb[0].mxu0
        %v1988 = vpop.f32.mrb[0].mxu0
        %v1989 = vpop.f32.mrb[0].mxu0
        %1990 = vdwg.mxu0
        %1992 = vrot.lane.b32.xlu0 %v1894, 8
        %v1993 = vpop.permute.xlu0 %1992
        %1996 = vrot.lane.b32.xlu0 %v1940, 16
        %v1997 = vpop.permute.xlu0 %1996
        %2000 = vrot.lane.b32.xlu0 %v1986, 24
        %v2001 = vpop.permute.xlu0 %2000
        %v2003 = vsel %vm1558, %v1848, %v1993
        %vm2004 = vcmask 130048
        %v2005 = vsel %vm2004, %v2003, %v1997
        %vm2006 = vcmask 195584
        %v2007 = vsel %vm2006, %v2005, %v2001
        %v2008 = vpack.c.bf16 %v2007, %v2007
        %v2009 = vld [vmem:[%s1176] sm:$0xf]
        %v2010 = vld [vmem:[%s1176 + $0x4] sm:$0xf]
        %v2011 = vld [vmem:[%s1176 + $0x8] sm:$0xf]
        %v2012 = vld [vmem:[%s1176 + $0xc] sm:$0xf]
        %v2017 = vunpack.c.l.b16 %v2009
        %v2018 = vunpack.c.l.b16 %v2010
        %v2019 = vunpack.c.l.b16 %v2011
        %v2020 = vunpack.c.l.b16 %v2012
        %v2021 = vpack.c.b16 %v2018, %v2017
        %v2022 = vpack.c.b16 %v2020, %v2019
        %v2026 = vsel %vm1221, %v2008, 0
        %2028 = vmatprep.subr.bf16.mxu0 0
        %2029 = vmatpush1.bf16.msra.mxu0 %v2021
        %2030 = vmatprep.subr.bf16.mxu0 0
        %2031 = vmatpush1.bf16.msra.mxu0 %v2022
        %2032 = vmatprep.subr.bf16.mxu0 0
        %2033 = vmatpush1.bf16.msra.mxu0 0
        %2034 = vmatprep.subr.bf16.mxu0 0
        %2035 = vmatpush1.bf16.msra.mxu0 0
        %2036 = vmatprep.subr.bf16.mxu0 0
        %2037 = vmatpush1.bf16.msra.mxu0 0
        %2038 = vmatprep.subr.bf16.mxu0 0
        %2039 = vmatpush1.bf16.msra.mxu0 0
        %2040 = vmatprep.subr.bf16.mxu0 0
        %2041 = vmatpush1.bf16.msra.mxu0 0
        %2042 = vmatprep.subr.bf16.mxu0 0
        %2043 = vmatpush1.bf16.msra.mxu0 0
        %2044 = vmatprep.subr.bf16.mxu0 0
        %2045 = vmatpush1.bf16.msra.mxu0 0
        %2046 = vmatprep.subr.bf16.mxu0 0
        %2047 = vmatpush1.bf16.msra.mxu0 0
        %2048 = vmatprep.subr.bf16.mxu0 0
        %2049 = vmatpush1.bf16.msra.mxu0 0
        %2050 = vmatprep.subr.bf16.mxu0 0
        %2051 = vmatpush1.bf16.msra.mxu0 0
        %2052 = vmatprep.subr.bf16.mxu0 0
        %2053 = vmatpush1.bf16.msra.mxu0 0
        %2054 = vmatprep.subr.bf16.mxu0 0
        %2055 = vmatpush1.bf16.msra.mxu0 0
        %2056 = vmatprep.subr.bf16.mxu0 0
        %2057 = vmatpush1.bf16.msra.mxu0 0
        %2058 = vmatprep.subr.bf16.mxu0 0
        %2059 = vmatpush1.bf16.msra.mxu0 0
        %2060 = vmatprep.mubr.bf16.mxu0 0
        %2061 = vmatmul.mubr.bf16.gmra.mrb[0].mxu0 %v2026
        %v2062 = vpop.f32.mrb[0].mxu0
        %v2063 = vadd.f32 %v1215, %v2062
        %v2064 = vpop.f32.mrb[0].mxu0
        %v2065 = vpop.f32.mrb[0].mxu0
        %v2066 = vpop.f32.mrb[0].mxu0
        %2067 = vdwg.mxu0
        %v2068 = vld [vmem:[%s965] sm:$0x1]
        %v2069 = vld [vmem:[%s973] sm:$0x1]
        %v2070 = vsel %vm1221, %v2063, 0.0
        %2071 = vadd.xlane.f32.xlu0 %v2070
        %v2072 = vpop.xlane.xlu0 %2071
        %v2073 = vmul.f32 %v2072, %v1225
        %v2074 = vsub.f32 %v2063, %v2073
        %v2075 = vmul.f32 %v2074, %v2074
        %v2076 = vsel %vm1221, %v2075, 0.0
        %2077 = vadd.xlane.f32.xlu0 %v2076
        %v2078 = vpop.xlane.xlu0 %2077
        %v2079 = vmul.f32 %v2078, %v1225
        %v2080 = vadd.f32 %v2079, 1e-05
        %v2081 = vrsqrt.pop %v2080
        %v2082 = vmul.f32 %v2074, %v2081
        %v2084 = vlaneseq
        %v2085 = vshrl.u32 %v2084, 7
        %v2086 = vsub.s32 0, %v2085
        %v2087 = vrot.slane %v2068, %v2086
        %v2089 = vmul.f32 %v2082, %v2087
        %v2091 = vlaneseq
        %v2092 = vshrl.u32 %v2091, 7
        %v2093 = vsub.s32 0, %v2092
        %v2094 = vrot.slane %v2069, %v2093
        %v2096 = vadd.f32 %v2089, %v2094
        %v2097 = vpack.c.bf16 %v2096, %v2096
        %v2098 = vld [vmem:[%s1181] sm:$0xf]
        %v2099 = vld [vmem:[%s1181 + $0x4] sm:$0xf]
        %v2100 = vld [vmem:[%s1181 + $0x8] sm:$0xf]
        %v2101 = vld [vmem:[%s1181 + $0xc] sm:$0xf]
        %v2106 = vunpack.c.l.b16 %v2098
        %v2107 = vunpack.c.l.b16 %v2099
        %v2108 = vunpack.c.l.b16 %v2100
        %v2109 = vunpack.c.l.b16 %v2101
        %v2110 = vpack.c.b16 %v2107, %v2106
        %v2111 = vpack.c.b16 %v2109, %v2108
        %v2115 = vsel %vm1221, %v2097, 0
        %2117 = vmatprep.subr.bf16.mxu0 0
        %2118 = vmatpush1.bf16.msra.mxu0 %v2110
        %2119 = vmatprep.subr.bf16.mxu0 0
        %2120 = vmatpush1.bf16.msra.mxu0 %v2111
        %2121 = vmatprep.subr.bf16.mxu0 0
        %2122 = vmatpush1.bf16.msra.mxu0 0
        %2123 = vmatprep.subr.bf16.mxu0 0
        %2124 = vmatpush1.bf16.msra.mxu0 0
        %2125 = vmatprep.subr.bf16.mxu0 0
        %2126 = vmatpush1.bf16.msra.mxu0 0
        %2127 = vmatprep.subr.bf16.mxu0 0
        %2128 = vmatpush1.bf16.msra.mxu0 0
        %2129 = vmatprep.subr.bf16.mxu0 0
        %2130 = vmatpush1.bf16.msra.mxu0 0
        %2131 = vmatprep.subr.bf16.mxu0 0
        %2132 = vmatpush1.bf16.msra.mxu0 0
        %2133 = vmatprep.subr.bf16.mxu0 0
        %2134 = vmatpush1.bf16.msra.mxu0 0
        %2135 = vmatprep.subr.bf16.mxu0 0
        %2136 = vmatpush1.bf16.msra.mxu0 0
        %2137 = vmatprep.subr.bf16.mxu0 0
        %2138 = vmatpush1.bf16.msra.mxu0 0
        %2139 = vmatprep.subr.bf16.mxu0 0
        %2140 = vmatpush1.bf16.msra.mxu0 0
        %2141 = vmatprep.subr.bf16.mxu0 0
        %2142 = vmatpush1.bf16.msra.mxu0 0
        %2143 = vmatprep.subr.bf16.mxu0 0
        %2144 = vmatpush1.bf16.msra.mxu0 0
        %2145 = vmatprep.subr.bf16.mxu0 0
        %2146 = vmatpush1.bf16.msra.mxu0 0
        %2147 = vmatprep.subr.bf16.mxu0 0
        %2148 = vmatpush1.bf16.msra.mxu0 0
        %2149 = vmatprep.mubr.bf16.mxu0 0
        %2150 = vmatmul.mubr.bf16.gmra.mrb[0].mxu0 %v2115
        %v2151 = vpop.f32.mrb[0].mxu0
        %v2152 = vadd.f32 0.0, %v2151
        %v2153 = vpop.f32.mrb[0].mxu0
        %v2154 = vpop.f32.mrb[0].mxu0
        %v2155 = vpop.f32.mrb[0].mxu0
        %2156 = vdwg.mxu0
        %v2157 = vld [vmem:[%s1186] sm:$0xf]
        %v2158 = vld [vmem:[%s1186 + $0x4] sm:$0xf]
        %v2159 = vld [vmem:[%s1186 + $0x8] sm:$0xf]
        %v2160 = vld [vmem:[%s1186 + $0xc] sm:$0xf]
        %v2165 = vunpack.c.l.b16 %v2157
        %v2166 = vunpack.c.l.b16 %v2158
        %v2167 = vunpack.c.l.b16 %v2159
        %v2168 = vunpack.c.l.b16 %v2160
        %v2169 = vpack.c.b16 %v2166, %v2165
        %v2170 = vpack.c.b16 %v2168, %v2167
        %v2174 = vsel %vm1221, %v1216, 0
        %2176 = vmatprep.subr.bf16.mxu0 0
        %2177 = vmatpush1.bf16.msra.mxu0 %v2169
        %2178 = vmatprep.subr.bf16.mxu0 0
        %2179 = vmatpush1.bf16.msra.mxu0 %v2170
        %2180 = vmatprep.subr.bf16.mxu0 0
        %2181 = vmatpush1.bf16.msra.mxu0 0
        %2182 = vmatprep.subr.bf16.mxu0 0
        %2183 = vmatpush1.bf16.msra.mxu0 0
        %2184 = vmatprep.subr.bf16.mxu0 0
        %2185 = vmatpush1.bf16.msra.mxu0 0
        %2186 = vmatprep.subr.bf16.mxu0 0
        %2187 = vmatpush1.bf16.msra.mxu0 0
        %2188 = vmatprep.subr.bf16.mxu0 0
        %2189 = vmatpush1.bf16.msra.mxu0 0
        %2190 = vmatprep.subr.bf16.mxu0 0
        %2191 = vmatpush1.bf16.msra.mxu0 0
        %2192 = vmatprep.subr.bf16.mxu0 0
        %2193 = vmatpush1.bf16.msra.mxu0 0
        %2194 = vmatprep.subr.bf16.mxu0 0
        %2195 = vmatpush1.bf16.msra.mxu0 0
        %2196 = vmatprep.subr.bf16.mxu0 0
        %2197 = vmatpush1.bf16.msra.mxu0 0
        %2198 = vmatprep.subr.bf16.mxu0 0
        %2199 = vmatpush1.bf16.msra.mxu0 0
        %2200 = vmatprep.subr.bf16.mxu0 0
        %2201 = vmatpush1.bf16.msra.mxu0 0
        %2202 = vmatprep.subr.bf16.mxu0 0
        %2203 = vmatpush1.bf16.msra.mxu0 0
        %2204 = vmatprep.subr.bf16.mxu0 0
        %2205 = vmatpush1.bf16.msra.mxu0 0
        %2206 = vmatprep.subr.bf16.mxu0 0
        %2207 = vmatpush1.bf16.msra.mxu0 0
        %2208 = vmatprep.mubr.bf16.mxu0 0
        %2209 = vmatmul.mubr.bf16.gmra.mrb[0].mxu0 %v2174
        %v2210 = vpop.f32.mrb[0].mxu0
        %v2211 = vadd.f32 0.0, %v2210
        %v2212 = vpop.f32.mrb[0].mxu0
        %v2213 = vpop.f32.mrb[0].mxu0
        %v2214 = vpop.f32.mrb[0].mxu0
        %2215 = vdwg.mxu0
        %v2216 = vld [vmem:[%s1191] sm:$0xf]
        %v2217 = vld [vmem:[%s1191 + $0x4] sm:$0xf]
        %v2218 = vld [vmem:[%s1191 + $0x8] sm:$0xf]
        %v2219 = vld [vmem:[%s1191 + $0xc] sm:$0xf]
        %v2224 = vunpack.c.l.b16 %v2216
        %v2225 = vunpack.c.l.b16 %v2217
        %v2226 = vunpack.c.l.b16 %v2218
        %v2227 = vunpack.c.l.b16 %v2219
        %v2228 = vpack.c.b16 %v2225, %v2224
        %v2229 = vpack.c.b16 %v2227, %v2226
        %2232 = vmatprep.subr.bf16.mxu0 0
        %2233 = vmatpush1.bf16.msra.mxu0 %v2228
        %2234 = vmatprep.subr.bf16.mxu0 0
        %2235 = vmatpush1.bf16.msra.mxu0 %v2229
        %2236 = vmatprep.subr.bf16.mxu0 0
        %2237 = vmatpush1.bf16.msra.mxu0 0
        %2238 = vmatprep.subr.bf16.mxu0 0
        %2239 = vmatpush1.bf16.msra.mxu0 0
        %2240 = vmatprep.subr.bf16.mxu0 0
        %2241 = vmatpush1.bf16.msra.mxu0 0
        %2242 = vmatprep.subr.bf16.mxu0 0
        %2243 = vmatpush1.bf16.msra.mxu0 0
        %2244 = vmatprep.subr.bf16.mxu0 0
        %2245 = vmatpush1.bf16.msra.mxu0 0
        %2246 = vmatprep.subr.bf16.mxu0 0
        %2247 = vmatpush1.bf16.msra.mxu0 0
        %2248 = vmatprep.subr.bf16.mxu0 0
        %2249 = vmatpush1.bf16.msra.mxu0 0
        %2250 = vmatprep.subr.bf16.mxu0 0
        %2251 = vmatpush1.bf16.msra.mxu0 0
        %2252 = vmatprep.subr.bf16.mxu0 0
        %2253 = vmatpush1.bf16.msra.mxu0 0
        %2254 = vmatprep.subr.bf16.mxu0 0
        %2255 = vmatpush1.bf16.msra.mxu0 0
        %2256 = vmatprep.subr.bf16.mxu0 0
        %2257 = vmatpush1.bf16.msra.mxu0 0
        %2258 = vmatprep.subr.bf16.mxu0 0
        %2259 = vmatpush1.bf16.msra.mxu0 0
        %2260 = vmatprep.subr.bf16.mxu0 0
        %2261 = vmatpush1.bf16.msra.mxu0 0
        %2262 = vmatprep.subr.bf16.mxu0 0
        %2263 = vmatpush1.bf16.msra.mxu0 0
        %2264 = vmatprep.mubr.bf16.mxu0 0
        %2265 = vmatmul.mubr.bf16.gmra.mrb[0].mxu0 %v2174
        %v2266 = vpop.f32.mrb[0].mxu0
        %v2267 = vadd.f32 0.0, %v2266
        %v2268 = vpop.f32.mrb[0].mxu0
        %v2269 = vpop.f32.mrb[0].mxu0
        %v2270 = vpop.f32.mrb[0].mxu0
        %2271 = vdwg.mxu0
        %v2272 = vmul.f32 %v2152, 0.35355338
        %2274 = vrot.lane.b32.xlu0 %v2272, 120
        %v2275 = vpop.permute.xlu0 %2274
        %2277 = vrot.lane.b32.xlu0 %v2272, 112
        %v2278 = vpop.permute.xlu0 %2277
        %2280 = vrot.lane.b32.xlu0 %v2272, 104
        %v2281 = vpop.permute.xlu0 %2280
        %2284 = vrot.lane.b32.xlu0 %v2211, 120
        %v2285 = vpop.permute.xlu0 %2284
        %2287 = vrot.lane.b32.xlu0 %v2211, 112
        %v2288 = vpop.permute.xlu0 %2287
        %2290 = vrot.lane.b32.xlu0 %v2211, 104
        %v2291 = vpop.permute.xlu0 %2290
        %2294 = vrot.lane.b32.xlu0 %v2267, 120
        %v2295 = vpop.permute.xlu0 %2294
        %2297 = vrot.lane.b32.xlu0 %v2267, 112
        %v2298 = vpop.permute.xlu0 %2297
        %2300 = vrot.lane.b32.xlu0 %v2267, 104
        %v2301 = vpop.permute.xlu0 %2300
        %v2303 = vpack.c.bf16 %v2272, %v2272
        %v2304 = vpack.c.bf16 %v2275, %v2275
        %v2305 = vpack.c.bf16 %v2278, %v2278
        %v2306 = vpack.c.bf16 %v2281, %v2281
        %v2307 = vpack.c.bf16 %v2211, %v2211
        %v2308 = vpack.c.bf16 %v2285, %v2285
        %v2309 = vpack.c.bf16 %v2288, %v2288
        %v2310 = vpack.c.bf16 %v2291, %v2291
        %v2312 = vsel %vm1558, %v2303, 0
        %v2315 = vsel %vm1558, %v2307, 0
        %2317 = vmatprep.subr.bf16.mxu0 0
        %2318 = vmatpush1.bf16.xpose.msra.mxu0 %v2315
        %2319 = vmatprep.subr.bf16.mxu0 0
        %2320 = vmatpush1.bf16.xpose.msra.mxu0 0
        %2321 = vmatprep.subr.bf16.mxu0 0
        %2322 = vmatpush1.bf16.xpose.msra.mxu0 0
        %2323 = vmatprep.subr.bf16.mxu0 0
        %2324 = vmatpush1.bf16.xpose.msra.mxu0 0
        %2325 = vmatprep.subr.bf16.mxu0 0
        %2326 = vmatpush1.bf16.xpose.msra.mxu0 0
        %2327 = vmatprep.subr.bf16.mxu0 0
        %2328 = vmatpush1.bf16.xpose.msra.mxu0 0
        %2329 = vmatprep.subr.bf16.mxu0 0
        %2330 = vmatpush1.bf16.xpose.msra.mxu0 0
        %2331 = vmatprep.subr.bf16.mxu0 0
        %2332 = vmatpush1.bf16.xpose.msra.mxu0 0
        %2333 = vmatprep.subr.bf16.mxu0 0
        %2334 = vmatpush1.bf16.xpose.msra.mxu0 0
        %2335 = vmatprep.subr.bf16.mxu0 0
        %2336 = vmatpush1.bf16.xpose.msra.mxu0 0
        %2337 = vmatprep.subr.bf16.mxu0 0
        %2338 = vmatpush1.bf16.xpose.msra.mxu0 0
        %2339 = vmatprep.subr.bf16.mxu0 0
        %2340 = vmatpush1.bf16.xpose.msra.mxu0 0
        %2341 = vmatprep.subr.bf16.mxu0 0
        %2342 = vmatpush1.bf16.xpose.msra.mxu0 0
        %2343 = vmatprep.subr.bf16.mxu0 0
        %2344 = vmatpush1.bf16.xpose.msra.mxu0 0
        %2345 = vmatprep.subr.bf16.mxu0 0
        %2346 = vmatpush1.bf16.xpose.msra.mxu0 0
        %2347 = vmatprep.subr.bf16.mxu0 0
        %2348 = vmatpush1.bf16.xpose.msra.mxu0 0
        %2349 = vmatprep.mubr.bf16.mxu0 0
        %2350 = vmatmul.mubr.bf16.gmra.mrb[0].mxu0 %v2312
        %v2351 = vpop.f32.mrb[0].mxu0
        %v2352 = vadd.f32 0.0, %v2351
        %v2353 = vpop.f32.mrb[0].mxu0
        %v2354 = vpop.f32.mrb[0].mxu0
        %v2355 = vpop.f32.mrb[0].mxu0
        %2356 = vdwg.mxu0
        %v2358 = vsel %vm1558, %v2304, 0
        %v2361 = vsel %vm1558, %v2308, 0
        %2363 = vmatprep.subr.bf16.mxu0 0
        %2364 = vmatpush1.bf16.xpose.msra.mxu0 %v2361
        %2365 = vmatprep.subr.bf16.mxu0 0
        %2366 = vmatpush1.bf16.xpose.msra.mxu0 0
        %2367 = vmatprep.subr.bf16.mxu0 0
        %2368 = vmatpush1.bf16.xpose.msra.mxu0 0
        %2369 = vmatprep.subr.bf16.mxu0 0
        %2370 = vmatpush1.bf16.xpose.msra.mxu0 0
        %2371 = vmatprep.subr.bf16.mxu0 0
        %2372 = vmatpush1.bf16.xpose.msra.mxu0 0
        %2373 = vmatprep.subr.bf16.mxu0 0
        %2374 = vmatpush1.bf16.xpose.msra.mxu0 0
        %2375 = vmatprep.subr.bf16.mxu0 0
        %2376 = vmatpush1.bf16.xpose.msra.mxu0 0
        %2377 = vmatprep.subr.bf16.mxu0 0
        %2378 = vmatpush1.bf16.xpose.msra.mxu0 0
        %2379 = vmatprep.subr.bf16.mxu0 0
        %2380 = vmatpush1.bf16.xpose.msra.mxu0 0
        %2381 = vmatprep.subr.bf16.mxu0 0
        %2382 = vmatpush1.bf16.xpose.msra.mxu0 0
        %2383 = vmatprep.subr.bf16.mxu0 0
        %2384 = vmatpush1.bf16.xpose.msra.mxu0 0
        %2385 = vmatprep.subr.bf16.mxu0 0
        %2386 = vmatpush1.bf16.xpose.msra.mxu0 0
        %2387 = vmatprep.subr.bf16.mxu0 0
        %2388 = vmatpush1.bf16.xpose.msra.mxu0 0
        %2389 = vmatprep.subr.bf16.mxu0 0
        %2390 = vmatpush1.bf16.xpose.msra.mxu0 0
        %2391 = vmatprep.subr.bf16.mxu0 0
        %2392 = vmatpush1.bf16.xpose.msra.mxu0 0
        %2393 = vmatprep.subr.bf16.mxu0 0
        %2394 = vmatpush1.bf16.xpose.msra.mxu0 0
        %2395 = vmatprep.mubr.bf16.mxu0 0
        %2396 = vmatmul.mubr.bf16.gmra.mrb[0].mxu0 %v2358
        %v2397 = vpop.f32.mrb[0].mxu0
        %v2398 = vadd.f32 0.0, %v2397
        %v2399 = vpop.f32.mrb[0].mxu0
        %v2400 = vpop.f32.mrb[0].mxu0
        %v2401 = vpop.f32.mrb[0].mxu0
        %2402 = vdwg.mxu0
        %v2404 = vsel %vm1558, %v2305, 0
        %v2407 = vsel %vm1558, %v2309, 0
        %2409 = vmatprep.subr.bf16.mxu0 0
        %2410 = vmatpush1.bf16.xpose.msra.mxu0 %v2407
        %2411 = vmatprep.subr.bf16.mxu0 0
        %2412 = vmatpush1.bf16.xpose.msra.mxu0 0
        %2413 = vmatprep.subr.bf16.mxu0 0
        %2414 = vmatpush1.bf16.xpose.msra.mxu0 0
        %2415 = vmatprep.subr.bf16.mxu0 0
        %2416 = vmatpush1.bf16.xpose.msra.mxu0 0
        %2417 = vmatprep.subr.bf16.mxu0 0
        %2418 = vmatpush1.bf16.xpose.msra.mxu0 0
        %2419 = vmatprep.subr.bf16.mxu0 0
        %2420 = vmatpush1.bf16.xpose.msra.mxu0 0
        %2421 = vmatprep.subr.bf16.mxu0 0
        %2422 = vmatpush1.bf16.xpose.msra.mxu0 0
        %2423 = vmatprep.subr.bf16.mxu0 0
        %2424 = vmatpush1.bf16.xpose.msra.mxu0 0
        %2425 = vmatprep.subr.bf16.mxu0 0
        %2426 = vmatpush1.bf16.xpose.msra.mxu0 0
        %2427 = vmatprep.subr.bf16.mxu0 0
        %2428 = vmatpush1.bf16.xpose.msra.mxu0 0
        %2429 = vmatprep.subr.bf16.mxu0 0
        %2430 = vmatpush1.bf16.xpose.msra.mxu0 0
        %2431 = vmatprep.subr.bf16.mxu0 0
        %2432 = vmatpush1.bf16.xpose.msra.mxu0 0
        %2433 = vmatprep.subr.bf16.mxu0 0
        %2434 = vmatpush1.bf16.xpose.msra.mxu0 0
        %2435 = vmatprep.subr.bf16.mxu0 0
        %2436 = vmatpush1.bf16.xpose.msra.mxu0 0
        %2437 = vmatprep.subr.bf16.mxu0 0
        %2438 = vmatpush1.bf16.xpose.msra.mxu0 0
        %2439 = vmatprep.subr.bf16.mxu0 0
        %2440 = vmatpush1.bf16.xpose.msra.mxu0 0
        %2441 = vmatprep.mubr.bf16.mxu0 0
        %2442 = vmatmul.mubr.bf16.gmra.mrb[0].mxu0 %v2404
        %v2443 = vpop.f32.mrb[0].mxu0
        %v2444 = vadd.f32 0.0, %v2443
        %v2445 = vpop.f32.mrb[0].mxu0
        %v2446 = vpop.f32.mrb[0].mxu0
        %v2447 = vpop.f32.mrb[0].mxu0
        %2448 = vdwg.mxu0
        %v2450 = vsel %vm1558, %v2306, 0
        %v2453 = vsel %vm1558, %v2310, 0
        %2455 = vmatprep.subr.bf16.mxu0 0
        %2456 = vmatpush1.bf16.xpose.msra.mxu0 %v2453
        %2457 = vmatprep.subr.bf16.mxu0 0
        %2458 = vmatpush1.bf16.xpose.msra.mxu0 0
        %2459 = vmatprep.subr.bf16.mxu0 0
        %2460 = vmatpush1.bf16.xpose.msra.mxu0 0
        %2461 = vmatprep.subr.bf16.mxu0 0
        %2462 = vmatpush1.bf16.xpose.msra.mxu0 0
        %2463 = vmatprep.subr.bf16.mxu0 0
        %2464 = vmatpush1.bf16.xpose.msra.mxu0 0
        %2465 = vmatprep.subr.bf16.mxu0 0
        %2466 = vmatpush1.bf16.xpose.msra.mxu0 0
        %2467 = vmatprep.subr.bf16.mxu0 0
        %2468 = vmatpush1.bf16.xpose.msra.mxu0 0
        %2469 = vmatprep.subr.bf16.mxu0 0
        %2470 = vmatpush1.bf16.xpose.msra.mxu0 0
        %2471 = vmatprep.subr.bf16.mxu0 0
        %2472 = vmatpush1.bf16.xpose.msra.mxu0 0
        %2473 = vmatprep.subr.bf16.mxu0 0
        %2474 = vmatpush1.bf16.xpose.msra.mxu0 0
        %2475 = vmatprep.subr.bf16.mxu0 0
        %2476 = vmatpush1.bf16.xpose.msra.mxu0 0
        %2477 = vmatprep.subr.bf16.mxu0 0
        %2478 = vmatpush1.bf16.xpose.msra.mxu0 0
        %2479 = vmatprep.subr.bf16.mxu0 0
        %2480 = vmatpush1.bf16.xpose.msra.mxu0 0
        %2481 = vmatprep.subr.bf16.mxu0 0
        %2482 = vmatpush1.bf16.xpose.msra.mxu0 0
        %2483 = vmatprep.subr.bf16.mxu0 0
        %2484 = vmatpush1.bf16.xpose.msra.mxu0 0
        %2485 = vmatprep.subr.bf16.mxu0 0
        %2486 = vmatpush1.bf16.xpose.msra.mxu0 0
        %2487 = vmatprep.mubr.bf16.mxu0 0
        %2488 = vmatmul.mubr.bf16.gmra.mrb[0].mxu0 %v2450
        %v2489 = vpop.f32.mrb[0].mxu0
        %v2490 = vadd.f32 0.0, %v2489
        %v2491 = vpop.f32.mrb[0].mxu0
        %v2492 = vpop.f32.mrb[0].mxu0
        %v2493 = vpop.f32.mrb[0].mxu0
        %2494 = vdwg.mxu0
        %v2495 = vsel %vm1558, %v2352, -inf
        %2496 = vmax.xlane.f32.xlu0 %v2495
        %v2497 = vpop.xlane.xlu0 %2496
        %v2498 = vsel %vm1558, %v2398, -inf
        %2499 = vmax.xlane.f32.xlu0 %v2498
        %v2500 = vpop.xlane.xlu0 %2499
        %v2501 = vsel %vm1558, %v2444, -inf
        %2502 = vmax.xlane.f32.xlu0 %v2501
        %v2503 = vpop.xlane.xlu0 %2502
        %v2504 = vsel %vm1558, %v2490, -inf
        %2505 = vmax.xlane.f32.xlu0 %v2504
        %v2506 = vpop.xlane.xlu0 %2505
        %v2507 = vsub.f32 %v2352, %v2497
        %v2508 = vsub.f32 %v2398, %v2500
        %v2509 = vsub.f32 %v2444, %v2503
        %v2510 = vsub.f32 %v2490, %v2506
        %v2511 = vmul.f32 %v2507, 1.442695
        %v2512 = vpow.pop %v2511
        %v2513 = vmul.f32 %v2508, 1.442695
        %v2514 = vpow.pop %v2513
        %v2515 = vmul.f32 %v2509, 1.442695
        %v2516 = vpow.pop %v2515
        %v2517 = vmul.f32 %v2510, 1.442695
        %v2518 = vpow.pop %v2517
        %v2519 = vsel %vm1558, %v2512, 0.0
        %2520 = vadd.xlane.f32.xlu0 %v2519
        %v2521 = vpop.xlane.xlu0 %2520
        %v2522 = vsel %vm1558, %v2514, 0.0
        %2523 = vadd.xlane.f32.xlu0 %v2522
        %v2524 = vpop.xlane.xlu0 %2523
        %v2525 = vsel %vm1558, %v2516, 0.0
        %2526 = vadd.xlane.f32.xlu0 %v2525
        %v2527 = vpop.xlane.xlu0 %2526
        %v2528 = vsel %vm1558, %v2518, 0.0
        %2529 = vadd.xlane.f32.xlu0 %v2528
        %v2530 = vpop.xlane.xlu0 %2529
        %v2531 = vrcp.pop %v2521
        %v2532 = vrcp.pop %v2524
        %v2533 = vrcp.pop %v2527
        %v2534 = vrcp.pop %v2530
        %v2535 = vmul.f32 %v2512, %v2531
        %v2536 = vmul.f32 %v2514, %v2532
        %v2537 = vmul.f32 %v2516, %v2533
        %v2538 = vmul.f32 %v2518, %v2534
        %v2539 = vpack.c.bf16 %v2535, %v2535
        %v2540 = vpack.c.bf16 %v2536, %v2536
        %v2541 = vpack.c.bf16 %v2537, %v2537
        %v2542 = vpack.c.bf16 %v2538, %v2538
        %v2543 = vpack.c.bf16 %v2267, %v2267
        %v2544 = vpack.c.bf16 %v2295, %v2295
        %v2545 = vpack.c.bf16 %v2298, %v2298
        %v2546 = vpack.c.bf16 %v2301, %v2301
        %v2548 = vsel %vm1558, %v2539, 0
        %v2551 = vsel %vm1809, %v2543, 0
        %2553 = vmatprep.subr.bf16.mxu0 0
        %2554 = vmatpush1.bf16.msra.mxu0 %v2551
        %2555 = vmatprep.subr.bf16.mxu0 0
        %2556 = vmatpush1.bf16.msra.mxu0 0
        %2557 = vmatprep.subr.bf16.mxu0 0
        %2558 = vmatpush1.bf16.msra.mxu0 0
        %2559 = vmatprep.subr.bf16.mxu0 0
        %2560 = vmatpush1.bf16.msra.mxu0 0
        %2561 = vmatprep.subr.bf16.mxu0 0
        %2562 = vmatpush1.bf16.msra.mxu0 0
        %2563 = vmatprep.subr.bf16.mxu0 0
        %2564 = vmatpush1.bf16.msra.mxu0 0
        %2565 = vmatprep.subr.bf16.mxu0 0
        %2566 = vmatpush1.bf16.msra.mxu0 0
        %2567 = vmatprep.subr.bf16.mxu0 0
        %2568 = vmatpush1.bf16.msra.mxu0 0
        %2569 = vmatprep.subr.bf16.mxu0 0
        %2570 = vmatpush1.bf16.msra.mxu0 0
        %2571 = vmatprep.subr.bf16.mxu0 0
        %2572 = vmatpush1.bf16.msra.mxu0 0
        %2573 = vmatprep.subr.bf16.mxu0 0
        %2574 = vmatpush1.bf16.msra.mxu0 0
        %2575 = vmatprep.subr.bf16.mxu0 0
        %2576 = vmatpush1.bf16.msra.mxu0 0
        %2577 = vmatprep.subr.bf16.mxu0 0
        %2578 = vmatpush1.bf16.msra.mxu0 0
        %2579 = vmatprep.subr.bf16.mxu0 0
        %2580 = vmatpush1.bf16.msra.mxu0 0
        %2581 = vmatprep.subr.bf16.mxu0 0
        %2582 = vmatpush1.bf16.msra.mxu0 0
        %2583 = vmatprep.subr.bf16.mxu0 0
        %2584 = vmatpush1.bf16.msra.mxu0 0
        %2585 = vmatprep.mubr.bf16.mxu0 0
        %2586 = vmatmul.mubr.bf16.gmra.mrb[0].mxu0 %v2548
        %v2587 = vpop.f32.mrb[0].mxu0
        %v2588 = vadd.f32 0.0, %v2587
        %v2589 = vpop.f32.mrb[0].mxu0
        %v2590 = vpop.f32.mrb[0].mxu0
        %v2591 = vpop.f32.mrb[0].mxu0
        %2592 = vdwg.mxu0
        %v2594 = vsel %vm1558, %v2540, 0
        %v2597 = vsel %vm1809, %v2544, 0
        %2599 = vmatprep.subr.bf16.mxu0 0
        %2600 = vmatpush1.bf16.msra.mxu0 %v2597
        %2601 = vmatprep.subr.bf16.mxu0 0
        %2602 = vmatpush1.bf16.msra.mxu0 0
        %2603 = vmatprep.subr.bf16.mxu0 0
        %2604 = vmatpush1.bf16.msra.mxu0 0
        %2605 = vmatprep.subr.bf16.mxu0 0
        %2606 = vmatpush1.bf16.msra.mxu0 0
        %2607 = vmatprep.subr.bf16.mxu0 0
        %2608 = vmatpush1.bf16.msra.mxu0 0
        %2609 = vmatprep.subr.bf16.mxu0 0
        %2610 = vmatpush1.bf16.msra.mxu0 0
        %2611 = vmatprep.subr.bf16.mxu0 0
        %2612 = vmatpush1.bf16.msra.mxu0 0
        %2613 = vmatprep.subr.bf16.mxu0 0
        %2614 = vmatpush1.bf16.msra.mxu0 0
        %2615 = vmatprep.subr.bf16.mxu0 0
        %2616 = vmatpush1.bf16.msra.mxu0 0
        %2617 = vmatprep.subr.bf16.mxu0 0
        %2618 = vmatpush1.bf16.msra.mxu0 0
        %2619 = vmatprep.subr.bf16.mxu0 0
        %2620 = vmatpush1.bf16.msra.mxu0 0
        %2621 = vmatprep.subr.bf16.mxu0 0
        %2622 = vmatpush1.bf16.msra.mxu0 0
        %2623 = vmatprep.subr.bf16.mxu0 0
        %2624 = vmatpush1.bf16.msra.mxu0 0
        %2625 = vmatprep.subr.bf16.mxu0 0
        %2626 = vmatpush1.bf16.msra.mxu0 0
        %2627 = vmatprep.subr.bf16.mxu0 0
        %2628 = vmatpush1.bf16.msra.mxu0 0
        %2629 = vmatprep.subr.bf16.mxu0 0
        %2630 = vmatpush1.bf16.msra.mxu0 0
        %2631 = vmatprep.mubr.bf16.mxu0 0
        %2632 = vmatmul.mubr.bf16.gmra.mrb[0].mxu0 %v2594
        %v2633 = vpop.f32.mrb[0].mxu0
        %v2634 = vadd.f32 0.0, %v2633
        %v2635 = vpop.f32.mrb[0].mxu0
        %v2636 = vpop.f32.mrb[0].mxu0
        %v2637 = vpop.f32.mrb[0].mxu0
        %2638 = vdwg.mxu0
        %v2640 = vsel %vm1558, %v2541, 0
        %v2643 = vsel %vm1809, %v2545, 0
        %2645 = vmatprep.subr.bf16.mxu0 0
        %2646 = vmatpush1.bf16.msra.mxu0 %v2643
        %2647 = vmatprep.subr.bf16.mxu0 0
        %2648 = vmatpush1.bf16.msra.mxu0 0
        %2649 = vmatprep.subr.bf16.mxu0 0
        %2650 = vmatpush1.bf16.msra.mxu0 0
        %2651 = vmatprep.subr.bf16.mxu0 0
        %2652 = vmatpush1.bf16.msra.mxu0 0
        %2653 = vmatprep.subr.bf16.mxu0 0
        %2654 = vmatpush1.bf16.msra.mxu0 0
        %2655 = vmatprep.subr.bf16.mxu0 0
        %2656 = vmatpush1.bf16.msra.mxu0 0
        %2657 = vmatprep.subr.bf16.mxu0 0
        %2658 = vmatpush1.bf16.msra.mxu0 0
        %2659 = vmatprep.subr.bf16.mxu0 0
        %2660 = vmatpush1.bf16.msra.mxu0 0
        %2661 = vmatprep.subr.bf16.mxu0 0
        %2662 = vmatpush1.bf16.msra.mxu0 0
        %2663 = vmatprep.subr.bf16.mxu0 0
        %2664 = vmatpush1.bf16.msra.mxu0 0
        %2665 = vmatprep.subr.bf16.mxu0 0
        %2666 = vmatpush1.bf16.msra.mxu0 0
        %2667 = vmatprep.subr.bf16.mxu0 0
        %2668 = vmatpush1.bf16.msra.mxu0 0
        %2669 = vmatprep.subr.bf16.mxu0 0
        %2670 = vmatpush1.bf16.msra.mxu0 0
        %2671 = vmatprep.subr.bf16.mxu0 0
        %2672 = vmatpush1.bf16.msra.mxu0 0
        %2673 = vmatprep.subr.bf16.mxu0 0
        %2674 = vmatpush1.bf16.msra.mxu0 0
        %2675 = vmatprep.subr.bf16.mxu0 0
        %2676 = vmatpush1.bf16.msra.mxu0 0
        %2677 = vmatprep.mubr.bf16.mxu0 0
        %2678 = vmatmul.mubr.bf16.gmra.mrb[0].mxu0 %v2640
        %v2679 = vpop.f32.mrb[0].mxu0
        %v2680 = vadd.f32 0.0, %v2679
        %v2681 = vpop.f32.mrb[0].mxu0
        %v2682 = vpop.f32.mrb[0].mxu0
        %v2683 = vpop.f32.mrb[0].mxu0
        %2684 = vdwg.mxu0
        %v2686 = vsel %vm1558, %v2542, 0
        %v2689 = vsel %vm1809, %v2546, 0
        %2691 = vmatprep.subr.bf16.mxu0 0
        %2692 = vmatpush1.bf16.msra.mxu0 %v2689
        %2693 = vmatprep.subr.bf16.mxu0 0
        %2694 = vmatpush1.bf16.msra.mxu0 0
        %2695 = vmatprep.subr.bf16.mxu0 0
        %2696 = vmatpush1.bf16.msra.mxu0 0
        %2697 = vmatprep.subr.bf16.mxu0 0
        %2698 = vmatpush1.bf16.msra.mxu0 0
        %2699 = vmatprep.subr.bf16.mxu0 0
        %2700 = vmatpush1.bf16.msra.mxu0 0
        %2701 = vmatprep.subr.bf16.mxu0 0
        %2702 = vmatpush1.bf16.msra.mxu0 0
        %2703 = vmatprep.subr.bf16.mxu0 0
        %2704 = vmatpush1.bf16.msra.mxu0 0
        %2705 = vmatprep.subr.bf16.mxu0 0
        %2706 = vmatpush1.bf16.msra.mxu0 0
        %2707 = vmatprep.subr.bf16.mxu0 0
        %2708 = vmatpush1.bf16.msra.mxu0 0
        %2709 = vmatprep.subr.bf16.mxu0 0
        %2710 = vmatpush1.bf16.msra.mxu0 0
        %2711 = vmatprep.subr.bf16.mxu0 0
        %2712 = vmatpush1.bf16.msra.mxu0 0
        %2713 = vmatprep.subr.bf16.mxu0 0
        %2714 = vmatpush1.bf16.msra.mxu0 0
        %2715 = vmatprep.subr.bf16.mxu0 0
        %2716 = vmatpush1.bf16.msra.mxu0 0
        %2717 = vmatprep.subr.bf16.mxu0 0
        %2718 = vmatpush1.bf16.msra.mxu0 0
        %2719 = vmatprep.subr.bf16.mxu0 0
        %2720 = vmatpush1.bf16.msra.mxu0 0
        %2721 = vmatprep.subr.bf16.mxu0 0
        %2722 = vmatpush1.bf16.msra.mxu0 0
        %2723 = vmatprep.mubr.bf16.mxu0 0
        %2724 = vmatmul.mubr.bf16.gmra.mrb[0].mxu0 %v2686
        %v2725 = vpop.f32.mrb[0].mxu0
        %v2726 = vadd.f32 0.0, %v2725
        %v2727 = vpop.f32.mrb[0].mxu0
        %v2728 = vpop.f32.mrb[0].mxu0
        %v2729 = vpop.f32.mrb[0].mxu0
        %2730 = vdwg.mxu0
        %2732 = vrot.lane.b32.xlu0 %v2634, 8
        %v2733 = vpop.permute.xlu0 %2732
        %2736 = vrot.lane.b32.xlu0 %v2680, 16
        %v2737 = vpop.permute.xlu0 %2736
        %2740 = vrot.lane.b32.xlu0 %v2726, 24
        %v2741 = vpop.permute.xlu0 %2740
        %v2743 = vsel %vm1558, %v2588, %v2733
        %v2744 = vsel %vm2004, %v2743, %v2737
        %v2745 = vsel %vm2006, %v2744, %v2741
        %v2746 = vpack.c.bf16 %v2745, %v2745
        %v2747 = vld [vmem:[%s1196] sm:$0xf]
        %v2748 = vld [vmem:[%s1196 + $0x4] sm:$0xf]
        %v2749 = vld [vmem:[%s1196 + $0x8] sm:$0xf]
        %v2750 = vld [vmem:[%s1196 + $0xc] sm:$0xf]
        %v2755 = vunpack.c.l.b16 %v2747
        %v2756 = vunpack.c.l.b16 %v2748
        %v2757 = vunpack.c.l.b16 %v2749
        %v2758 = vunpack.c.l.b16 %v2750
        %v2759 = vpack.c.b16 %v2756, %v2755
        %v2760 = vpack.c.b16 %v2758, %v2757
        %v2764 = vsel %vm1221, %v2746, 0
        %2766 = vmatprep.subr.bf16.mxu0 0
        %2767 = vmatpush1.bf16.msra.mxu0 %v2759
        %2768 = vmatprep.subr.bf16.mxu0 0
        %2769 = vmatpush1.bf16.msra.mxu0 %v2760
        %2770 = vmatprep.subr.bf16.mxu0 0
        %2771 = vmatpush1.bf16.msra.mxu0 0
        %2772 = vmatprep.subr.bf16.mxu0 0
        %2773 = vmatpush1.bf16.msra.mxu0 0
        %2774 = vmatprep.subr.bf16.mxu0 0
        %2775 = vmatpush1.bf16.msra.mxu0 0
        %2776 = vmatprep.subr.bf16.mxu0 0
        %2777 = vmatpush1.bf16.msra.mxu0 0
        %2778 = vmatprep.subr.bf16.mxu0 0
        %2779 = vmatpush1.bf16.msra.mxu0 0
        %2780 = vmatprep.subr.bf16.mxu0 0
        %2781 = vmatpush1.bf16.msra.mxu0 0
        %2782 = vmatprep.subr.bf16.mxu0 0
        %2783 = vmatpush1.bf16.msra.mxu0 0
        %2784 = vmatprep.subr.bf16.mxu0 0
        %2785 = vmatpush1.bf16.msra.mxu0 0
        %2786 = vmatprep.subr.bf16.mxu0 0
        %2787 = vmatpush1.bf16.msra.mxu0 0
        %2788 = vmatprep.subr.bf16.mxu0 0
        %2789 = vmatpush1.bf16.msra.mxu0 0
        %2790 = vmatprep.subr.bf16.mxu0 0
        %2791 = vmatpush1.bf16.msra.mxu0 0
        %2792 = vmatprep.subr.bf16.mxu0 0
        %2793 = vmatpush1.bf16.msra.mxu0 0
        %2794 = vmatprep.subr.bf16.mxu0 0
        %2795 = vmatpush1.bf16.msra.mxu0 0
        %2796 = vmatprep.subr.bf16.mxu0 0
        %2797 = vmatpush1.bf16.msra.mxu0 0
        %2798 = vmatprep.mubr.bf16.mxu0 0
        %2799 = vmatmul.mubr.bf16.gmra.mrb[0].mxu0 %v2764
        %v2800 = vpop.f32.mrb[0].mxu0
        %v2801 = vadd.f32 %v2063, %v2800
        %v2802 = vpop.f32.mrb[0].mxu0
        %v2803 = vpop.f32.mrb[0].mxu0
        %v2804 = vpop.f32.mrb[0].mxu0
        %2805 = vdwg.mxu0
        %v2806 = vld [vmem:[%s981] sm:$0x1]
        %v2807 = vld [vmem:[%s989] sm:$0x1]
        %v2808 = vsel %vm1221, %v2801, 0.0
        %2809 = vadd.xlane.f32.xlu0 %v2808
        %v2810 = vpop.xlane.xlu0 %2809
        %v2811 = vmul.f32 %v2810, %v1225
        %v2812 = vsub.f32 %v2801, %v2811
        %v2813 = vmul.f32 %v2812, %v2812
        %v2814 = vsel %vm1221, %v2813, 0.0
        %2815 = vadd.xlane.f32.xlu0 %v2814
        %v2816 = vpop.xlane.xlu0 %2815
        %v2817 = vmul.f32 %v2816, %v1225
        %v2818 = vadd.f32 %v2817, 1e-05
        %v2819 = vrsqrt.pop %v2818
        %v2820 = vmul.f32 %v2812, %v2819
        %v2822 = vlaneseq
        %v2823 = vshrl.u32 %v2822, 7
        %v2824 = vsub.s32 0, %v2823
        %v2825 = vrot.slane %v2806, %v2824
        %v2827 = vmul.f32 %v2820, %v2825
        %v2829 = vlaneseq
        %v2830 = vshrl.u32 %v2829, 7
        %v2831 = vsub.s32 0, %v2830
        %v2832 = vrot.slane %v2807, %v2831
        %v2834 = vadd.f32 %v2827, %v2832
        %v2835 = vpack.c.bf16 %v2834, %v2834
        %v2836 = vld [vmem:[%s1201] sm:$0xff]
        %v2837 = vld [vmem:[%s1201 + $0x8] sm:$0xff]
        %v2838 = vld [vmem:[%s1201 + $0x10] sm:$0xff]
        %v2839 = vld [vmem:[%s1201 + $0x18] sm:$0xff]
        %v2840 = vld [vmem:[%s998] sm:$0x3]
        %v2842 = vlaneseq
        %v2843 = vshrl.u32 %v2842, 7
        %v2844 = vsub.s32 0, %v2843
        %v2845 = vrot.slane %v2840, %v2844
        %v2846 = vlaneseq
        %v2847 = vshrl.u32 %v2846, 7
        %v2848 = vsub.s32 1, %v2847
        %v2849 = vrot.slane %v2840, %v2848
        %v2856 = vunpack.c.l.b16 %v2836
        %v2857 = vunpack.c.h.b16 %v2836
        %v2858 = vunpack.c.l.b16 %v2837
        %v2859 = vunpack.c.h.b16 %v2837
        %v2860 = vunpack.c.l.b16 %v2838
        %v2861 = vunpack.c.h.b16 %v2838
        %v2862 = vunpack.c.l.b16 %v2839
        %v2863 = vunpack.c.h.b16 %v2839
        %v2864 = vpack.c.b16 %v2858, %v2856
        %v2865 = vpack.c.b16 %v2859, %v2857
        %v2866 = vpack.c.b16 %v2862, %v2860
        %v2867 = vpack.c.b16 %v2863, %v2861
        %v2873 = vsel %vm1221, %v2835, 0
        %2875 = vmatprep.subr.bf16.mxu0 %v2865
        %2876 = vmatpush1.bf16.msra.mxu0 %v2864
        %2877 = vmatprep.subr.bf16.mxu0 %v2867
        %2878 = vmatpush1.bf16.msra.mxu0 %v2866
        %2879 = vmatprep.subr.bf16.mxu0 0
        %2880 = vmatpush1.bf16.msra.mxu0 0
        %2881 = vmatprep.subr.bf16.mxu0 0
        %2882 = vmatpush1.bf16.msra.mxu0 0
        %2883 = vmatprep.subr.bf16.mxu0 0
        %2884 = vmatpush1.bf16.msra.mxu0 0
        %2885 = vmatprep.subr.bf16.mxu0 0
        %2886 = vmatpush1.bf16.msra.mxu0 0
        %2887 = vmatprep.subr.bf16.mxu0 0
        %2888 = vmatpush1.bf16.msra.mxu0 0
        %2889 = vmatprep.subr.bf16.mxu0 0
        %2890 = vmatpush1.bf16.msra.mxu0 0
        %2891 = vmatprep.subr.bf16.mxu0 0
        %2892 = vmatpush1.bf16.msra.mxu0 0
        %2893 = vmatprep.subr.bf16.mxu0 0
        %2894 = vmatpush1.bf16.msra.mxu0 0
        %2895 = vmatprep.subr.bf16.mxu0 0
        %2896 = vmatpush1.bf16.msra.mxu0 0
        %2897 = vmatprep.subr.bf16.mxu0 0
        %2898 = vmatpush1.bf16.msra.mxu0 0
        %2899 = vmatprep.subr.bf16.mxu0 0
        %2900 = vmatpush1.bf16.msra.mxu0 0
        %2901 = vmatprep.subr.bf16.mxu0 0
        %2902 = vmatpush1.bf16.msra.mxu0 0
        %2903 = vmatprep.subr.bf16.mxu0 0
        %2904 = vmatpush1.bf16.msra.mxu0 0
        %2905 = vmatprep.subr.bf16.mxu0 0
        %2906 = vmatpush1.bf16.msra.mxu0 0
        %2907 = vmatprep.mubr.bf16.mxu0 0
        %2908 = vmatmul.mubr.bf16.gmra.mrb[0].mxu0 %v2873
        %v2909 = vpop.f32.mrb[0].mxu0
        %v2910 = vadd.f32 %v2845, %v2909
        %v2911 = vpop.f32.mrb[0].mxu0
        %v2912 = vadd.f32 %v2849, %v2911
        %v2913 = vpop.f32.mrb[0].mxu0
        %v2914 = vpop.f32.mrb[0].mxu0
        %2915 = vdwg.mxu0
        %v2916 = vxor.u32 %v2910, 2147483648
        %v2917 = vxor.u32 %v2912, 2147483648
        %v2918 = vmul.f32 %v2916, 1.442695
        %v2919 = vpow.pop %v2918
        %v2920 = vmul.f32 %v2917, 1.442695
        %v2921 = vpow.pop %v2920
        %v2922 = vadd.f32 %v2919, 1.0
        %v2923 = vadd.f32 %v2921, 1.0
        %v2924 = vrcp.pop %v2922
        %v2925 = vmul.f32 1.0, %v2924
        %v2926 = vrcp.pop %v2923
        %v2927 = vmul.f32 1.0, %v2926
        %v2928 = vmul.f32 %v2910, %v2925
        %v2929 = vmul.f32 %v2912, %v2927
        %v2930 = vpack.c.bf16 %v2928, %v2928
        %v2931 = vpack.c.bf16 %v2929, %v2929
        %v2932 = vld [vmem:[%s1206] sm:$0xf]
        %v2933 = vld [vmem:[%s1206 + $0x4] sm:$0xf]
        %v2934 = vld [vmem:[%s1206 + $0x8] sm:$0xf]
        %v2935 = vld [vmem:[%s1206 + $0xc] sm:$0xf]
        %v2936 = vld [vmem:[%s1206 + $0x10] sm:$0xf]
        %v2937 = vld [vmem:[%s1206 + $0x14] sm:$0xf]
        %v2938 = vld [vmem:[%s1206 + $0x18] sm:$0xf]
        %v2939 = vld [vmem:[%s1206 + $0x1c] sm:$0xf]
        %v2940 = vld [vmem:[%s1206 + $0x20] sm:$0xf]
        %v2941 = vld [vmem:[%s1206 + $0x24] sm:$0xf]
        %v2942 = vld [vmem:[%s1206 + $0x28] sm:$0xf]
        %v2943 = vld [vmem:[%s1206 + $0x2c] sm:$0xf]
        %v2944 = vld [vmem:[%s1206 + $0x30] sm:$0xf]
        %v2945 = vld [vmem:[%s1206 + $0x34] sm:$0xf]
        %v2946 = vld [vmem:[%s1206 + $0x38] sm:$0xf]
        %v2947 = vld [vmem:[%s1206 + $0x3c] sm:$0xf]
        %v2948 = vld [vmem:[%s1206 + $0x40] sm:$0xf]
        %v2949 = vld [vmem:[%s1206 + $0x44] sm:$0xf]
        %v2950 = vld [vmem:[%s1206 + $0x48] sm:$0xf]
        %v2951 = vld [vmem:[%s1206 + $0x4c] sm:$0xf]
        %v2952 = vld [vmem:[%s1206 + $0x50] sm:$0xf]
        %v2953 = vld [vmem:[%s1206 + $0x54] sm:$0xf]
        %v2954 = vld [vmem:[%s1206 + $0x58] sm:$0xf]
        %v2955 = vld [vmem:[%s1206 + $0x5c] sm:$0xf]
        %v2956 = vld [vmem:[%s1206 + $0x60] sm:$0xf]
        %v2957 = vld [vmem:[%s1206 + $0x64] sm:$0xf]
        %v2958 = vld [vmem:[%s1206 + $0x68] sm:$0xf]
        %v2959 = vld [vmem:[%s1206 + $0x6c] sm:$0xf]
        %v2960 = vld [vmem:[%s1206 + $0x70] sm:$0xf]
        %v2961 = vld [vmem:[%s1206 + $0x74] sm:$0xf]
        %v2962 = vld [vmem:[%s1206 + $0x78] sm:$0xf]
        %v2963 = vld [vmem:[%s1206 + $0x7c] sm:$0xf]
        %v2964 = vld [vmem:[%s1006] sm:$0x1]
        %v2966 = vlaneseq
        %v2967 = vshrl.u32 %v2966, 7
        %v2968 = vsub.s32 0, %v2967
        %v2969 = vrot.slane %v2964, %v2968
        %v3003 = vunpack.c.l.b16 %v2932
        %v3004 = vunpack.c.l.b16 %v2933
        %v3005 = vunpack.c.l.b16 %v2934
        %v3006 = vunpack.c.l.b16 %v2935
        %v3007 = vunpack.c.l.b16 %v2936
        %v3008 = vunpack.c.l.b16 %v2937
        %v3009 = vunpack.c.l.b16 %v2938
        %v3010 = vunpack.c.l.b16 %v2939
        %v3011 = vunpack.c.l.b16 %v2940
        %v3012 = vunpack.c.l.b16 %v2941
        %v3013 = vunpack.c.l.b16 %v2942
        %v3014 = vunpack.c.l.b16 %v2943
        %v3015 = vunpack.c.l.b16 %v2944
        %v3016 = vunpack.c.l.b16 %v2945
        %v3017 = vunpack.c.l.b16 %v2946
        %v3018 = vunpack.c.l.b16 %v2947
        %v3019 = vunpack.c.l.b16 %v2948
        %v3020 = vunpack.c.l.b16 %v2949
        %v3021 = vunpack.c.l.b16 %v2950
        %v3022 = vunpack.c.l.b16 %v2951
        %v3023 = vunpack.c.l.b16 %v2952
        %v3024 = vunpack.c.l.b16 %v2953
        %v3025 = vunpack.c.l.b16 %v2954
        %v3026 = vunpack.c.l.b16 %v2955
        %v3027 = vunpack.c.l.b16 %v2956
        %v3028 = vunpack.c.l.b16 %v2957
        %v3029 = vunpack.c.l.b16 %v2958
        %v3030 = vunpack.c.l.b16 %v2959
        %v3031 = vunpack.c.l.b16 %v2960
        %v3032 = vunpack.c.l.b16 %v2961
        %v3033 = vunpack.c.l.b16 %v2962
        %v3034 = vunpack.c.l.b16 %v2963
        %v3035 = vpack.c.b16 %v3004, %v3003
        %v3036 = vpack.c.b16 %v3006, %v3005
        %v3037 = vpack.c.b16 %v3008, %v3007
        %v3038 = vpack.c.b16 %v3010, %v3009
        %v3039 = vpack.c.b16 %v3012, %v3011
        %v3040 = vpack.c.b16 %v3014, %v3013
        %v3041 = vpack.c.b16 %v3016, %v3015
        %v3042 = vpack.c.b16 %v3018, %v3017
        %v3043 = vpack.c.b16 %v3020, %v3019
        %v3044 = vpack.c.b16 %v3022, %v3021
        %v3045 = vpack.c.b16 %v3024, %v3023
        %v3046 = vpack.c.b16 %v3026, %v3025
        %v3047 = vpack.c.b16 %v3028, %v3027
        %v3048 = vpack.c.b16 %v3030, %v3029
        %v3049 = vpack.c.b16 %v3032, %v3031
        %v3050 = vpack.c.b16 %v3034, %v3033
        %3067 = vmatprep.subr.bf16.mxu0 0
        %3068 = vmatpush1.bf16.msra.mxu0 %v3035
        %3069 = vmatprep.subr.bf16.mxu0 0
        %3070 = vmatpush1.bf16.msra.mxu0 %v3036
        %3071 = vmatprep.subr.bf16.mxu0 0
        %3072 = vmatpush1.bf16.msra.mxu0 %v3037
        %3073 = vmatprep.subr.bf16.mxu0 0
        %3074 = vmatpush1.bf16.msra.mxu0 %v3038
        %3075 = vmatprep.subr.bf16.mxu0 0
        %3076 = vmatpush1.bf16.msra.mxu0 %v3039
        %3077 = vmatprep.subr.bf16.mxu0 0
        %3078 = vmatpush1.bf16.msra.mxu0 %v3040
        %3079 = vmatprep.subr.bf16.mxu0 0
        %3080 = vmatpush1.bf16.msra.mxu0 %v3041
        %3081 = vmatprep.subr.bf16.mxu0 0
        %3082 = vmatpush1.bf16.msra.mxu0 %v3042
        %3083 = vmatprep.subr.bf16.mxu0 0
        %3084 = vmatpush1.bf16.msra.mxu0 %v3043
        %3085 = vmatprep.subr.bf16.mxu0 0
        %3086 = vmatpush1.bf16.msra.mxu0 %v3044
        %3087 = vmatprep.subr.bf16.mxu0 0
        %3088 = vmatpush1.bf16.msra.mxu0 %v3045
        %3089 = vmatprep.subr.bf16.mxu0 0
        %3090 = vmatpush1.bf16.msra.mxu0 %v3046
        %3091 = vmatprep.subr.bf16.mxu0 0
        %3092 = vmatpush1.bf16.msra.mxu0 %v3047
        %3093 = vmatprep.subr.bf16.mxu0 0
        %3094 = vmatpush1.bf16.msra.mxu0 %v3048
        %3095 = vmatprep.subr.bf16.mxu0 0
        %3096 = vmatpush1.bf16.msra.mxu0 %v3049
        %3097 = vmatprep.subr.bf16.mxu0 0
        %3098 = vmatpush1.bf16.msra.mxu0 %v3050
        %3099 = vmatprep.mubr.bf16.mxu0 %v2931
        %3100 = vmatmul.mubr.bf16.gmra.mrb[0].mxu0 %v2930
        %v3101 = vpop.f32.mrb[0].mxu0
        %v3102 = vadd.f32 %v2969, %v3101
        %v3103 = vpop.f32.mrb[0].mxu0
        %v3104 = vpop.f32.mrb[0].mxu0
        %v3105 = vpop.f32.mrb[0].mxu0
        %3106 = vdwg.mxu0
        %v3107 = vadd.f32 %v3102, %v2801
        %3108 = vst.msk [vmem:[#allocation2] sm:$0xff] %vm1221, %v3107
        %3109 = vst.msk [vmem:[%s1153] sm:$0xff] %vm1221, %v3107
        %s3110 = sand.u32 %s636, 1
        %s3111 = scalar_lea.sflag [#allocation5], %s3110
        %s3112 = sand.u32 %s636, 1
        %s3113 = smul.addr %s3112, 8
        %s3114 = scalar_lea.vmem [#allocation20], %s3113
        // Predicated region
        $region153: #{tpu_custom_call.1} parent=107 // pred_check
          %p3115 = pneg %p646
        $region154: #{tpu_custom_call.1} parent=107 // pred_check_branch
          %3117 = sbr.rel (%p3115) target = $region156
        $region155: #{tpu_custom_call.1} parent=107 // pred_region
          %s3119 = ssub.s32 128, 128
          %3120 = vsyncadd %s3111, %s3119
          %s3121 = smul.addr %s58, 128
          %s3122 = scalar_lea.hbm %s22, %s3121
          %s3124 = sshll.u32 %s3114, 4
          %s3125 = int_to_ptr.vmem [resolvable:$true] %s3124
          %3127 = dma.vmem_to_hbm [thread:$0]  %s3125, 128, %s3122, %s3111
        $region156: #{tpu_custom_call.1} parent=107 // pred_fallthru
          _
      $region108: #{tpu_custom_call.1} parent=5 // pred_fallthru
        _
      %p3128 = scmp.le.s32.totalorder 2, %s49
      // Predicated region
      $region157: #{tpu_custom_call.1} parent=5 // pred_check
        %p3129 = pneg %p3128
      $region158: #{tpu_custom_call.1} parent=5 // pred_check_branch
        %3131 = sbr.rel (%p3129) target = $region160
      $region159: #{tpu_custom_call.1} parent=5 // pred_region
        %s3132 = ssub.s32 %s49, 2
        // Predicated region
        $region161: #{tpu_custom_call.1} parent=159 // pred_check
          %p3133 = pneg %p652
        $region162: #{tpu_custom_call.1} parent=159 // pred_check_branch
          %3135 = sbr.rel (%p3133) target = $region164
        $region163: #{tpu_custom_call.1} parent=159 // pred_region
          %s3136 = sand.u32 %s637, 1
          %s3137 = scalar_lea.sflag [#allocation5], %s3136
          %s3138 = sand.u32 %s637, 1
          %s3139 = smul.addr %s3138, 8
          %s3140 = scalar_lea.vmem [#allocation20], %s3139
          %3141 = dma.done %s3137, 128
        $region164: #{tpu_custom_call.1} parent=159 // pred_fallthru
          _
      $region160: #{tpu_custom_call.1} parent=5 // pred_fallthru
        _
    $region6: #{tpu_custom_call.1} parent=1 // loop_footer
      %s53 = sadd.s32 1, %s49
    $region7: #{tpu_custom_call.1} parent=1 // loop_footer_branch
      %48 = sbr.rel target = $region3
    $region8: #{tpu_custom_call.1} parent=1 // loop_exit
      _
    %3142 = vsyncpa [#allocation4], 1
    %s3143 = scalar_lea.sflag [#allocation4], 1
    %3144 = vsyncpa %s3143, 1
    %3145 = vsyncpa [#allocation7], 1
    %s3146 = scalar_lea.sflag [#allocation7], 1
    %3147 = vsyncpa %s3146, 1
    %3148 = vsyncpa [#allocation10], 1
    %s3149 = scalar_lea.sflag [#allocation10], 1
    %3150 = vsyncpa %s3149, 1
    %3151 = vsyncpa [#allocation13], 1
    %s3152 = scalar_lea.sflag [#allocation13], 1
    %3153 = vsyncpa %s3152, 1
    %3154 = vsyncpa [#allocation16], 1
    %s3155 = scalar_lea.sflag [#allocation16], 1
    %3156 = vsyncpa %s3155, 1
    %3157 = vsyncpa [#allocation19], 1
    %s3158 = scalar_lea.sflag [#allocation19], 1
    %3159 = vsyncpa %s3158, 1
    %3160 = vsyncpa [#allocation5], 1
    %s3161 = scalar_lea.sflag [#allocation5], 1
    %3162 = vsyncpa %s3161, 1

</llo_original>
